<compile_context>
chip_gen: v7x
topology: tpu7x:2x2x1
jax: 0.10.0
libtpu: 0.0.40
codegen_flags: <defaults>
</compile_context>

<pallas_src>
import functools

import jax
import jax.numpy as jnp
from jax import lax
from jax.experimental import pallas as pl
from jax.experimental.pallas import tpu as pltpu


def _disparity_loss_kernel(x_ref, lab_ref, out_ref, *,
                           maxdisp, variance, h_valid, tile_h, width,
                           mask_rows):
    # x_ref: (D, tile_h, W) cost-volume block; lab_ref: (tile_h, W);
    # out_ref: (8, W) per-step partial-sum block.
    D = maxdisp
    CH = 8                                   # one sublane tile of rows
    num_chunks = tile_h // CH                # tile_h is a multiple of 8
    inv_var = jnp.float32(1.0 / variance)
    maxd = jnp.float32(maxdisp)

    if mask_rows:
        row_base = pl.program_id(1) * tile_h   # first global row of this tile

    def chunk_body(r, acc):
        r0 = pl.multiple_of(r * CH, CH)

        d = lab_ref[pl.ds(r0, CH), :].astype(jnp.float32)
        m1 = jnp.logical_and(d > 0.0, d < maxd).astype(jnp.float32)
        dm = d * m1
        m2 = jnp.logical_and(dm > 0.0, dm < maxd - 1.0).astype(jnp.float32)
        dmm = dm * m2

        # Pass 1 over disparity: per-pixel running max (x is unbounded, so the
        # log-softmax max-subtraction guard must stay).
        x_max = x_ref[0, pl.ds(r0, CH), :].astype(jnp.float32)
        for k in range(1, D):
            x_max = jnp.maximum(
                x_max, x_ref[k, pl.ds(r0, CH), :].astype(jnp.float32))

        # Pass 2: accumulate, per pixel,
        #   sum_exp = sum_k exp(x_k - x_max)               (log-softmax denom)
        #   denom   = sum_k exp(-|k - dmm| / variance)     (Laplace softmax denom)
        #   s_lp    = sum_k exp(-|k - dmm| / variance) * (x_k - x_max)
        # -|k-dmm|/variance <= 0 by construction, so no max-subtraction is
        # needed on the Laplace side.
        zero = jnp.zeros_like(d)
        sum_exp, denom, s_lp = zero, zero, zero
        for k in range(D):
            xk = x_ref[k, pl.ds(r0, CH), :].astype(jnp.float32) - x_max
            sum_exp = sum_exp + jnp.exp(xk)
            e_k = jnp.exp(-jnp.abs(jnp.float32(k) - dmm) * inv_var)
            denom = denom + e_k
            s_lp = s_lp + e_k * xk

        # sum_k gtProb_k * logP_k = m2 * [ s_lp/denom - log(sum_exp) ]
        # (m2 implies m1; the 1e-40-eps cross term of the reference is ~1e-38
        # per pixel and dropped — below the tolerance of f32 TPU arithmetic.)
        pix = (s_lp / denom - jnp.log(sum_exp)) * m2

        if mask_rows:
            row = (lax.broadcasted_iota(jnp.int32, (CH, width), 0)
                   + (row_base + r0))
            # True select (not multiply): NaN/Inf from garbage pad rows of the
            # clipped edge block must not leak into the partial sum.
            pix = jnp.where(row < h_valid, pix, 0.0)

        return acc + pix

    acc = lax.fori_loop(0, num_chunks, chunk_body,
                        jnp.zeros((CH, width), jnp.float32))
    out_ref[...] = acc


def _round_up(x, m):
    return ((x + m - 1) // m) * m


def _choose_tile_h(B, D, H, W, itemsize, tile_h=None,
                   target_block_bytes=8 * 1024 * 1024):
    """Row-tile size: always a multiple of 8 (one sublane tile)."""
    h8 = _round_up(H, 8)
    if tile_h is not None:
        return max(8, min(_round_up(int(tile_h), 8), h8))
    # ~target_block_bytes per x block (double-buffered by the pipeline);
    # 8 MiB keeps 2x buffers well under the v7x 64 MiB physical VMEM.
    tile_h = max(8, (target_block_bytes // (D * W * itemsize)) // 8 * 8)
    tile_h = min(tile_h, h8)
    # Keep each per-disparity strided DMA run (tile_h*W*itemsize contiguous
    # bytes) comfortably large on narrow-W cost volumes.
    if tile_h < h8 and tile_h * W * itemsize < 2048:
        tile_h = h8
    # v7x megacore: prefer >= 8 grid steps so both TensorCores stay busy.
    while tile_h > 8 and B * pl.cdiv(H, tile_h) < 8:
        tile_h = max(8, (tile_h // 2) // 8 * 8)
    return tile_h


def disparity_loss(x, label, *, maxdisp=64, variance=0.5, tile_h=None):
    """x: [B, maxdisp, H, W] cost volume (native NCHW, f32 or bf16);
    label: [B, H, W] gt disparity.  Forward / eval only."""
    B, D, H, W = x.shape
    assert D == maxdisp
    assert label.shape == (B, H, W)

    itemsize = jnp.dtype(x.dtype).itemsize
    tile_h = _choose_tile_h(B, D, H, W, itemsize, tile_h)
    assert tile_h % 8 == 0
    num_h = pl.cdiv(H, tile_h)
    mask_rows = (num_h * tile_h) != H        # any pad rows at all?

    kernel = functools.partial(
        _disparity_loss_kernel, maxdisp=maxdisp, variance=variance,
        h_valid=H, tile_h=tile_h, width=W, mask_rows=mask_rows)

    x_block = D * tile_h * W * itemsize
    lab_block = tile_h * W * jnp.dtype(label.dtype).itemsize
    out_block = 8 * W * 4
    vmem_limit = min(
        48 << 20,
        max(32 << 20, 2 * (x_block + lab_block + out_block) + (8 << 20)))

    partial_sums = pl.pallas_call(
        kernel,
        out_shape=jax.ShapeDtypeStruct((B, num_h, 8, W), jnp.float32),
        grid_spec=pltpu.PrefetchScalarGridSpec(
            num_scalar_prefetch=0,
            grid=(B, num_h),
            in_specs=[
                pl.BlockSpec((pl.Squeezed(), D, tile_h, W),
                             lambda b, hi: (b, 0, hi, 0)),
                pl.BlockSpec((pl.Squeezed(), tile_h, W),
                             lambda b, hi: (b, hi, 0)),
            ],
            out_specs=pl.BlockSpec((pl.Squeezed(), pl.Squeezed(), 8, W),
                                   lambda b, hi: (b, hi, 0, 0)),
        ),
        compiler_params=pltpu.CompilerParams(
            # Every step owns a distinct output block and carries no
            # cross-step state -> both axes shard across TensorCores.
            dimension_semantics=("parallel", "parallel"),
            vmem_limit_bytes=int(vmem_limit)),
    )(x, label)

    # Tiny epilogue: (B, num_h, 8, W) partial sums (pad rows contributed exact
    # zeros); the mean denominator is the true pixel count B*H*W.
    return -(jnp.sum(partial_sums) / jnp.float32(B * H * W))


def disparity_loss_ref(x, label, *, maxdisp=64, variance=0.5):
    d = label[:, None, :, :].astype(jnp.float32)
    m1 = jnp.logical_and(d > 0.0, d < maxdisp).astype(jnp.float32)
    dm = d * m1
    m2 = jnp.logical_and(dm > 0.0, dm < maxdisp - 1).astype(jnp.float32)
    dmm = dm * m2
    idx = jnp.arange(maxdisp, dtype=jnp.float32)[None, :, None, None]
    sd = -jnp.abs(idx - dmm) / variance
    gt_prob = jax.nn.softmax(sd, axis=1) * m2 + 1e-40
    logp = jax.nn.log_softmax(x.astype(jnp.float32), axis=1)
    return -jnp.mean(jnp.sum(gt_prob * logp, axis=1, keepdims=True) * m1)


if __name__ == "__main__":
    maxdisp = 64
    B, H, W = 2, 24, 16   # H=24 with tile_h=16 exercises the cdiv + tail-mask path

    key = jax.random.PRNGKey(0)
    kx, kl = jax.random.split(key)
    # Synthetic cost volume and disparity labels (labels partly outside
    # (0, maxdisp) so the validity masks are exercised).
    x = jax.random.normal(kx, (B, maxdisp, H, W), dtype=jnp.float32)
    label = jax.random.uniform(kl, (B, H, W), dtype=jnp.float32,
                               minval=-5.0, maxval=80.0)

    loss = disparity_loss(x, label, maxdisp=maxdisp, variance=0.5, tile_h=16)
    loss = jax.block_until_ready(loss)

    ref = disparity_loss_ref(x, label, maxdisp=maxdisp, variance=0.5)
    # Exact divide is used for the gt-softmax normalization, so the tolerance
    # is tight again.
    assert jnp.allclose(loss, ref, rtol=1e-3, atol=1e-5), (loss, ref)

    print("KERNEL_OK")
</pallas_src>

<mosaic_0001>
module attributes {stable_mosaic.version = 11 : i64} {
  func.func @_disparity_loss_kernel(%arg0: i32, %arg1: i32, %arg2: memref<1x64x16x16xf32, #tpu.memory_space<vmem>>, %arg3: memref<1x16x16xf32, #tpu.memory_space<vmem>>, %arg4: memref<1x1x8x16xf32, #tpu.memory_space<vmem>>) attributes {dimension_semantics = [#tpu.dimension_semantics<parallel>, #tpu.dimension_semantics<parallel>], iteration_bounds = array<i64: 2, 2>, scalar_prefetch = 0 : i64, scratch_operands = 0 : i64, tpu.core_type = #tpu.core_type<tc>, window_params = [{transform_indices = @transform_0, window_bounds = array<i64: 1, 64, 16, 16>}, {transform_indices = @transform_1, window_bounds = array<i64: 1, 16, 16>}, {transform_indices = @transform_2, window_bounds = array<i64: 1, 1, 8, 16>}]} {
    %c16_i32 = arith.constant 16 : i32
    %0 = arith.muli %arg1, %c16_i32 : i32
    %cst = arith.constant 0.000000e+00 : f32
    %1 = vector.broadcast %cst : f32 to vector<8x16xf32>
    %cst_0 = arith.constant 6.400000e+01 : f32
    %cst_1 = arith.constant 2.000000e+00 : f32
    %c0_i32 = arith.constant 0 : i32
    %c2_i32 = arith.constant 2 : i32
    %2 = arith.addi %c0_i32, %c2_i32 : i32
    %c1_i32 = arith.constant 1 : i32
    %3 = scf.for %arg5 = %c0_i32 to %2 step %c1_i32 iter_args(%arg6 = %1) -> (vector<8x16xf32>)  : i32 {
      %c8_i32 = arith.constant 8 : i32
      %7 = arith.muli %arg5, %c8_i32 : i32
      %8 = tpu.assume_multiple %7, 8 : i32
      %c0_6 = arith.constant 0 : index
      %9 = arith.index_cast %8 : i32 to index
      %c0_7 = arith.constant 0 : index
      %10 = vector.load %arg3[%c0_6, %9, %c0_7] : memref<1x16x16xf32, #tpu.memory_space<vmem>>, vector<1x8x16xf32>
      %11 = vector.shape_cast %10 : vector<1x8x16xf32> to vector<8x16xf32>
      %cst_8 = arith.constant 0.000000e+00 : f32
      %12 = vector.broadcast %cst_8 : f32 to vector<8x16xf32>
      %13 = arith.cmpf ogt, %11, %12 : vector<8x16xf32>
      %14 = vector.broadcast %cst_0 : f32 to vector<8x16xf32>
      %15 = arith.cmpf olt, %11, %14 : vector<8x16xf32>
      %16 = arith.andi %13, %15 : vector<8x16xi1>
      %17 = arith.extui %16 : vector<8x16xi1> to vector<8x16xi32>
      %18 = arith.sitofp %17 : vector<8x16xi32> to vector<8x16xf32>
      %19 = arith.mulf %11, %18 : vector<8x16xf32>
      %cst_9 = arith.constant 0.000000e+00 : f32
      %20 = vector.broadcast %cst_9 : f32 to vector<8x16xf32>
      %21 = arith.cmpf ogt, %19, %20 : vector<8x16xf32>
      %cst_10 = arith.constant 1.000000e+00 : f32
      %22 = arith.subf %cst_0, %cst_10 : f32
      %23 = vector.broadcast %22 : f32 to vector<8x16xf32>
      %24 = arith.cmpf olt, %19, %23 : vector<8x16xf32>
      %25 = arith.andi %21, %24 : vector<8x16xi1>
      %26 = arith.extui %25 : vector<8x16xi1> to vector<8x16xi32>
      %27 = arith.sitofp %26 : vector<8x16xi32> to vector<8x16xf32>
      %28 = arith.mulf %19, %27 : vector<8x16xf32>
      %c0_11 = arith.constant 0 : index
      %c0_12 = arith.constant 0 : index
      %29 = arith.index_cast %8 : i32 to index
      %c0_13 = arith.constant 0 : index
      %30 = vector.load %arg2[%c0_11, %c0_12, %29, %c0_13] : memref<1x64x16x16xf32, #tpu.memory_space<vmem>>, vector<1x1x8x16xf32>
      %31 = vector.shape_cast %30 : vector<1x1x8x16xf32> to vector<8x16xf32>
      %c0_14 = arith.constant 0 : index
      %c1 = arith.constant 1 : index
      %32 = arith.index_cast %8 : i32 to index
      %c0_15 = arith.constant 0 : index
      %33 = vector.load %arg2[%c0_14, %c1, %32, %c0_15] : memref<1x64x16x16xf32, #tpu.memory_space<vmem>>, vector<1x1x8x16xf32>
      %34 = vector.shape_cast %33 : vector<1x1x8x16xf32> to vector<8x16xf32>
      %35 = arith.maximumf %31, %34 : vector<8x16xf32>
      %c0_16 = arith.constant 0 : index
      %c2 = arith.constant 2 : index
      %36 = arith.index_cast %8 : i32 to index
      %c0_17 = arith.constant 0 : index
      %37 = vector.load %arg2[%c0_16, %c2, %36, %c0_17] : memref<1x64x16x16xf32, #tpu.memory_space<vmem>>, vector<1x1x8x16xf32>
      %38 = vector.shape_cast %37 : vector<1x1x8x16xf32> to vector<8x16xf32>
      %39 = arith.maximumf %35, %38 : vector<8x16xf32>
      %c0_18 = arith.constant 0 : index
      %c3 = arith.constant 3 : index
      %40 = arith.index_cast %8 : i32 to index
      %c0_19 = arith.constant 0 : index
      %41 = vector.load %arg2[%c0_18, %c3, %40, %c0_19] : memref<1x64x16x16xf32, #tpu.memory_space<vmem>>, vector<1x1x8x16xf32>
      %42 = vector.shape_cast %41 : vector<1x1x8x16xf32> to vector<8x16xf32>
      %43 = arith.maximumf %39, %42 : vector<8x16xf32>
      %c0_20 = arith.constant 0 : index
      %c4 = arith.constant 4 : index
      %44 = arith.index_cast %8 : i32 to index
      %c0_21 = arith.constant 0 : index
      %45 = vector.load %arg2[%c0_20, %c4, %44, %c0_21] : memref<1x64x16x16xf32, #tpu.memory_space<vmem>>, vector<1x1x8x16xf32>
      %46 = vector.shape_cast %45 : vector<1x1x8x16xf32> to vector<8x16xf32>
      %47 = arith.maximumf %43, %46 : vector<8x16xf32>
      %c0_22 = arith.constant 0 : index
      %c5 = arith.constant 5 : index
      %48 = arith.index_cast %8 : i32 to index
      %c0_23 = arith.constant 0 : index
      %49 = vector.load %arg2[%c0_22, %c5, %48, %c0_23] : memref<1x64x16x16xf32, #tpu.memory_space<vmem>>, vector<1x1x8x16xf32>
      %50 = vector.shape_cast %49 : vector<1x1x8x16xf32> to vector<8x16xf32>
      %51 = arith.maximumf %47, %50 : vector<8x16xf32>
      %c0_24 = arith.constant 0 : index
      %c6 = arith.constant 6 : index
      %52 = arith.index_cast %8 : i32 to index
      %c0_25 = arith.constant 0 : index
      %53 = vector.load %arg2[%c0_24, %c6, %52, %c0_25] : memref<1x64x16x16xf32, #tpu.memory_space<vmem>>, vector<1x1x8x16xf32>
      %54 = vector.shape_cast %53 : vector<1x1x8x16xf32> to vector<8x16xf32>
      %55 = arith.maximumf %51, %54 : vector<8x16xf32>
      %c0_26 = arith.constant 0 : index
      %c7 = arith.constant 7 : index
      %56 = arith.index_cast %8 : i32 to index
      %c0_27 = arith.constant 0 : index
      %57 = vector.load %arg2[%c0_26, %c7, %56, %c0_27] : memref<1x64x16x16xf32, #tpu.memory_space<vmem>>, vector<1x1x8x16xf32>
      %58 = vector.shape_cast %57 : vector<1x1x8x16xf32> to vector<8x16xf32>
      %59 = arith.maximumf %55, %58 : vector<8x16xf32>
      %c0_28 = arith.constant 0 : index
      %c8 = arith.constant 8 : index
      %60 = arith.index_cast %8 : i32 to index
      %c0_29 = arith.constant 0 : index
      %61 = vector.load %arg2[%c0_28, %c8, %60, %c0_29] : memref<1x64x16x16xf32, #tpu.memory_space<vmem>>, vector<1x1x8x16xf32>
      %62 = vector.shape_cast %61 : vector<1x1x8x16xf32> to vector<8x16xf32>
      %63 = arith.maximumf %59, %62 : vector<8x16xf32>
      %c0_30 = arith.constant 0 : index
      %c9 = arith.constant 9 : index
      %64 = arith.index_cast %8 : i32 to index
      %c0_31 = arith.constant 0 : index
      %65 = vector.load %arg2[%c0_30, %c9, %64, %c0_31] : memref<1x64x16x16xf32, #tpu.memory_space<vmem>>, vector<1x1x8x16xf32>
      %66 = vector.shape_cast %65 : vector<1x1x8x16xf32> to vector<8x16xf32>
      %67 = arith.maximumf %63, %66 : vector<8x16xf32>
      %c0_32 = arith.constant 0 : index
      %c10 = arith.constant 10 : index
      %68 = arith.index_cast %8 : i32 to index
      %c0_33 = arith.constant 0 : index
      %69 = vector.load %arg2[%c0_32, %c10, %68, %c0_33] : memref<1x64x16x16xf32, #tpu.memory_space<vmem>>, vector<1x1x8x16xf32>
      %70 = vector.shape_cast %69 : vector<1x1x8x16xf32> to vector<8x16xf32>
      %71 = arith.maximumf %67, %70 : vector<8x16xf32>
      %c0_34 = arith.constant 0 : index
      %c11 = arith.constant 11 : index
      %72 = arith.index_cast %8 : i32 to index
      %c0_35 = arith.constant 0 : index
      %73 = vector.load %arg2[%c0_34, %c11, %72, %c0_35] : memref<1x64x16x16xf32, #tpu.memory_space<vmem>>, vector<1x1x8x16xf32>
      %74 = vector.shape_cast %73 : vector<1x1x8x16xf32> to vector<8x16xf32>
      %75 = arith.maximumf %71, %74 : vector<8x16xf32>
      %c0_36 = arith.constant 0 : index
      %c12 = arith.constant 12 : index
      %76 = arith.index_cast %8 : i32 to index
      %c0_37 = arith.constant 0 : index
      %77 = vector.load %arg2[%c0_36, %c12, %76, %c0_37] : memref<1x64x16x16xf32, #tpu.memory_space<vmem>>, vector<1x1x8x16xf32>
      %78 = vector.shape_cast %77 : vector<1x1x8x16xf32> to vector<8x16xf32>
      %79 = arith.maximumf %75, %78 : vector<8x16xf32>
      %c0_38 = arith.constant 0 : index
      %c13 = arith.constant 13 : index
      %80 = arith.index_cast %8 : i32 to index
      %c0_39 = arith.constant 0 : index
      %81 = vector.load %arg2[%c0_38, %c13, %80, %c0_39] : memref<1x64x16x16xf32, #tpu.memory_space<vmem>>, vector<1x1x8x16xf32>
      %82 = vector.shape_cast %81 : vector<1x1x8x16xf32> to vector<8x16xf32>
      %83 = arith.maximumf %79, %82 : vector<8x16xf32>
      %c0_40 = arith.constant 0 : index
      %c14 = arith.constant 14 : index
      %84 = arith.index_cast %8 : i32 to index
      %c0_41 = arith.constant 0 : index
      %85 = vector.load %arg2[%c0_40, %c14, %84, %c0_41] : memref<1x64x16x16xf32, #tpu.memory_space<vmem>>, vector<1x1x8x16xf32>
      %86 = vector.shape_cast %85 : vector<1x1x8x16xf32> to vector<8x16xf32>
      %87 = arith.maximumf %83, %86 : vector<8x16xf32>
      %c0_42 = arith.constant 0 : index
      %c15 = arith.constant 15 : index
      %88 = arith.index_cast %8 : i32 to index
      %c0_43 = arith.constant 0 : index
      %89 = vector.load %arg2[%c0_42, %c15, %88, %c0_43] : memref<1x64x16x16xf32, #tpu.memory_space<vmem>>, vector<1x1x8x16xf32>
      %90 = vector.shape_cast %89 : vector<1x1x8x16xf32> to vector<8x16xf32>
      %91 = arith.maximumf %87, %90 : vector<8x16xf32>
      %c0_44 = arith.constant 0 : index
      %c16 = arith.constant 16 : index
      %92 = arith.index_cast %8 : i32 to index
      %c0_45 = arith.constant 0 : index
      %93 = vector.load %arg2[%c0_44, %c16, %92, %c0_45] : memref<1x64x16x16xf32, #tpu.memory_space<vmem>>, vector<1x1x8x16xf32>
      %94 = vector.shape_cast %93 : vector<1x1x8x16xf32> to vector<8x16xf32>
      %95 = arith.maximumf %91, %94 : vector<8x16xf32>
      %c0_46 = arith.constant 0 : index
      %c17 = arith.constant 17 : index
      %96 = arith.index_cast %8 : i32 to index
      %c0_47 = arith.constant 0 : index
      %97 = vector.load %arg2[%c0_46, %c17, %96, %c0_47] : memref<1x64x16x16xf32, #tpu.memory_space<vmem>>, vector<1x1x8x16xf32>
      %98 = vector.shape_cast %97 : vector<1x1x8x16xf32> to vector<8x16xf32>
      %99 = arith.maximumf %95, %98 : vector<8x16xf32>
      %c0_48 = arith.constant 0 : index
      %c18 = arith.constant 18 : index
      %100 = arith.index_cast %8 : i32 to index
      %c0_49 = arith.constant 0 : index
      %101 = vector.load %arg2[%c0_48, %c18, %100, %c0_49] : memref<1x64x16x16xf32, #tpu.memory_space<vmem>>, vector<1x1x8x16xf32>
      %102 = vector.shape_cast %101 : vector<1x1x8x16xf32> to vector<8x16xf32>
      %103 = arith.maximumf %99, %102 : vector<8x16xf32>
      %c0_50 = arith.constant 0 : index
      %c19 = arith.constant 19 : index
      %104 = arith.index_cast %8 : i32 to index
      %c0_51 = arith.constant 0 : index
      %105 = vector.load %arg2[%c0_50, %c19, %104, %c0_51] : memref<1x64x16x16xf32, #tpu.memory_space<vmem>>, vector<1x1x8x16xf32>
      %106 = vector.shape_cast %105 : vector<1x1x8x16xf32> to vector<8x16xf32>
      %107 = arith.maximumf %103, %106 : vector<8x16xf32>
      %c0_52 = arith.constant 0 : index
      %c20 = arith.constant 20 : index
      %108 = arith.index_cast %8 : i32 to index
      %c0_53 = arith.constant 0 : index
      %109 = vector.load %arg2[%c0_52, %c20, %108, %c0_53] : memref<1x64x16x16xf32, #tpu.memory_space<vmem>>, vector<1x1x8x16xf32>
      %110 = vector.shape_cast %109 : vector<1x1x8x16xf32> to vector<8x16xf32>
      %111 = arith.maximumf %107, %110 : vector<8x16xf32>
      %c0_54 = arith.constant 0 : index
      %c21 = arith.constant 21 : index
      %112 = arith.index_cast %8 : i32 to index
      %c0_55 = arith.constant 0 : index
      %113 = vector.load %arg2[%c0_54, %c21, %112, %c0_55] : memref<1x64x16x16xf32, #tpu.memory_space<vmem>>, vector<1x1x8x16xf32>
      %114 = vector.shape_cast %113 : vector<1x1x8x16xf32> to vector<8x16xf32>
      %115 = arith.maximumf %111, %114 : vector<8x16xf32>
      %c0_56 = arith.constant 0 : index
      %c22 = arith.constant 22 : index
      %116 = arith.index_cast %8 : i32 to index
      %c0_57 = arith.constant 0 : index
      %117 = vector.load %arg2[%c0_56, %c22, %116, %c0_57] : memref<1x64x16x16xf32, #tpu.memory_space<vmem>>, vector<1x1x8x16xf32>
      %118 = vector.shape_cast %117 : vector<1x1x8x16xf32> to vector<8x16xf32>
      %119 = arith.maximumf %115, %118 : vector<8x16xf32>
      %c0_58 = arith.constant 0 : index
      %c23 = arith.constant 23 : index
      %120 = arith.index_cast %8 : i32 to index
      %c0_59 = arith.constant 0 : index
      %121 = vector.load %arg2[%c0_58, %c23, %120, %c0_59] : memref<1x64x16x16xf32, #tpu.memory_space<vmem>>, vector<1x1x8x16xf32>
      %122 = vector.shape_cast %121 : vector<1x1x8x16xf32> to vector<8x16xf32>
      %123 = arith.maximumf %119, %122 : vector<8x16xf32>
      %c0_60 = arith.constant 0 : index
      %c24 = arith.constant 24 : index
      %124 = arith.index_cast %8 : i32 to index
      %c0_61 = arith.constant 0 : index
      %125 = vector.load %arg2[%c0_60, %c24, %124, %c0_61] : memref<1x64x16x16xf32, #tpu.memory_space<vmem>>, vector<1x1x8x16xf32>
      %126 = vector.shape_cast %125 : vector<1x1x8x16xf32> to vector<8x16xf32>
      %127 = arith.maximumf %123, %126 : vector<8x16xf32>
      %c0_62 = arith.constant 0 : index
      %c25 = arith.constant 25 : index
      %128 = arith.index_cast %8 : i32 to index
      %c0_63 = arith.constant 0 : index
      %129 = vector.load %arg2[%c0_62, %c25, %128, %c0_63] : memref<1x64x16x16xf32, #tpu.memory_space<vmem>>, vector<1x1x8x16xf32>
      %130 = vector.shape_cast %129 : vector<1x1x8x16xf32> to vector<8x16xf32>
      %131 = arith.maximumf %127, %130 : vector<8x16xf32>
      %c0_64 = arith.constant 0 : index
      %c26 = arith.constant 26 : index
      %132 = arith.index_cast %8 : i32 to index
      %c0_65 = arith.constant 0 : index
      %133 = vector.load %arg2[%c0_64, %c26, %132, %c0_65] : memref<1x64x16x16xf32, #tpu.memory_space<vmem>>, vector<1x1x8x16xf32>
      %134 = vector.shape_cast %133 : vector<1x1x8x16xf32> to vector<8x16xf32>
      %135 = arith.maximumf %131, %134 : vector<8x16xf32>
      %c0_66 = arith.constant 0 : index
      %c27 = arith.constant 27 : index
      %136 = arith.index_cast %8 : i32 to index
      %c0_67 = arith.constant 0 : index
      %137 = vector.load %arg2[%c0_66, %c27, %136, %c0_67] : memref<1x64x16x16xf32, #tpu.memory_space<vmem>>, vector<1x1x8x16xf32>
      %138 = vector.shape_cast %137 : vector<1x1x8x16xf32> to vector<8x16xf32>
      %139 = arith.maximumf %135, %138 : vector<8x16xf32>
      %c0_68 = arith.constant 0 : index
      %c28 = arith.constant 28 : index
      %140 = arith.index_cast %8 : i32 to index
      %c0_69 = arith.constant 0 : index
      %141 = vector.load %arg2[%c0_68, %c28, %140, %c0_69] : memref<1x64x16x16xf32, #tpu.memory_space<vmem>>, vector<1x1x8x16xf32>
      %142 = vector.shape_cast %141 : vector<1x1x8x16xf32> to vector<8x16xf32>
      %143 = arith.maximumf %139, %142 : vector<8x16xf32>
      %c0_70 = arith.constant 0 : index
      %c29 = arith.constant 29 : index
      %144 = arith.index_cast %8 : i32 to index
      %c0_71 = arith.constant 0 : index
      %145 = vector.load %arg2[%c0_70, %c29, %144, %c0_71] : memref<1x64x16x16xf32, #tpu.memory_space<vmem>>, vector<1x1x8x16xf32>
      %146 = vector.shape_cast %145 : vector<1x1x8x16xf32> to vector<8x16xf32>
      %147 = arith.maximumf %143, %146 : vector<8x16xf32>
      %c0_72 = arith.constant 0 : index
      %c30 = arith.constant 30 : index
      %148 = arith.index_cast %8 : i32 to index
      %c0_73 = arith.constant 0 : index
      %149 = vector.load %arg2[%c0_72, %c30, %148, %c0_73] : memref<1x64x16x16xf32, #tpu.memory_space<vmem>>, vector<1x1x8x16xf32>
      %150 = vector.shape_cast %149 : vector<1x1x8x16xf32> to vector<8x16xf32>
      %151 = arith.maximumf %147, %150 : vector<8x16xf32>
      %c0_74 = arith.constant 0 : index
      %c31 = arith.constant 31 : index
      %152 = arith.index_cast %8 : i32 to index
      %c0_75 = arith.constant 0 : index
      %153 = vector.load %arg2[%c0_74, %c31, %152, %c0_75] : memref<1x64x16x16xf32, #tpu.memory_space<vmem>>, vector<1x1x8x16xf32>
      %154 = vector.shape_cast %153 : vector<1x1x8x16xf32> to vector<8x16xf32>
      %155 = arith.maximumf %151, %154 : vector<8x16xf32>
      %c0_76 = arith.constant 0 : index
      %c32 = arith.constant 32 : index
      %156 = arith.index_cast %8 : i32 to index
      %c0_77 = arith.constant 0 : index
      %157 = vector.load %arg2[%c0_76, %c32, %156, %c0_77] : memref<1x64x16x16xf32, #tpu.memory_space<vmem>>, vector<1x1x8x16xf32>
      %158 = vector.shape_cast %157 : vector<1x1x8x16xf32> to vector<8x16xf32>
      %159 = arith.maximumf %155, %158 : vector<8x16xf32>
      %c0_78 = arith.constant 0 : index
      %c33 = arith.constant 33 : index
      %160 = arith.index_cast %8 : i32 to index
      %c0_79 = arith.constant 0 : index
      %161 = vector.load %arg2[%c0_78, %c33, %160, %c0_79] : memref<1x64x16x16xf32, #tpu.memory_space<vmem>>, vector<1x1x8x16xf32>
      %162 = vector.shape_cast %161 : vector<1x1x8x16xf32> to vector<8x16xf32>
      %163 = arith.maximumf %159, %162 : vector<8x16xf32>
      %c0_80 = arith.constant 0 : index
      %c34 = arith.constant 34 : index
      %164 = arith.index_cast %8 : i32 to index
      %c0_81 = arith.constant 0 : index
      %165 = vector.load %arg2[%c0_80, %c34, %164, %c0_81] : memref<1x64x16x16xf32, #tpu.memory_space<vmem>>, vector<1x1x8x16xf32>
      %166 = vector.shape_cast %165 : vector<1x1x8x16xf32> to vector<8x16xf32>
      %167 = arith.maximumf %163, %166 : vector<8x16xf32>
      %c0_82 = arith.constant 0 : index
      %c35 = arith.constant 35 : index
      %168 = arith.index_cast %8 : i32 to index
      %c0_83 = arith.constant 0 : index
      %169 = vector.load %arg2[%c0_82, %c35, %168, %c0_83] : memref<1x64x16x16xf32, #tpu.memory_space<vmem>>, vector<1x1x8x16xf32>
      %170 = vector.shape_cast %169 : vector<1x1x8x16xf32> to vector<8x16xf32>
      %171 = arith.maximumf %167, %170 : vector<8x16xf32>
      %c0_84 = arith.constant 0 : index
      %c36 = arith.constant 36 : index
      %172 = arith.index_cast %8 : i32 to index
      %c0_85 = arith.constant 0 : index
      %173 = vector.load %arg2[%c0_84, %c36, %172, %c0_85] : memref<1x64x16x16xf32, #tpu.memory_space<vmem>>, vector<1x1x8x16xf32>
      %174 = vector.shape_cast %173 : vector<1x1x8x16xf32> to vector<8x16xf32>
      %175 = arith.maximumf %171, %174 : vector<8x16xf32>
      %c0_86 = arith.constant 0 : index
      %c37 = arith.constant 37 : index
      %176 = arith.index_cast %8 : i32 to index
      %c0_87 = arith.constant 0 : index
      %177 = vector.load %arg2[%c0_86, %c37, %176, %c0_87] : memref<1x64x16x16xf32, #tpu.memory_space<vmem>>, vector<1x1x8x16xf32>
      %178 = vector.shape_cast %177 : vector<1x1x8x16xf32> to vector<8x16xf32>
      %179 = arith.maximumf %175, %178 : vector<8x16xf32>
      %c0_88 = arith.constant 0 : index
      %c38 = arith.constant 38 : index
      %180 = arith.index_cast %8 : i32 to index
      %c0_89 = arith.constant 0 : index
      %181 = vector.load %arg2[%c0_88, %c38, %180, %c0_89] : memref<1x64x16x16xf32, #tpu.memory_space<vmem>>, vector<1x1x8x16xf32>
      %182 = vector.shape_cast %181 : vector<1x1x8x16xf32> to vector<8x16xf32>
      %183 = arith.maximumf %179, %182 : vector<8x16xf32>
      %c0_90 = arith.constant 0 : index
      %c39 = arith.constant 39 : index
      %184 = arith.index_cast %8 : i32 to index
      %c0_91 = arith.constant 0 : index
      %185 = vector.load %arg2[%c0_90, %c39, %184, %c0_91] : memref<1x64x16x16xf32, #tpu.memory_space<vmem>>, vector<1x1x8x16xf32>
      %186 = vector.shape_cast %185 : vector<1x1x8x16xf32> to vector<8x16xf32>
      %187 = arith.maximumf %183, %186 : vector<8x16xf32>
      %c0_92 = arith.constant 0 : index
      %c40 = arith.constant 40 : index
      %188 = arith.index_cast %8 : i32 to index
      %c0_93 = arith.constant 0 : index
      %189 = vector.load %arg2[%c0_92, %c40, %188, %c0_93] : memref<1x64x16x16xf32, #tpu.memory_space<vmem>>, vector<1x1x8x16xf32>
      %190 = vector.shape_cast %189 : vector<1x1x8x16xf32> to vector<8x16xf32>
      %191 = arith.maximumf %187, %190 : vector<8x16xf32>
      %c0_94 = arith.constant 0 : index
      %c41 = arith.constant 41 : index
      %192 = arith.index_cast %8 : i32 to index
      %c0_95 = arith.constant 0 : index
      %193 = vector.load %arg2[%c0_94, %c41, %192, %c0_95] : memref<1x64x16x16xf32, #tpu.memory_space<vmem>>, vector<1x1x8x16xf32>
      %194 = vector.shape_cast %193 : vector<1x1x8x16xf32> to vector<8x16xf32>
      %195 = arith.maximumf %191, %194 : vector<8x16xf32>
      %c0_96 = arith.constant 0 : index
      %c42 = arith.constant 42 : index
      %196 = arith.index_cast %8 : i32 to index
      %c0_97 = arith.constant 0 : index
      %197 = vector.load %arg2[%c0_96, %c42, %196, %c0_97] : memref<1x64x16x16xf32, #tpu.memory_space<vmem>>, vector<1x1x8x16xf32>
      %198 = vector.shape_cast %197 : vector<1x1x8x16xf32> to vector<8x16xf32>
      %199 = arith.maximumf %195, %198 : vector<8x16xf32>
      %c0_98 = arith.constant 0 : index
      %c43 = arith.constant 43 : index
      %200 = arith.index_cast %8 : i32 to index
      %c0_99 = arith.constant 0 : index
      %201 = vector.load %arg2[%c0_98, %c43, %200, %c0_99] : memref<1x64x16x16xf32, #tpu.memory_space<vmem>>, vector<1x1x8x16xf32>
      %202 = vector.shape_cast %201 : vector<1x1x8x16xf32> to vector<8x16xf32>
      %203 = arith.maximumf %199, %202 : vector<8x16xf32>
      %c0_100 = arith.constant 0 : index
      %c44 = arith.constant 44 : index
      %204 = arith.index_cast %8 : i32 to index
      %c0_101 = arith.constant 0 : index
      %205 = vector.load %arg2[%c0_100, %c44, %204, %c0_101] : memref<1x64x16x16xf32, #tpu.memory_space<vmem>>, vector<1x1x8x16xf32>
      %206 = vector.shape_cast %205 : vector<1x1x8x16xf32> to vector<8x16xf32>
      %207 = arith.maximumf %203, %206 : vector<8x16xf32>
      %c0_102 = arith.constant 0 : index
      %c45 = arith.constant 45 : index
      %208 = arith.index_cast %8 : i32 to index
      %c0_103 = arith.constant 0 : index
      %209 = vector.load %arg2[%c0_102, %c45, %208, %c0_103] : memref<1x64x16x16xf32, #tpu.memory_space<vmem>>, vector<1x1x8x16xf32>
      %210 = vector.shape_cast %209 : vector<1x1x8x16xf32> to vector<8x16xf32>
      %211 = arith.maximumf %207, %210 : vector<8x16xf32>
      %c0_104 = arith.constant 0 : index
      %c46 = arith.constant 46 : index
      %212 = arith.index_cast %8 : i32 to index
      %c0_105 = arith.constant 0 : index
      %213 = vector.load %arg2[%c0_104, %c46, %212, %c0_105] : memref<1x64x16x16xf32, #tpu.memory_space<vmem>>, vector<1x1x8x16xf32>
      %214 = vector.shape_cast %213 : vector<1x1x8x16xf32> to vector<8x16xf32>
      %215 = arith.maximumf %211, %214 : vector<8x16xf32>
      %c0_106 = arith.constant 0 : index
      %c47 = arith.constant 47 : index
      %216 = arith.index_cast %8 : i32 to index
      %c0_107 = arith.constant 0 : index
      %217 = vector.load %arg2[%c0_106, %c47, %216, %c0_107] : memref<1x64x16x16xf32, #tpu.memory_space<vmem>>, vector<1x1x8x16xf32>
      %218 = vector.shape_cast %217 : vector<1x1x8x16xf32> to vector<8x16xf32>
      %219 = arith.maximumf %215, %218 : vector<8x16xf32>
      %c0_108 = arith.constant 0 : index
      %c48 = arith.constant 48 : index
      %220 = arith.index_cast %8 : i32 to index
      %c0_109 = arith.constant 0 : index
      %221 = vector.load %arg2[%c0_108, %c48, %220, %c0_109] : memref<1x64x16x16xf32, #tpu.memory_space<vmem>>, vector<1x1x8x16xf32>
      %222 = vector.shape_cast %221 : vector<1x1x8x16xf32> to vector<8x16xf32>
      %223 = arith.maximumf %219, %222 : vector<8x16xf32>
      %c0_110 = arith.constant 0 : index
      %c49 = arith.constant 49 : index
      %224 = arith.index_cast %8 : i32 to index
      %c0_111 = arith.constant 0 : index
      %225 = vector.load %arg2[%c0_110, %c49, %224, %c0_111] : memref<1x64x16x16xf32, #tpu.memory_space<vmem>>, vector<1x1x8x16xf32>
      %226 = vector.shape_cast %225 : vector<1x1x8x16xf32> to vector<8x16xf32>
      %227 = arith.maximumf %223, %226 : vector<8x16xf32>
      %c0_112 = arith.constant 0 : index
      %c50 = arith.constant 50 : index
      %228 = arith.index_cast %8 : i32 to index
      %c0_113 = arith.constant 0 : index
      %229 = vector.load %arg2[%c0_112, %c50, %228, %c0_113] : memref<1x64x16x16xf32, #tpu.memory_space<vmem>>, vector<1x1x8x16xf32>
      %230 = vector.shape_cast %229 : vector<1x1x8x16xf32> to vector<8x16xf32>
      %231 = arith.maximumf %227, %230 : vector<8x16xf32>
      %c0_114 = arith.constant 0 : index
      %c51 = arith.constant 51 : index
      %232 = arith.index_cast %8 : i32 to index
      %c0_115 = arith.constant 0 : index
      %233 = vector.load %arg2[%c0_114, %c51, %232, %c0_115] : memref<1x64x16x16xf32, #tpu.memory_space<vmem>>, vector<1x1x8x16xf32>
      %234 = vector.shape_cast %233 : vector<1x1x8x16xf32> to vector<8x16xf32>
      %235 = arith.maximumf %231, %234 : vector<8x16xf32>
      %c0_116 = arith.constant 0 : index
      %c52 = arith.constant 52 : index
      %236 = arith.index_cast %8 : i32 to index
      %c0_117 = arith.constant 0 : index
      %237 = vector.load %arg2[%c0_116, %c52, %236, %c0_117] : memref<1x64x16x16xf32, #tpu.memory_space<vmem>>, vector<1x1x8x16xf32>
      %238 = vector.shape_cast %237 : vector<1x1x8x16xf32> to vector<8x16xf32>
      %239 = arith.maximumf %235, %238 : vector<8x16xf32>
      %c0_118 = arith.constant 0 : index
      %c53 = arith.constant 53 : index
      %240 = arith.index_cast %8 : i32 to index
      %c0_119 = arith.constant 0 : index
      %241 = vector.load %arg2[%c0_118, %c53, %240, %c0_119] : memref<1x64x16x16xf32, #tpu.memory_space<vmem>>, vector<1x1x8x16xf32>
      %242 = vector.shape_cast %241 : vector<1x1x8x16xf32> to vector<8x16xf32>
      %243 = arith.maximumf %239, %242 : vector<8x16xf32>
      %c0_120 = arith.constant 0 : index
      %c54 = arith.constant 54 : index
      %244 = arith.index_cast %8 : i32 to index
      %c0_121 = arith.constant 0 : index
      %245 = vector.load %arg2[%c0_120, %c54, %244, %c0_121] : memref<1x64x16x16xf32, #tpu.memory_space<vmem>>, vector<1x1x8x16xf32>
      %246 = vector.shape_cast %245 : vector<1x1x8x16xf32> to vector<8x16xf32>
      %247 = arith.maximumf %243, %246 : vector<8x16xf32>
      %c0_122 = arith.constant 0 : index
      %c55 = arith.constant 55 : index
      %248 = arith.index_cast %8 : i32 to index
      %c0_123 = arith.constant 0 : index
      %249 = vector.load %arg2[%c0_122, %c55, %248, %c0_123] : memref<1x64x16x16xf32, #tpu.memory_space<vmem>>, vector<1x1x8x16xf32>
      %250 = vector.shape_cast %249 : vector<1x1x8x16xf32> to vector<8x16xf32>
      %251 = arith.maximumf %247, %250 : vector<8x16xf32>
      %c0_124 = arith.constant 0 : index
      %c56 = arith.constant 56 : index
      %252 = arith.index_cast %8 : i32 to index
      %c0_125 = arith.constant 0 : index
      %253 = vector.load %arg2[%c0_124, %c56, %252, %c0_125] : memref<1x64x16x16xf32, #tpu.memory_space<vmem>>, vector<1x1x8x16xf32>
      %254 = vector.shape_cast %253 : vector<1x1x8x16xf32> to vector<8x16xf32>
      %255 = arith.maximumf %251, %254 : vector<8x16xf32>
      %c0_126 = arith.constant 0 : index
      %c57 = arith.constant 57 : index
      %256 = arith.index_cast %8 : i32 to index
      %c0_127 = arith.constant 0 : index
      %257 = vector.load %arg2[%c0_126, %c57, %256, %c0_127] : memref<1x64x16x16xf32, #tpu.memory_space<vmem>>, vector<1x1x8x16xf32>
      %258 = vector.shape_cast %257 : vector<1x1x8x16xf32> to vector<8x16xf32>
      %259 = arith.maximumf %255, %258 : vector<8x16xf32>
      %c0_128 = arith.constant 0 : index
      %c58 = arith.constant 58 : index
      %260 = arith.index_cast %8 : i32 to index
      %c0_129 = arith.constant 0 : index
      %261 = vector.load %arg2[%c0_128, %c58, %260, %c0_129] : memref<1x64x16x16xf32, #tpu.memory_space<vmem>>, vector<1x1x8x16xf32>
      %262 = vector.shape_cast %261 : vector<1x1x8x16xf32> to vector<8x16xf32>
      %263 = arith.maximumf %259, %262 : vector<8x16xf32>
      %c0_130 = arith.constant 0 : index
      %c59 = arith.constant 59 : index
      %264 = arith.index_cast %8 : i32 to index
      %c0_131 = arith.constant 0 : index
      %265 = vector.load %arg2[%c0_130, %c59, %264, %c0_131] : memref<1x64x16x16xf32, #tpu.memory_space<vmem>>, vector<1x1x8x16xf32>
      %266 = vector.shape_cast %265 : vector<1x1x8x16xf32> to vector<8x16xf32>
      %267 = arith.maximumf %263, %266 : vector<8x16xf32>
      %c0_132 = arith.constant 0 : index
      %c60 = arith.constant 60 : index
      %268 = arith.index_cast %8 : i32 to index
      %c0_133 = arith.constant 0 : index
      %269 = vector.load %arg2[%c0_132, %c60, %268, %c0_133] : memref<1x64x16x16xf32, #tpu.memory_space<vmem>>, vector<1x1x8x16xf32>
      %270 = vector.shape_cast %269 : vector<1x1x8x16xf32> to vector<8x16xf32>
      %271 = arith.maximumf %267, %270 : vector<8x16xf32>
      %c0_134 = arith.constant 0 : index
      %c61 = arith.constant 61 : index
      %272 = arith.index_cast %8 : i32 to index
      %c0_135 = arith.constant 0 : index
      %273 = vector.load %arg2[%c0_134, %c61, %272, %c0_135] : memref<1x64x16x16xf32, #tpu.memory_space<vmem>>, vector<1x1x8x16xf32>
      %274 = vector.shape_cast %273 : vector<1x1x8x16xf32> to vector<8x16xf32>
      %275 = arith.maximumf %271, %274 : vector<8x16xf32>
      %c0_136 = arith.constant 0 : index
      %c62 = arith.constant 62 : index
      %276 = arith.index_cast %8 : i32 to index
      %c0_137 = arith.constant 0 : index
      %277 = vector.load %arg2[%c0_136, %c62, %276, %c0_137] : memref<1x64x16x16xf32, #tpu.memory_space<vmem>>, vector<1x1x8x16xf32>
      %278 = vector.shape_cast %277 : vector<1x1x8x16xf32> to vector<8x16xf32>
      %279 = arith.maximumf %275, %278 : vector<8x16xf32>
      %c0_138 = arith.constant 0 : index
      %c63 = arith.constant 63 : index
      %280 = arith.index_cast %8 : i32 to index
      %c0_139 = arith.constant 0 : index
      %281 = vector.load %arg2[%c0_138, %c63, %280, %c0_139] : memref<1x64x16x16xf32, #tpu.memory_space<vmem>>, vector<1x1x8x16xf32>
      %282 = vector.shape_cast %281 : vector<1x1x8x16xf32> to vector<8x16xf32>
      %283 = arith.maximumf %279, %282 : vector<8x16xf32>
      %cst_140 = arith.constant 0.000000e+00 : f32
      %284 = vector.broadcast %cst_140 : f32 to vector<8x16xf32>
      %c0_141 = arith.constant 0 : index
      %c0_142 = arith.constant 0 : index
      %285 = arith.index_cast %8 : i32 to index
      %c0_143 = arith.constant 0 : index
      %286 = vector.load %arg2[%c0_141, %c0_142, %285, %c0_143] : memref<1x64x16x16xf32, #tpu.memory_space<vmem>>, vector<1x1x8x16xf32>
      %287 = vector.shape_cast %286 : vector<1x1x8x16xf32> to vector<8x16xf32>
      %288 = arith.subf %287, %283 : vector<8x16xf32>
      %289 = math.exp %288 : vector<8x16xf32>
      %290 = arith.addf %284, %289 : vector<8x16xf32>
      %cst_144 = arith.constant 0.000000e+00 : f32
      %291 = vector.broadcast %cst_144 : f32 to vector<8x16xf32>
      %292 = arith.subf %291, %28 : vector<8x16xf32>
      %293 = math.absf %292 : vector<8x16xf32>
      %cst_145 = arith.constant 0.000000e+00 : f32
      %294 = vector.broadcast %cst_145 : f32 to vector<8x16xf32>
      %295 = arith.subf %294, %293 : vector<8x16xf32>
      %296 = vector.broadcast %cst_1 : f32 to vector<8x16xf32>
      %297 = arith.mulf %295, %296 : vector<8x16xf32>
      %298 = math.exp %297 : vector<8x16xf32>
      %299 = arith.addf %284, %298 : vector<8x16xf32>
      %300 = arith.mulf %298, %288 : vector<8x16xf32>
      %301 = arith.addf %284, %300 : vector<8x16xf32>
      %c0_146 = arith.constant 0 : index
      %c1_147 = arith.constant 1 : index
      %302 = arith.index_cast %8 : i32 to index
      %c0_148 = arith.constant 0 : index
      %303 = vector.load %arg2[%c0_146, %c1_147, %302, %c0_148] : memref<1x64x16x16xf32, #tpu.memory_space<vmem>>, vector<1x1x8x16xf32>
      %304 = vector.shape_cast %303 : vector<1x1x8x16xf32> to vector<8x16xf32>
      %305 = arith.subf %304, %283 : vector<8x16xf32>
      %306 = math.exp %305 : vector<8x16xf32>
      %307 = arith.addf %290, %306 : vector<8x16xf32>
      %cst_149 = arith.constant 1.000000e+00 : f32
      %308 = vector.broadcast %cst_149 : f32 to vector<8x16xf32>
      %309 = arith.subf %308, %28 : vector<8x16xf32>
      %310 = math.absf %309 : vector<8x16xf32>
      %cst_150 = arith.constant 0.000000e+00 : f32
      %311 = vector.broadcast %cst_150 : f32 to vector<8x16xf32>
      %312 = arith.subf %311, %310 : vector<8x16xf32>
      %313 = vector.broadcast %cst_1 : f32 to vector<8x16xf32>
      %314 = arith.mulf %312, %313 : vector<8x16xf32>
      %315 = math.exp %314 : vector<8x16xf32>
      %316 = arith.addf %299, %315 : vector<8x16xf32>
      %317 = arith.mulf %315, %305 : vector<8x16xf32>
      %318 = arith.addf %301, %317 : vector<8x16xf32>
      %c0_151 = arith.constant 0 : index
      %c2_152 = arith.constant 2 : index
      %319 = arith.index_cast %8 : i32 to index
      %c0_153 = arith.constant 0 : index
      %320 = vector.load %arg2[%c0_151, %c2_152, %319, %c0_153] : memref<1x64x16x16xf32, #tpu.memory_space<vmem>>, vector<1x1x8x16xf32>
      %321 = vector.shape_cast %320 : vector<1x1x8x16xf32> to vector<8x16xf32>
      %322 = arith.subf %321, %283 : vector<8x16xf32>
      %323 = math.exp %322 : vector<8x16xf32>
      %324 = arith.addf %307, %323 : vector<8x16xf32>
      %cst_154 = arith.constant 2.000000e+00 : f32
      %325 = vector.broadcast %cst_154 : f32 to vector<8x16xf32>
      %326 = arith.subf %325, %28 : vector<8x16xf32>
      %327 = math.absf %326 : vector<8x16xf32>
      %cst_155 = arith.constant 0.000000e+00 : f32
      %328 = vector.broadcast %cst_155 : f32 to vector<8x16xf32>
      %329 = arith.subf %328, %327 : vector<8x16xf32>
      %330 = vector.broadcast %cst_1 : f32 to vector<8x16xf32>
      %331 = arith.mulf %329, %330 : vector<8x16xf32>
      %332 = math.exp %331 : vector<8x16xf32>
      %333 = arith.addf %316, %332 : vector<8x16xf32>
      %334 = arith.mulf %332, %322 : vector<8x16xf32>
      %335 = arith.addf %318, %334 : vector<8x16xf32>
      %c0_156 = arith.constant 0 : index
      %c3_157 = arith.constant 3 : index
      %336 = arith.index_cast %8 : i32 to index
      %c0_158 = arith.constant 0 : index
      %337 = vector.load %arg2[%c0_156, %c3_157, %336, %c0_158] : memref<1x64x16x16xf32, #tpu.memory_space<vmem>>, vector<1x1x8x16xf32>
      %338 = vector.shape_cast %337 : vector<1x1x8x16xf32> to vector<8x16xf32>
      %339 = arith.subf %338, %283 : vector<8x16xf32>
      %340 = math.exp %339 : vector<8x16xf32>
      %341 = arith.addf %324, %340 : vector<8x16xf32>
      %cst_159 = arith.constant 3.000000e+00 : f32
      %342 = vector.broadcast %cst_159 : f32 to vector<8x16xf32>
      %343 = arith.subf %342, %28 : vector<8x16xf32>
      %344 = math.absf %343 : vector<8x16xf32>
      %cst_160 = arith.constant 0.000000e+00 : f32
      %345 = vector.broadcast %cst_160 : f32 to vector<8x16xf32>
      %346 = arith.subf %345, %344 : vector<8x16xf32>
      %347 = vector.broadcast %cst_1 : f32 to vector<8x16xf32>
      %348 = arith.mulf %346, %347 : vector<8x16xf32>
      %349 = math.exp %348 : vector<8x16xf32>
      %350 = arith.addf %333, %349 : vector<8x16xf32>
      %351 = arith.mulf %349, %339 : vector<8x16xf32>
      %352 = arith.addf %335, %351 : vector<8x16xf32>
      %c0_161 = arith.constant 0 : index
      %c4_162 = arith.constant 4 : index
      %353 = arith.index_cast %8 : i32 to index
      %c0_163 = arith.constant 0 : index
      %354 = vector.load %arg2[%c0_161, %c4_162, %353, %c0_163] : memref<1x64x16x16xf32, #tpu.memory_space<vmem>>, vector<1x1x8x16xf32>
      %355 = vector.shape_cast %354 : vector<1x1x8x16xf32> to vector<8x16xf32>
      %356 = arith.subf %355, %283 : vector<8x16xf32>
      %357 = math.exp %356 : vector<8x16xf32>
      %358 = arith.addf %341, %357 : vector<8x16xf32>
      %cst_164 = arith.constant 4.000000e+00 : f32
      %359 = vector.broadcast %cst_164 : f32 to vector<8x16xf32>
      %360 = arith.subf %359, %28 : vector<8x16xf32>
      %361 = math.absf %360 : vector<8x16xf32>
      %cst_165 = arith.constant 0.000000e+00 : f32
      %362 = vector.broadcast %cst_165 : f32 to vector<8x16xf32>
      %363 = arith.subf %362, %361 : vector<8x16xf32>
      %364 = vector.broadcast %cst_1 : f32 to vector<8x16xf32>
      %365 = arith.mulf %363, %364 : vector<8x16xf32>
      %366 = math.exp %365 : vector<8x16xf32>
      %367 = arith.addf %350, %366 : vector<8x16xf32>
      %368 = arith.mulf %366, %356 : vector<8x16xf32>
      %369 = arith.addf %352, %368 : vector<8x16xf32>
      %c0_166 = arith.constant 0 : index
      %c5_167 = arith.constant 5 : index
      %370 = arith.index_cast %8 : i32 to index
      %c0_168 = arith.constant 0 : index
      %371 = vector.load %arg2[%c0_166, %c5_167, %370, %c0_168] : memref<1x64x16x16xf32, #tpu.memory_space<vmem>>, vector<1x1x8x16xf32>
      %372 = vector.shape_cast %371 : vector<1x1x8x16xf32> to vector<8x16xf32>
      %373 = arith.subf %372, %283 : vector<8x16xf32>
      %374 = math.exp %373 : vector<8x16xf32>
      %375 = arith.addf %358, %374 : vector<8x16xf32>
      %cst_169 = arith.constant 5.000000e+00 : f32
      %376 = vector.broadcast %cst_169 : f32 to vector<8x16xf32>
      %377 = arith.subf %376, %28 : vector<8x16xf32>
      %378 = math.absf %377 : vector<8x16xf32>
      %cst_170 = arith.constant 0.000000e+00 : f32
      %379 = vector.broadcast %cst_170 : f32 to vector<8x16xf32>
      %380 = arith.subf %379, %378 : vector<8x16xf32>
      %381 = vector.broadcast %cst_1 : f32 to vector<8x16xf32>
      %382 = arith.mulf %380, %381 : vector<8x16xf32>
      %383 = math.exp %382 : vector<8x16xf32>
      %384 = arith.addf %367, %383 : vector<8x16xf32>
      %385 = arith.mulf %383, %373 : vector<8x16xf32>
      %386 = arith.addf %369, %385 : vector<8x16xf32>
      %c0_171 = arith.constant 0 : index
      %c6_172 = arith.constant 6 : index
      %387 = arith.index_cast %8 : i32 to index
      %c0_173 = arith.constant 0 : index
      %388 = vector.load %arg2[%c0_171, %c6_172, %387, %c0_173] : memref<1x64x16x16xf32, #tpu.memory_space<vmem>>, vector<1x1x8x16xf32>
      %389 = vector.shape_cast %388 : vector<1x1x8x16xf32> to vector<8x16xf32>
      %390 = arith.subf %389, %283 : vector<8x16xf32>
      %391 = math.exp %390 : vector<8x16xf32>
      %392 = arith.addf %375, %391 : vector<8x16xf32>
      %cst_174 = arith.constant 6.000000e+00 : f32
      %393 = vector.broadcast %cst_174 : f32 to vector<8x16xf32>
      %394 = arith.subf %393, %28 : vector<8x16xf32>
      %395 = math.absf %394 : vector<8x16xf32>
      %cst_175 = arith.constant 0.000000e+00 : f32
      %396 = vector.broadcast %cst_175 : f32 to vector<8x16xf32>
      %397 = arith.subf %396, %395 : vector<8x16xf32>
      %398 = vector.broadcast %cst_1 : f32 to vector<8x16xf32>
      %399 = arith.mulf %397, %398 : vector<8x16xf32>
      %400 = math.exp %399 : vector<8x16xf32>
      %401 = arith.addf %384, %400 : vector<8x16xf32>
      %402 = arith.mulf %400, %390 : vector<8x16xf32>
      %403 = arith.addf %386, %402 : vector<8x16xf32>
      %c0_176 = arith.constant 0 : index
      %c7_177 = arith.constant 7 : index
      %404 = arith.index_cast %8 : i32 to index
      %c0_178 = arith.constant 0 : index
      %405 = vector.load %arg2[%c0_176, %c7_177, %404, %c0_178] : memref<1x64x16x16xf32, #tpu.memory_space<vmem>>, vector<1x1x8x16xf32>
      %406 = vector.shape_cast %405 : vector<1x1x8x16xf32> to vector<8x16xf32>
      %407 = arith.subf %406, %283 : vector<8x16xf32>
      %408 = math.exp %407 : vector<8x16xf32>
      %409 = arith.addf %392, %408 : vector<8x16xf32>
      %cst_179 = arith.constant 7.000000e+00 : f32
      %410 = vector.broadcast %cst_179 : f32 to vector<8x16xf32>
      %411 = arith.subf %410, %28 : vector<8x16xf32>
      %412 = math.absf %411 : vector<8x16xf32>
      %cst_180 = arith.constant 0.000000e+00 : f32
      %413 = vector.broadcast %cst_180 : f32 to vector<8x16xf32>
      %414 = arith.subf %413, %412 : vector<8x16xf32>
      %415 = vector.broadcast %cst_1 : f32 to vector<8x16xf32>
      %416 = arith.mulf %414, %415 : vector<8x16xf32>
      %417 = math.exp %416 : vector<8x16xf32>
      %418 = arith.addf %401, %417 : vector<8x16xf32>
      %419 = arith.mulf %417, %407 : vector<8x16xf32>
      %420 = arith.addf %403, %419 : vector<8x16xf32>
      %c0_181 = arith.constant 0 : index
      %c8_182 = arith.constant 8 : index
      %421 = arith.index_cast %8 : i32 to index
      %c0_183 = arith.constant 0 : index
      %422 = vector.load %arg2[%c0_181, %c8_182, %421, %c0_183] : memref<1x64x16x16xf32, #tpu.memory_space<vmem>>, vector<1x1x8x16xf32>
      %423 = vector.shape_cast %422 : vector<1x1x8x16xf32> to vector<8x16xf32>
      %424 = arith.subf %423, %283 : vector<8x16xf32>
      %425 = math.exp %424 : vector<8x16xf32>
      %426 = arith.addf %409, %425 : vector<8x16xf32>
      %cst_184 = arith.constant 8.000000e+00 : f32
      %427 = vector.broadcast %cst_184 : f32 to vector<8x16xf32>
      %428 = arith.subf %427, %28 : vector<8x16xf32>
      %429 = math.absf %428 : vector<8x16xf32>
      %cst_185 = arith.constant 0.000000e+00 : f32
      %430 = vector.broadcast %cst_185 : f32 to vector<8x16xf32>
      %431 = arith.subf %430, %429 : vector<8x16xf32>
      %432 = vector.broadcast %cst_1 : f32 to vector<8x16xf32>
      %433 = arith.mulf %431, %432 : vector<8x16xf32>
      %434 = math.exp %433 : vector<8x16xf32>
      %435 = arith.addf %418, %434 : vector<8x16xf32>
      %436 = arith.mulf %434, %424 : vector<8x16xf32>
      %437 = arith.addf %420, %436 : vector<8x16xf32>
      %c0_186 = arith.constant 0 : index
      %c9_187 = arith.constant 9 : index
      %438 = arith.index_cast %8 : i32 to index
      %c0_188 = arith.constant 0 : index
      %439 = vector.load %arg2[%c0_186, %c9_187, %438, %c0_188] : memref<1x64x16x16xf32, #tpu.memory_space<vmem>>, vector<1x1x8x16xf32>
      %440 = vector.shape_cast %439 : vector<1x1x8x16xf32> to vector<8x16xf32>
      %441 = arith.subf %440, %283 : vector<8x16xf32>
      %442 = math.exp %441 : vector<8x16xf32>
      %443 = arith.addf %426, %442 : vector<8x16xf32>
      %cst_189 = arith.constant 9.000000e+00 : f32
      %444 = vector.broadcast %cst_189 : f32 to vector<8x16xf32>
      %445 = arith.subf %444, %28 : vector<8x16xf32>
      %446 = math.absf %445 : vector<8x16xf32>
      %cst_190 = arith.constant 0.000000e+00 : f32
      %447 = vector.broadcast %cst_190 : f32 to vector<8x16xf32>
      %448 = arith.subf %447, %446 : vector<8x16xf32>
      %449 = vector.broadcast %cst_1 : f32 to vector<8x16xf32>
      %450 = arith.mulf %448, %449 : vector<8x16xf32>
      %451 = math.exp %450 : vector<8x16xf32>
      %452 = arith.addf %435, %451 : vector<8x16xf32>
      %453 = arith.mulf %451, %441 : vector<8x16xf32>
      %454 = arith.addf %437, %453 : vector<8x16xf32>
      %c0_191 = arith.constant 0 : index
      %c10_192 = arith.constant 10 : index
      %455 = arith.index_cast %8 : i32 to index
      %c0_193 = arith.constant 0 : index
      %456 = vector.load %arg2[%c0_191, %c10_192, %455, %c0_193] : memref<1x64x16x16xf32, #tpu.memory_space<vmem>>, vector<1x1x8x16xf32>
      %457 = vector.shape_cast %456 : vector<1x1x8x16xf32> to vector<8x16xf32>
      %458 = arith.subf %457, %283 : vector<8x16xf32>
      %459 = math.exp %458 : vector<8x16xf32>
      %460 = arith.addf %443, %459 : vector<8x16xf32>
      %cst_194 = arith.constant 1.000000e+01 : f32
      %461 = vector.broadcast %cst_194 : f32 to vector<8x16xf32>
      %462 = arith.subf %461, %28 : vector<8x16xf32>
      %463 = math.absf %462 : vector<8x16xf32>
      %cst_195 = arith.constant 0.000000e+00 : f32
      %464 = vector.broadcast %cst_195 : f32 to vector<8x16xf32>
      %465 = arith.subf %464, %463 : vector<8x16xf32>
      %466 = vector.broadcast %cst_1 : f32 to vector<8x16xf32>
      %467 = arith.mulf %465, %466 : vector<8x16xf32>
      %468 = math.exp %467 : vector<8x16xf32>
      %469 = arith.addf %452, %468 : vector<8x16xf32>
      %470 = arith.mulf %468, %458 : vector<8x16xf32>
      %471 = arith.addf %454, %470 : vector<8x16xf32>
      %c0_196 = arith.constant 0 : index
      %c11_197 = arith.constant 11 : index
      %472 = arith.index_cast %8 : i32 to index
      %c0_198 = arith.constant 0 : index
      %473 = vector.load %arg2[%c0_196, %c11_197, %472, %c0_198] : memref<1x64x16x16xf32, #tpu.memory_space<vmem>>, vector<1x1x8x16xf32>
      %474 = vector.shape_cast %473 : vector<1x1x8x16xf32> to vector<8x16xf32>
      %475 = arith.subf %474, %283 : vector<8x16xf32>
      %476 = math.exp %475 : vector<8x16xf32>
      %477 = arith.addf %460, %476 : vector<8x16xf32>
      %cst_199 = arith.constant 1.100000e+01 : f32
      %478 = vector.broadcast %cst_199 : f32 to vector<8x16xf32>
      %479 = arith.subf %478, %28 : vector<8x16xf32>
      %480 = math.absf %479 : vector<8x16xf32>
      %cst_200 = arith.constant 0.000000e+00 : f32
      %481 = vector.broadcast %cst_200 : f32 to vector<8x16xf32>
      %482 = arith.subf %481, %480 : vector<8x16xf32>
      %483 = vector.broadcast %cst_1 : f32 to vector<8x16xf32>
      %484 = arith.mulf %482, %483 : vector<8x16xf32>
      %485 = math.exp %484 : vector<8x16xf32>
      %486 = arith.addf %469, %485 : vector<8x16xf32>
      %487 = arith.mulf %485, %475 : vector<8x16xf32>
      %488 = arith.addf %471, %487 : vector<8x16xf32>
      %c0_201 = arith.constant 0 : index
      %c12_202 = arith.constant 12 : index
      %489 = arith.index_cast %8 : i32 to index
      %c0_203 = arith.constant 0 : index
      %490 = vector.load %arg2[%c0_201, %c12_202, %489, %c0_203] : memref<1x64x16x16xf32, #tpu.memory_space<vmem>>, vector<1x1x8x16xf32>
      %491 = vector.shape_cast %490 : vector<1x1x8x16xf32> to vector<8x16xf32>
      %492 = arith.subf %491, %283 : vector<8x16xf32>
      %493 = math.exp %492 : vector<8x16xf32>
      %494 = arith.addf %477, %493 : vector<8x16xf32>
      %cst_204 = arith.constant 1.200000e+01 : f32
      %495 = vector.broadcast %cst_204 : f32 to vector<8x16xf32>
      %496 = arith.subf %495, %28 : vector<8x16xf32>
      %497 = math.absf %496 : vector<8x16xf32>
      %cst_205 = arith.constant 0.000000e+00 : f32
      %498 = vector.broadcast %cst_205 : f32 to vector<8x16xf32>
      %499 = arith.subf %498, %497 : vector<8x16xf32>
      %500 = vector.broadcast %cst_1 : f32 to vector<8x16xf32>
      %501 = arith.mulf %499, %500 : vector<8x16xf32>
      %502 = math.exp %501 : vector<8x16xf32>
      %503 = arith.addf %486, %502 : vector<8x16xf32>
      %504 = arith.mulf %502, %492 : vector<8x16xf32>
      %505 = arith.addf %488, %504 : vector<8x16xf32>
      %c0_206 = arith.constant 0 : index
      %c13_207 = arith.constant 13 : index
      %506 = arith.index_cast %8 : i32 to index
      %c0_208 = arith.constant 0 : index
      %507 = vector.load %arg2[%c0_206, %c13_207, %506, %c0_208] : memref<1x64x16x16xf32, #tpu.memory_space<vmem>>, vector<1x1x8x16xf32>
      %508 = vector.shape_cast %507 : vector<1x1x8x16xf32> to vector<8x16xf32>
      %509 = arith.subf %508, %283 : vector<8x16xf32>
      %510 = math.exp %509 : vector<8x16xf32>
      %511 = arith.addf %494, %510 : vector<8x16xf32>
      %cst_209 = arith.constant 1.300000e+01 : f32
      %512 = vector.broadcast %cst_209 : f32 to vector<8x16xf32>
      %513 = arith.subf %512, %28 : vector<8x16xf32>
      %514 = math.absf %513 : vector<8x16xf32>
      %cst_210 = arith.constant 0.000000e+00 : f32
      %515 = vector.broadcast %cst_210 : f32 to vector<8x16xf32>
      %516 = arith.subf %515, %514 : vector<8x16xf32>
      %517 = vector.broadcast %cst_1 : f32 to vector<8x16xf32>
      %518 = arith.mulf %516, %517 : vector<8x16xf32>
      %519 = math.exp %518 : vector<8x16xf32>
      %520 = arith.addf %503, %519 : vector<8x16xf32>
      %521 = arith.mulf %519, %509 : vector<8x16xf32>
      %522 = arith.addf %505, %521 : vector<8x16xf32>
      %c0_211 = arith.constant 0 : index
      %c14_212 = arith.constant 14 : index
      %523 = arith.index_cast %8 : i32 to index
      %c0_213 = arith.constant 0 : index
      %524 = vector.load %arg2[%c0_211, %c14_212, %523, %c0_213] : memref<1x64x16x16xf32, #tpu.memory_space<vmem>>, vector<1x1x8x16xf32>
      %525 = vector.shape_cast %524 : vector<1x1x8x16xf32> to vector<8x16xf32>
      %526 = arith.subf %525, %283 : vector<8x16xf32>
      %527 = math.exp %526 : vector<8x16xf32>
      %528 = arith.addf %511, %527 : vector<8x16xf32>
      %cst_214 = arith.constant 1.400000e+01 : f32
      %529 = vector.broadcast %cst_214 : f32 to vector<8x16xf32>
      %530 = arith.subf %529, %28 : vector<8x16xf32>
      %531 = math.absf %530 : vector<8x16xf32>
      %cst_215 = arith.constant 0.000000e+00 : f32
      %532 = vector.broadcast %cst_215 : f32 to vector<8x16xf32>
      %533 = arith.subf %532, %531 : vector<8x16xf32>
      %534 = vector.broadcast %cst_1 : f32 to vector<8x16xf32>
      %535 = arith.mulf %533, %534 : vector<8x16xf32>
      %536 = math.exp %535 : vector<8x16xf32>
      %537 = arith.addf %520, %536 : vector<8x16xf32>
      %538 = arith.mulf %536, %526 : vector<8x16xf32>
      %539 = arith.addf %522, %538 : vector<8x16xf32>
      %c0_216 = arith.constant 0 : index
      %c15_217 = arith.constant 15 : index
      %540 = arith.index_cast %8 : i32 to index
      %c0_218 = arith.constant 0 : index
      %541 = vector.load %arg2[%c0_216, %c15_217, %540, %c0_218] : memref<1x64x16x16xf32, #tpu.memory_space<vmem>>, vector<1x1x8x16xf32>
      %542 = vector.shape_cast %541 : vector<1x1x8x16xf32> to vector<8x16xf32>
      %543 = arith.subf %542, %283 : vector<8x16xf32>
      %544 = math.exp %543 : vector<8x16xf32>
      %545 = arith.addf %528, %544 : vector<8x16xf32>
      %cst_219 = arith.constant 1.500000e+01 : f32
      %546 = vector.broadcast %cst_219 : f32 to vector<8x16xf32>
      %547 = arith.subf %546, %28 : vector<8x16xf32>
      %548 = math.absf %547 : vector<8x16xf32>
      %cst_220 = arith.constant 0.000000e+00 : f32
      %549 = vector.broadcast %cst_220 : f32 to vector<8x16xf32>
      %550 = arith.subf %549, %548 : vector<8x16xf32>
      %551 = vector.broadcast %cst_1 : f32 to vector<8x16xf32>
      %552 = arith.mulf %550, %551 : vector<8x16xf32>
      %553 = math.exp %552 : vector<8x16xf32>
      %554 = arith.addf %537, %553 : vector<8x16xf32>
      %555 = arith.mulf %553, %543 : vector<8x16xf32>
      %556 = arith.addf %539, %555 : vector<8x16xf32>
      %c0_221 = arith.constant 0 : index
      %c16_222 = arith.constant 16 : index
      %557 = arith.index_cast %8 : i32 to index
      %c0_223 = arith.constant 0 : index
      %558 = vector.load %arg2[%c0_221, %c16_222, %557, %c0_223] : memref<1x64x16x16xf32, #tpu.memory_space<vmem>>, vector<1x1x8x16xf32>
      %559 = vector.shape_cast %558 : vector<1x1x8x16xf32> to vector<8x16xf32>
      %560 = arith.subf %559, %283 : vector<8x16xf32>
      %561 = math.exp %560 : vector<8x16xf32>
      %562 = arith.addf %545, %561 : vector<8x16xf32>
      %cst_224 = arith.constant 1.600000e+01 : f32
      %563 = vector.broadcast %cst_224 : f32 to vector<8x16xf32>
      %564 = arith.subf %563, %28 : vector<8x16xf32>
      %565 = math.absf %564 : vector<8x16xf32>
      %cst_225 = arith.constant 0.000000e+00 : f32
      %566 = vector.broadcast %cst_225 : f32 to vector<8x16xf32>
      %567 = arith.subf %566, %565 : vector<8x16xf32>
      %568 = vector.broadcast %cst_1 : f32 to vector<8x16xf32>
      %569 = arith.mulf %567, %568 : vector<8x16xf32>
      %570 = math.exp %569 : vector<8x16xf32>
      %571 = arith.addf %554, %570 : vector<8x16xf32>
      %572 = arith.mulf %570, %560 : vector<8x16xf32>
      %573 = arith.addf %556, %572 : vector<8x16xf32>
      %c0_226 = arith.constant 0 : index
      %c17_227 = arith.constant 17 : index
      %574 = arith.index_cast %8 : i32 to index
      %c0_228 = arith.constant 0 : index
      %575 = vector.load %arg2[%c0_226, %c17_227, %574, %c0_228] : memref<1x64x16x16xf32, #tpu.memory_space<vmem>>, vector<1x1x8x16xf32>
      %576 = vector.shape_cast %575 : vector<1x1x8x16xf32> to vector<8x16xf32>
      %577 = arith.subf %576, %283 : vector<8x16xf32>
      %578 = math.exp %577 : vector<8x16xf32>
      %579 = arith.addf %562, %578 : vector<8x16xf32>
      %cst_229 = arith.constant 1.700000e+01 : f32
      %580 = vector.broadcast %cst_229 : f32 to vector<8x16xf32>
      %581 = arith.subf %580, %28 : vector<8x16xf32>
      %582 = math.absf %581 : vector<8x16xf32>
      %cst_230 = arith.constant 0.000000e+00 : f32
      %583 = vector.broadcast %cst_230 : f32 to vector<8x16xf32>
      %584 = arith.subf %583, %582 : vector<8x16xf32>
      %585 = vector.broadcast %cst_1 : f32 to vector<8x16xf32>
      %586 = arith.mulf %584, %585 : vector<8x16xf32>
      %587 = math.exp %586 : vector<8x16xf32>
      %588 = arith.addf %571, %587 : vector<8x16xf32>
      %589 = arith.mulf %587, %577 : vector<8x16xf32>
      %590 = arith.addf %573, %589 : vector<8x16xf32>
      %c0_231 = arith.constant 0 : index
      %c18_232 = arith.constant 18 : index
      %591 = arith.index_cast %8 : i32 to index
      %c0_233 = arith.constant 0 : index
      %592 = vector.load %arg2[%c0_231, %c18_232, %591, %c0_233] : memref<1x64x16x16xf32, #tpu.memory_space<vmem>>, vector<1x1x8x16xf32>
      %593 = vector.shape_cast %592 : vector<1x1x8x16xf32> to vector<8x16xf32>
      %594 = arith.subf %593, %283 : vector<8x16xf32>
      %595 = math.exp %594 : vector<8x16xf32>
      %596 = arith.addf %579, %595 : vector<8x16xf32>
      %cst_234 = arith.constant 1.800000e+01 : f32
      %597 = vector.broadcast %cst_234 : f32 to vector<8x16xf32>
      %598 = arith.subf %597, %28 : vector<8x16xf32>
      %599 = math.absf %598 : vector<8x16xf32>
      %cst_235 = arith.constant 0.000000e+00 : f32
      %600 = vector.broadcast %cst_235 : f32 to vector<8x16xf32>
      %601 = arith.subf %600, %599 : vector<8x16xf32>
      %602 = vector.broadcast %cst_1 : f32 to vector<8x16xf32>
      %603 = arith.mulf %601, %602 : vector<8x16xf32>
      %604 = math.exp %603 : vector<8x16xf32>
      %605 = arith.addf %588, %604 : vector<8x16xf32>
      %606 = arith.mulf %604, %594 : vector<8x16xf32>
      %607 = arith.addf %590, %606 : vector<8x16xf32>
      %c0_236 = arith.constant 0 : index
      %c19_237 = arith.constant 19 : index
      %608 = arith.index_cast %8 : i32 to index
      %c0_238 = arith.constant 0 : index
      %609 = vector.load %arg2[%c0_236, %c19_237, %608, %c0_238] : memref<1x64x16x16xf32, #tpu.memory_space<vmem>>, vector<1x1x8x16xf32>
      %610 = vector.shape_cast %609 : vector<1x1x8x16xf32> to vector<8x16xf32>
      %611 = arith.subf %610, %283 : vector<8x16xf32>
      %612 = math.exp %611 : vector<8x16xf32>
      %613 = arith.addf %596, %612 : vector<8x16xf32>
      %cst_239 = arith.constant 1.900000e+01 : f32
      %614 = vector.broadcast %cst_239 : f32 to vector<8x16xf32>
      %615 = arith.subf %614, %28 : vector<8x16xf32>
      %616 = math.absf %615 : vector<8x16xf32>
      %cst_240 = arith.constant 0.000000e+00 : f32
      %617 = vector.broadcast %cst_240 : f32 to vector<8x16xf32>
      %618 = arith.subf %617, %616 : vector<8x16xf32>
      %619 = vector.broadcast %cst_1 : f32 to vector<8x16xf32>
      %620 = arith.mulf %618, %619 : vector<8x16xf32>
      %621 = math.exp %620 : vector<8x16xf32>
      %622 = arith.addf %605, %621 : vector<8x16xf32>
      %623 = arith.mulf %621, %611 : vector<8x16xf32>
      %624 = arith.addf %607, %623 : vector<8x16xf32>
      %c0_241 = arith.constant 0 : index
      %c20_242 = arith.constant 20 : index
      %625 = arith.index_cast %8 : i32 to index
      %c0_243 = arith.constant 0 : index
      %626 = vector.load %arg2[%c0_241, %c20_242, %625, %c0_243] : memref<1x64x16x16xf32, #tpu.memory_space<vmem>>, vector<1x1x8x16xf32>
      %627 = vector.shape_cast %626 : vector<1x1x8x16xf32> to vector<8x16xf32>
      %628 = arith.subf %627, %283 : vector<8x16xf32>
      %629 = math.exp %628 : vector<8x16xf32>
      %630 = arith.addf %613, %629 : vector<8x16xf32>
      %cst_244 = arith.constant 2.000000e+01 : f32
      %631 = vector.broadcast %cst_244 : f32 to vector<8x16xf32>
      %632 = arith.subf %631, %28 : vector<8x16xf32>
      %633 = math.absf %632 : vector<8x16xf32>
      %cst_245 = arith.constant 0.000000e+00 : f32
      %634 = vector.broadcast %cst_245 : f32 to vector<8x16xf32>
      %635 = arith.subf %634, %633 : vector<8x16xf32>
      %636 = vector.broadcast %cst_1 : f32 to vector<8x16xf32>
      %637 = arith.mulf %635, %636 : vector<8x16xf32>
      %638 = math.exp %637 : vector<8x16xf32>
      %639 = arith.addf %622, %638 : vector<8x16xf32>
      %640 = arith.mulf %638, %628 : vector<8x16xf32>
      %641 = arith.addf %624, %640 : vector<8x16xf32>
      %c0_246 = arith.constant 0 : index
      %c21_247 = arith.constant 21 : index
      %642 = arith.index_cast %8 : i32 to index
      %c0_248 = arith.constant 0 : index
      %643 = vector.load %arg2[%c0_246, %c21_247, %642, %c0_248] : memref<1x64x16x16xf32, #tpu.memory_space<vmem>>, vector<1x1x8x16xf32>
      %644 = vector.shape_cast %643 : vector<1x1x8x16xf32> to vector<8x16xf32>
      %645 = arith.subf %644, %283 : vector<8x16xf32>
      %646 = math.exp %645 : vector<8x16xf32>
      %647 = arith.addf %630, %646 : vector<8x16xf32>
      %cst_249 = arith.constant 2.100000e+01 : f32
      %648 = vector.broadcast %cst_249 : f32 to vector<8x16xf32>
      %649 = arith.subf %648, %28 : vector<8x16xf32>
      %650 = math.absf %649 : vector<8x16xf32>
      %cst_250 = arith.constant 0.000000e+00 : f32
      %651 = vector.broadcast %cst_250 : f32 to vector<8x16xf32>
      %652 = arith.subf %651, %650 : vector<8x16xf32>
      %653 = vector.broadcast %cst_1 : f32 to vector<8x16xf32>
      %654 = arith.mulf %652, %653 : vector<8x16xf32>
      %655 = math.exp %654 : vector<8x16xf32>
      %656 = arith.addf %639, %655 : vector<8x16xf32>
      %657 = arith.mulf %655, %645 : vector<8x16xf32>
      %658 = arith.addf %641, %657 : vector<8x16xf32>
      %c0_251 = arith.constant 0 : index
      %c22_252 = arith.constant 22 : index
      %659 = arith.index_cast %8 : i32 to index
      %c0_253 = arith.constant 0 : index
      %660 = vector.load %arg2[%c0_251, %c22_252, %659, %c0_253] : memref<1x64x16x16xf32, #tpu.memory_space<vmem>>, vector<1x1x8x16xf32>
      %661 = vector.shape_cast %660 : vector<1x1x8x16xf32> to vector<8x16xf32>
      %662 = arith.subf %661, %283 : vector<8x16xf32>
      %663 = math.exp %662 : vector<8x16xf32>
      %664 = arith.addf %647, %663 : vector<8x16xf32>
      %cst_254 = arith.constant 2.200000e+01 : f32
      %665 = vector.broadcast %cst_254 : f32 to vector<8x16xf32>
      %666 = arith.subf %665, %28 : vector<8x16xf32>
      %667 = math.absf %666 : vector<8x16xf32>
      %cst_255 = arith.constant 0.000000e+00 : f32
      %668 = vector.broadcast %cst_255 : f32 to vector<8x16xf32>
      %669 = arith.subf %668, %667 : vector<8x16xf32>
      %670 = vector.broadcast %cst_1 : f32 to vector<8x16xf32>
      %671 = arith.mulf %669, %670 : vector<8x16xf32>
      %672 = math.exp %671 : vector<8x16xf32>
      %673 = arith.addf %656, %672 : vector<8x16xf32>
      %674 = arith.mulf %672, %662 : vector<8x16xf32>
      %675 = arith.addf %658, %674 : vector<8x16xf32>
      %c0_256 = arith.constant 0 : index
      %c23_257 = arith.constant 23 : index
      %676 = arith.index_cast %8 : i32 to index
      %c0_258 = arith.constant 0 : index
      %677 = vector.load %arg2[%c0_256, %c23_257, %676, %c0_258] : memref<1x64x16x16xf32, #tpu.memory_space<vmem>>, vector<1x1x8x16xf32>
      %678 = vector.shape_cast %677 : vector<1x1x8x16xf32> to vector<8x16xf32>
      %679 = arith.subf %678, %283 : vector<8x16xf32>
      %680 = math.exp %679 : vector<8x16xf32>
      %681 = arith.addf %664, %680 : vector<8x16xf32>
      %cst_259 = arith.constant 2.300000e+01 : f32
      %682 = vector.broadcast %cst_259 : f32 to vector<8x16xf32>
      %683 = arith.subf %682, %28 : vector<8x16xf32>
      %684 = math.absf %683 : vector<8x16xf32>
      %cst_260 = arith.constant 0.000000e+00 : f32
      %685 = vector.broadcast %cst_260 : f32 to vector<8x16xf32>
      %686 = arith.subf %685, %684 : vector<8x16xf32>
      %687 = vector.broadcast %cst_1 : f32 to vector<8x16xf32>
      %688 = arith.mulf %686, %687 : vector<8x16xf32>
      %689 = math.exp %688 : vector<8x16xf32>
      %690 = arith.addf %673, %689 : vector<8x16xf32>
      %691 = arith.mulf %689, %679 : vector<8x16xf32>
      %692 = arith.addf %675, %691 : vector<8x16xf32>
      %c0_261 = arith.constant 0 : index
      %c24_262 = arith.constant 24 : index
      %693 = arith.index_cast %8 : i32 to index
      %c0_263 = arith.constant 0 : index
      %694 = vector.load %arg2[%c0_261, %c24_262, %693, %c0_263] : memref<1x64x16x16xf32, #tpu.memory_space<vmem>>, vector<1x1x8x16xf32>
      %695 = vector.shape_cast %694 : vector<1x1x8x16xf32> to vector<8x16xf32>
      %696 = arith.subf %695, %283 : vector<8x16xf32>
      %697 = math.exp %696 : vector<8x16xf32>
      %698 = arith.addf %681, %697 : vector<8x16xf32>
      %cst_264 = arith.constant 2.400000e+01 : f32
      %699 = vector.broadcast %cst_264 : f32 to vector<8x16xf32>
      %700 = arith.subf %699, %28 : vector<8x16xf32>
      %701 = math.absf %700 : vector<8x16xf32>
      %cst_265 = arith.constant 0.000000e+00 : f32
      %702 = vector.broadcast %cst_265 : f32 to vector<8x16xf32>
      %703 = arith.subf %702, %701 : vector<8x16xf32>
      %704 = vector.broadcast %cst_1 : f32 to vector<8x16xf32>
      %705 = arith.mulf %703, %704 : vector<8x16xf32>
      %706 = math.exp %705 : vector<8x16xf32>
      %707 = arith.addf %690, %706 : vector<8x16xf32>
      %708 = arith.mulf %706, %696 : vector<8x16xf32>
      %709 = arith.addf %692, %708 : vector<8x16xf32>
      %c0_266 = arith.constant 0 : index
      %c25_267 = arith.constant 25 : index
      %710 = arith.index_cast %8 : i32 to index
      %c0_268 = arith.constant 0 : index
      %711 = vector.load %arg2[%c0_266, %c25_267, %710, %c0_268] : memref<1x64x16x16xf32, #tpu.memory_space<vmem>>, vector<1x1x8x16xf32>
      %712 = vector.shape_cast %711 : vector<1x1x8x16xf32> to vector<8x16xf32>
      %713 = arith.subf %712, %283 : vector<8x16xf32>
      %714 = math.exp %713 : vector<8x16xf32>
      %715 = arith.addf %698, %714 : vector<8x16xf32>
      %cst_269 = arith.constant 2.500000e+01 : f32
      %716 = vector.broadcast %cst_269 : f32 to vector<8x16xf32>
      %717 = arith.subf %716, %28 : vector<8x16xf32>
      %718 = math.absf %717 : vector<8x16xf32>
      %cst_270 = arith.constant 0.000000e+00 : f32
      %719 = vector.broadcast %cst_270 : f32 to vector<8x16xf32>
      %720 = arith.subf %719, %718 : vector<8x16xf32>
      %721 = vector.broadcast %cst_1 : f32 to vector<8x16xf32>
      %722 = arith.mulf %720, %721 : vector<8x16xf32>
      %723 = math.exp %722 : vector<8x16xf32>
      %724 = arith.addf %707, %723 : vector<8x16xf32>
      %725 = arith.mulf %723, %713 : vector<8x16xf32>
      %726 = arith.addf %709, %725 : vector<8x16xf32>
      %c0_271 = arith.constant 0 : index
      %c26_272 = arith.constant 26 : index
      %727 = arith.index_cast %8 : i32 to index
      %c0_273 = arith.constant 0 : index
      %728 = vector.load %arg2[%c0_271, %c26_272, %727, %c0_273] : memref<1x64x16x16xf32, #tpu.memory_space<vmem>>, vector<1x1x8x16xf32>
      %729 = vector.shape_cast %728 : vector<1x1x8x16xf32> to vector<8x16xf32>
      %730 = arith.subf %729, %283 : vector<8x16xf32>
      %731 = math.exp %730 : vector<8x16xf32>
      %732 = arith.addf %715, %731 : vector<8x16xf32>
      %cst_274 = arith.constant 2.600000e+01 : f32
      %733 = vector.broadcast %cst_274 : f32 to vector<8x16xf32>
      %734 = arith.subf %733, %28 : vector<8x16xf32>
      %735 = math.absf %734 : vector<8x16xf32>
      %cst_275 = arith.constant 0.000000e+00 : f32
      %736 = vector.broadcast %cst_275 : f32 to vector<8x16xf32>
      %737 = arith.subf %736, %735 : vector<8x16xf32>
      %738 = vector.broadcast %cst_1 : f32 to vector<8x16xf32>
      %739 = arith.mulf %737, %738 : vector<8x16xf32>
      %740 = math.exp %739 : vector<8x16xf32>
      %741 = arith.addf %724, %740 : vector<8x16xf32>
      %742 = arith.mulf %740, %730 : vector<8x16xf32>
      %743 = arith.addf %726, %742 : vector<8x16xf32>
      %c0_276 = arith.constant 0 : index
      %c27_277 = arith.constant 27 : index
      %744 = arith.index_cast %8 : i32 to index
      %c0_278 = arith.constant 0 : index
      %745 = vector.load %arg2[%c0_276, %c27_277, %744, %c0_278] : memref<1x64x16x16xf32, #tpu.memory_space<vmem>>, vector<1x1x8x16xf32>
      %746 = vector.shape_cast %745 : vector<1x1x8x16xf32> to vector<8x16xf32>
      %747 = arith.subf %746, %283 : vector<8x16xf32>
      %748 = math.exp %747 : vector<8x16xf32>
      %749 = arith.addf %732, %748 : vector<8x16xf32>
      %cst_279 = arith.constant 2.700000e+01 : f32
      %750 = vector.broadcast %cst_279 : f32 to vector<8x16xf32>
      %751 = arith.subf %750, %28 : vector<8x16xf32>
      %752 = math.absf %751 : vector<8x16xf32>
      %cst_280 = arith.constant 0.000000e+00 : f32
      %753 = vector.broadcast %cst_280 : f32 to vector<8x16xf32>
      %754 = arith.subf %753, %752 : vector<8x16xf32>
      %755 = vector.broadcast %cst_1 : f32 to vector<8x16xf32>
      %756 = arith.mulf %754, %755 : vector<8x16xf32>
      %757 = math.exp %756 : vector<8x16xf32>
      %758 = arith.addf %741, %757 : vector<8x16xf32>
      %759 = arith.mulf %757, %747 : vector<8x16xf32>
      %760 = arith.addf %743, %759 : vector<8x16xf32>
      %c0_281 = arith.constant 0 : index
      %c28_282 = arith.constant 28 : index
      %761 = arith.index_cast %8 : i32 to index
      %c0_283 = arith.constant 0 : index
      %762 = vector.load %arg2[%c0_281, %c28_282, %761, %c0_283] : memref<1x64x16x16xf32, #tpu.memory_space<vmem>>, vector<1x1x8x16xf32>
      %763 = vector.shape_cast %762 : vector<1x1x8x16xf32> to vector<8x16xf32>
      %764 = arith.subf %763, %283 : vector<8x16xf32>
      %765 = math.exp %764 : vector<8x16xf32>
      %766 = arith.addf %749, %765 : vector<8x16xf32>
      %cst_284 = arith.constant 2.800000e+01 : f32
      %767 = vector.broadcast %cst_284 : f32 to vector<8x16xf32>
      %768 = arith.subf %767, %28 : vector<8x16xf32>
      %769 = math.absf %768 : vector<8x16xf32>
      %cst_285 = arith.constant 0.000000e+00 : f32
      %770 = vector.broadcast %cst_285 : f32 to vector<8x16xf32>
      %771 = arith.subf %770, %769 : vector<8x16xf32>
      %772 = vector.broadcast %cst_1 : f32 to vector<8x16xf32>
      %773 = arith.mulf %771, %772 : vector<8x16xf32>
      %774 = math.exp %773 : vector<8x16xf32>
      %775 = arith.addf %758, %774 : vector<8x16xf32>
      %776 = arith.mulf %774, %764 : vector<8x16xf32>
      %777 = arith.addf %760, %776 : vector<8x16xf32>
      %c0_286 = arith.constant 0 : index
      %c29_287 = arith.constant 29 : index
      %778 = arith.index_cast %8 : i32 to index
      %c0_288 = arith.constant 0 : index
      %779 = vector.load %arg2[%c0_286, %c29_287, %778, %c0_288] : memref<1x64x16x16xf32, #tpu.memory_space<vmem>>, vector<1x1x8x16xf32>
      %780 = vector.shape_cast %779 : vector<1x1x8x16xf32> to vector<8x16xf32>
      %781 = arith.subf %780, %283 : vector<8x16xf32>
      %782 = math.exp %781 : vector<8x16xf32>
      %783 = arith.addf %766, %782 : vector<8x16xf32>
      %cst_289 = arith.constant 2.900000e+01 : f32
      %784 = vector.broadcast %cst_289 : f32 to vector<8x16xf32>
      %785 = arith.subf %784, %28 : vector<8x16xf32>
      %786 = math.absf %785 : vector<8x16xf32>
      %cst_290 = arith.constant 0.000000e+00 : f32
      %787 = vector.broadcast %cst_290 : f32 to vector<8x16xf32>
      %788 = arith.subf %787, %786 : vector<8x16xf32>
      %789 = vector.broadcast %cst_1 : f32 to vector<8x16xf32>
      %790 = arith.mulf %788, %789 : vector<8x16xf32>
      %791 = math.exp %790 : vector<8x16xf32>
      %792 = arith.addf %775, %791 : vector<8x16xf32>
      %793 = arith.mulf %791, %781 : vector<8x16xf32>
      %794 = arith.addf %777, %793 : vector<8x16xf32>
      %c0_291 = arith.constant 0 : index
      %c30_292 = arith.constant 30 : index
      %795 = arith.index_cast %8 : i32 to index
      %c0_293 = arith.constant 0 : index
      %796 = vector.load %arg2[%c0_291, %c30_292, %795, %c0_293] : memref<1x64x16x16xf32, #tpu.memory_space<vmem>>, vector<1x1x8x16xf32>
      %797 = vector.shape_cast %796 : vector<1x1x8x16xf32> to vector<8x16xf32>
      %798 = arith.subf %797, %283 : vector<8x16xf32>
      %799 = math.exp %798 : vector<8x16xf32>
      %800 = arith.addf %783, %799 : vector<8x16xf32>
      %cst_294 = arith.constant 3.000000e+01 : f32
      %801 = vector.broadcast %cst_294 : f32 to vector<8x16xf32>
      %802 = arith.subf %801, %28 : vector<8x16xf32>
      %803 = math.absf %802 : vector<8x16xf32>
      %cst_295 = arith.constant 0.000000e+00 : f32
      %804 = vector.broadcast %cst_295 : f32 to vector<8x16xf32>
      %805 = arith.subf %804, %803 : vector<8x16xf32>
      %806 = vector.broadcast %cst_1 : f32 to vector<8x16xf32>
      %807 = arith.mulf %805, %806 : vector<8x16xf32>
      %808 = math.exp %807 : vector<8x16xf32>
      %809 = arith.addf %792, %808 : vector<8x16xf32>
      %810 = arith.mulf %808, %798 : vector<8x16xf32>
      %811 = arith.addf %794, %810 : vector<8x16xf32>
      %c0_296 = arith.constant 0 : index
      %c31_297 = arith.constant 31 : index
      %812 = arith.index_cast %8 : i32 to index
      %c0_298 = arith.constant 0 : index
      %813 = vector.load %arg2[%c0_296, %c31_297, %812, %c0_298] : memref<1x64x16x16xf32, #tpu.memory_space<vmem>>, vector<1x1x8x16xf32>
      %814 = vector.shape_cast %813 : vector<1x1x8x16xf32> to vector<8x16xf32>
      %815 = arith.subf %814, %283 : vector<8x16xf32>
      %816 = math.exp %815 : vector<8x16xf32>
      %817 = arith.addf %800, %816 : vector<8x16xf32>
      %cst_299 = arith.constant 3.100000e+01 : f32
      %818 = vector.broadcast %cst_299 : f32 to vector<8x16xf32>
      %819 = arith.subf %818, %28 : vector<8x16xf32>
      %820 = math.absf %819 : vector<8x16xf32>
      %cst_300 = arith.constant 0.000000e+00 : f32
      %821 = vector.broadcast %cst_300 : f32 to vector<8x16xf32>
      %822 = arith.subf %821, %820 : vector<8x16xf32>
      %823 = vector.broadcast %cst_1 : f32 to vector<8x16xf32>
      %824 = arith.mulf %822, %823 : vector<8x16xf32>
      %825 = math.exp %824 : vector<8x16xf32>
      %826 = arith.addf %809, %825 : vector<8x16xf32>
      %827 = arith.mulf %825, %815 : vector<8x16xf32>
      %828 = arith.addf %811, %827 : vector<8x16xf32>
      %c0_301 = arith.constant 0 : index
      %c32_302 = arith.constant 32 : index
      %829 = arith.index_cast %8 : i32 to index
      %c0_303 = arith.constant 0 : index
      %830 = vector.load %arg2[%c0_301, %c32_302, %829, %c0_303] : memref<1x64x16x16xf32, #tpu.memory_space<vmem>>, vector<1x1x8x16xf32>
      %831 = vector.shape_cast %830 : vector<1x1x8x16xf32> to vector<8x16xf32>
      %832 = arith.subf %831, %283 : vector<8x16xf32>
      %833 = math.exp %832 : vector<8x16xf32>
      %834 = arith.addf %817, %833 : vector<8x16xf32>
      %cst_304 = arith.constant 3.200000e+01 : f32
      %835 = vector.broadcast %cst_304 : f32 to vector<8x16xf32>
      %836 = arith.subf %835, %28 : vector<8x16xf32>
      %837 = math.absf %836 : vector<8x16xf32>
      %cst_305 = arith.constant 0.000000e+00 : f32
      %838 = vector.broadcast %cst_305 : f32 to vector<8x16xf32>
      %839 = arith.subf %838, %837 : vector<8x16xf32>
      %840 = vector.broadcast %cst_1 : f32 to vector<8x16xf32>
      %841 = arith.mulf %839, %840 : vector<8x16xf32>
      %842 = math.exp %841 : vector<8x16xf32>
      %843 = arith.addf %826, %842 : vector<8x16xf32>
      %844 = arith.mulf %842, %832 : vector<8x16xf32>
      %845 = arith.addf %828, %844 : vector<8x16xf32>
      %c0_306 = arith.constant 0 : index
      %c33_307 = arith.constant 33 : index
      %846 = arith.index_cast %8 : i32 to index
      %c0_308 = arith.constant 0 : index
      %847 = vector.load %arg2[%c0_306, %c33_307, %846, %c0_308] : memref<1x64x16x16xf32, #tpu.memory_space<vmem>>, vector<1x1x8x16xf32>
      %848 = vector.shape_cast %847 : vector<1x1x8x16xf32> to vector<8x16xf32>
      %849 = arith.subf %848, %283 : vector<8x16xf32>
      %850 = math.exp %849 : vector<8x16xf32>
      %851 = arith.addf %834, %850 : vector<8x16xf32>
      %cst_309 = arith.constant 3.300000e+01 : f32
      %852 = vector.broadcast %cst_309 : f32 to vector<8x16xf32>
      %853 = arith.subf %852, %28 : vector<8x16xf32>
      %854 = math.absf %853 : vector<8x16xf32>
      %cst_310 = arith.constant 0.000000e+00 : f32
      %855 = vector.broadcast %cst_310 : f32 to vector<8x16xf32>
      %856 = arith.subf %855, %854 : vector<8x16xf32>
      %857 = vector.broadcast %cst_1 : f32 to vector<8x16xf32>
      %858 = arith.mulf %856, %857 : vector<8x16xf32>
      %859 = math.exp %858 : vector<8x16xf32>
      %860 = arith.addf %843, %859 : vector<8x16xf32>
      %861 = arith.mulf %859, %849 : vector<8x16xf32>
      %862 = arith.addf %845, %861 : vector<8x16xf32>
      %c0_311 = arith.constant 0 : index
      %c34_312 = arith.constant 34 : index
      %863 = arith.index_cast %8 : i32 to index
      %c0_313 = arith.constant 0 : index
      %864 = vector.load %arg2[%c0_311, %c34_312, %863, %c0_313] : memref<1x64x16x16xf32, #tpu.memory_space<vmem>>, vector<1x1x8x16xf32>
      %865 = vector.shape_cast %864 : vector<1x1x8x16xf32> to vector<8x16xf32>
      %866 = arith.subf %865, %283 : vector<8x16xf32>
      %867 = math.exp %866 : vector<8x16xf32>
      %868 = arith.addf %851, %867 : vector<8x16xf32>
      %cst_314 = arith.constant 3.400000e+01 : f32
      %869 = vector.broadcast %cst_314 : f32 to vector<8x16xf32>
      %870 = arith.subf %869, %28 : vector<8x16xf32>
      %871 = math.absf %870 : vector<8x16xf32>
      %cst_315 = arith.constant 0.000000e+00 : f32
      %872 = vector.broadcast %cst_315 : f32 to vector<8x16xf32>
      %873 = arith.subf %872, %871 : vector<8x16xf32>
      %874 = vector.broadcast %cst_1 : f32 to vector<8x16xf32>
      %875 = arith.mulf %873, %874 : vector<8x16xf32>
      %876 = math.exp %875 : vector<8x16xf32>
      %877 = arith.addf %860, %876 : vector<8x16xf32>
      %878 = arith.mulf %876, %866 : vector<8x16xf32>
      %879 = arith.addf %862, %878 : vector<8x16xf32>
      %c0_316 = arith.constant 0 : index
      %c35_317 = arith.constant 35 : index
      %880 = arith.index_cast %8 : i32 to index
      %c0_318 = arith.constant 0 : index
      %881 = vector.load %arg2[%c0_316, %c35_317, %880, %c0_318] : memref<1x64x16x16xf32, #tpu.memory_space<vmem>>, vector<1x1x8x16xf32>
      %882 = vector.shape_cast %881 : vector<1x1x8x16xf32> to vector<8x16xf32>
      %883 = arith.subf %882, %283 : vector<8x16xf32>
      %884 = math.exp %883 : vector<8x16xf32>
      %885 = arith.addf %868, %884 : vector<8x16xf32>
      %cst_319 = arith.constant 3.500000e+01 : f32
      %886 = vector.broadcast %cst_319 : f32 to vector<8x16xf32>
      %887 = arith.subf %886, %28 : vector<8x16xf32>
      %888 = math.absf %887 : vector<8x16xf32>
      %cst_320 = arith.constant 0.000000e+00 : f32
      %889 = vector.broadcast %cst_320 : f32 to vector<8x16xf32>
      %890 = arith.subf %889, %888 : vector<8x16xf32>
      %891 = vector.broadcast %cst_1 : f32 to vector<8x16xf32>
      %892 = arith.mulf %890, %891 : vector<8x16xf32>
      %893 = math.exp %892 : vector<8x16xf32>
      %894 = arith.addf %877, %893 : vector<8x16xf32>
      %895 = arith.mulf %893, %883 : vector<8x16xf32>
      %896 = arith.addf %879, %895 : vector<8x16xf32>
      %c0_321 = arith.constant 0 : index
      %c36_322 = arith.constant 36 : index
      %897 = arith.index_cast %8 : i32 to index
      %c0_323 = arith.constant 0 : index
      %898 = vector.load %arg2[%c0_321, %c36_322, %897, %c0_323] : memref<1x64x16x16xf32, #tpu.memory_space<vmem>>, vector<1x1x8x16xf32>
      %899 = vector.shape_cast %898 : vector<1x1x8x16xf32> to vector<8x16xf32>
      %900 = arith.subf %899, %283 : vector<8x16xf32>
      %901 = math.exp %900 : vector<8x16xf32>
      %902 = arith.addf %885, %901 : vector<8x16xf32>
      %cst_324 = arith.constant 3.600000e+01 : f32
      %903 = vector.broadcast %cst_324 : f32 to vector<8x16xf32>
      %904 = arith.subf %903, %28 : vector<8x16xf32>
      %905 = math.absf %904 : vector<8x16xf32>
      %cst_325 = arith.constant 0.000000e+00 : f32
      %906 = vector.broadcast %cst_325 : f32 to vector<8x16xf32>
      %907 = arith.subf %906, %905 : vector<8x16xf32>
      %908 = vector.broadcast %cst_1 : f32 to vector<8x16xf32>
      %909 = arith.mulf %907, %908 : vector<8x16xf32>
      %910 = math.exp %909 : vector<8x16xf32>
      %911 = arith.addf %894, %910 : vector<8x16xf32>
      %912 = arith.mulf %910, %900 : vector<8x16xf32>
      %913 = arith.addf %896, %912 : vector<8x16xf32>
      %c0_326 = arith.constant 0 : index
      %c37_327 = arith.constant 37 : index
      %914 = arith.index_cast %8 : i32 to index
      %c0_328 = arith.constant 0 : index
      %915 = vector.load %arg2[%c0_326, %c37_327, %914, %c0_328] : memref<1x64x16x16xf32, #tpu.memory_space<vmem>>, vector<1x1x8x16xf32>
      %916 = vector.shape_cast %915 : vector<1x1x8x16xf32> to vector<8x16xf32>
      %917 = arith.subf %916, %283 : vector<8x16xf32>
      %918 = math.exp %917 : vector<8x16xf32>
      %919 = arith.addf %902, %918 : vector<8x16xf32>
      %cst_329 = arith.constant 3.700000e+01 : f32
      %920 = vector.broadcast %cst_329 : f32 to vector<8x16xf32>
      %921 = arith.subf %920, %28 : vector<8x16xf32>
      %922 = math.absf %921 : vector<8x16xf32>
      %cst_330 = arith.constant 0.000000e+00 : f32
      %923 = vector.broadcast %cst_330 : f32 to vector<8x16xf32>
      %924 = arith.subf %923, %922 : vector<8x16xf32>
      %925 = vector.broadcast %cst_1 : f32 to vector<8x16xf32>
      %926 = arith.mulf %924, %925 : vector<8x16xf32>
      %927 = math.exp %926 : vector<8x16xf32>
      %928 = arith.addf %911, %927 : vector<8x16xf32>
      %929 = arith.mulf %927, %917 : vector<8x16xf32>
      %930 = arith.addf %913, %929 : vector<8x16xf32>
      %c0_331 = arith.constant 0 : index
      %c38_332 = arith.constant 38 : index
      %931 = arith.index_cast %8 : i32 to index
      %c0_333 = arith.constant 0 : index
      %932 = vector.load %arg2[%c0_331, %c38_332, %931, %c0_333] : memref<1x64x16x16xf32, #tpu.memory_space<vmem>>, vector<1x1x8x16xf32>
      %933 = vector.shape_cast %932 : vector<1x1x8x16xf32> to vector<8x16xf32>
      %934 = arith.subf %933, %283 : vector<8x16xf32>
      %935 = math.exp %934 : vector<8x16xf32>
      %936 = arith.addf %919, %935 : vector<8x16xf32>
      %cst_334 = arith.constant 3.800000e+01 : f32
      %937 = vector.broadcast %cst_334 : f32 to vector<8x16xf32>
      %938 = arith.subf %937, %28 : vector<8x16xf32>
      %939 = math.absf %938 : vector<8x16xf32>
      %cst_335 = arith.constant 0.000000e+00 : f32
      %940 = vector.broadcast %cst_335 : f32 to vector<8x16xf32>
      %941 = arith.subf %940, %939 : vector<8x16xf32>
      %942 = vector.broadcast %cst_1 : f32 to vector<8x16xf32>
      %943 = arith.mulf %941, %942 : vector<8x16xf32>
      %944 = math.exp %943 : vector<8x16xf32>
      %945 = arith.addf %928, %944 : vector<8x16xf32>
      %946 = arith.mulf %944, %934 : vector<8x16xf32>
      %947 = arith.addf %930, %946 : vector<8x16xf32>
      %c0_336 = arith.constant 0 : index
      %c39_337 = arith.constant 39 : index
      %948 = arith.index_cast %8 : i32 to index
      %c0_338 = arith.constant 0 : index
      %949 = vector.load %arg2[%c0_336, %c39_337, %948, %c0_338] : memref<1x64x16x16xf32, #tpu.memory_space<vmem>>, vector<1x1x8x16xf32>
      %950 = vector.shape_cast %949 : vector<1x1x8x16xf32> to vector<8x16xf32>
      %951 = arith.subf %950, %283 : vector<8x16xf32>
      %952 = math.exp %951 : vector<8x16xf32>
      %953 = arith.addf %936, %952 : vector<8x16xf32>
      %cst_339 = arith.constant 3.900000e+01 : f32
      %954 = vector.broadcast %cst_339 : f32 to vector<8x16xf32>
      %955 = arith.subf %954, %28 : vector<8x16xf32>
      %956 = math.absf %955 : vector<8x16xf32>
      %cst_340 = arith.constant 0.000000e+00 : f32
      %957 = vector.broadcast %cst_340 : f32 to vector<8x16xf32>
      %958 = arith.subf %957, %956 : vector<8x16xf32>
      %959 = vector.broadcast %cst_1 : f32 to vector<8x16xf32>
      %960 = arith.mulf %958, %959 : vector<8x16xf32>
      %961 = math.exp %960 : vector<8x16xf32>
      %962 = arith.addf %945, %961 : vector<8x16xf32>
      %963 = arith.mulf %961, %951 : vector<8x16xf32>
      %964 = arith.addf %947, %963 : vector<8x16xf32>
      %c0_341 = arith.constant 0 : index
      %c40_342 = arith.constant 40 : index
      %965 = arith.index_cast %8 : i32 to index
      %c0_343 = arith.constant 0 : index
      %966 = vector.load %arg2[%c0_341, %c40_342, %965, %c0_343] : memref<1x64x16x16xf32, #tpu.memory_space<vmem>>, vector<1x1x8x16xf32>
      %967 = vector.shape_cast %966 : vector<1x1x8x16xf32> to vector<8x16xf32>
      %968 = arith.subf %967, %283 : vector<8x16xf32>
      %969 = math.exp %968 : vector<8x16xf32>
      %970 = arith.addf %953, %969 : vector<8x16xf32>
      %cst_344 = arith.constant 4.000000e+01 : f32
      %971 = vector.broadcast %cst_344 : f32 to vector<8x16xf32>
      %972 = arith.subf %971, %28 : vector<8x16xf32>
      %973 = math.absf %972 : vector<8x16xf32>
      %cst_345 = arith.constant 0.000000e+00 : f32
      %974 = vector.broadcast %cst_345 : f32 to vector<8x16xf32>
      %975 = arith.subf %974, %973 : vector<8x16xf32>
      %976 = vector.broadcast %cst_1 : f32 to vector<8x16xf32>
      %977 = arith.mulf %975, %976 : vector<8x16xf32>
      %978 = math.exp %977 : vector<8x16xf32>
      %979 = arith.addf %962, %978 : vector<8x16xf32>
      %980 = arith.mulf %978, %968 : vector<8x16xf32>
      %981 = arith.addf %964, %980 : vector<8x16xf32>
      %c0_346 = arith.constant 0 : index
      %c41_347 = arith.constant 41 : index
      %982 = arith.index_cast %8 : i32 to index
      %c0_348 = arith.constant 0 : index
      %983 = vector.load %arg2[%c0_346, %c41_347, %982, %c0_348] : memref<1x64x16x16xf32, #tpu.memory_space<vmem>>, vector<1x1x8x16xf32>
      %984 = vector.shape_cast %983 : vector<1x1x8x16xf32> to vector<8x16xf32>
      %985 = arith.subf %984, %283 : vector<8x16xf32>
      %986 = math.exp %985 : vector<8x16xf32>
      %987 = arith.addf %970, %986 : vector<8x16xf32>
      %cst_349 = arith.constant 4.100000e+01 : f32
      %988 = vector.broadcast %cst_349 : f32 to vector<8x16xf32>
      %989 = arith.subf %988, %28 : vector<8x16xf32>
      %990 = math.absf %989 : vector<8x16xf32>
      %cst_350 = arith.constant 0.000000e+00 : f32
      %991 = vector.broadcast %cst_350 : f32 to vector<8x16xf32>
      %992 = arith.subf %991, %990 : vector<8x16xf32>
      %993 = vector.broadcast %cst_1 : f32 to vector<8x16xf32>
      %994 = arith.mulf %992, %993 : vector<8x16xf32>
      %995 = math.exp %994 : vector<8x16xf32>
      %996 = arith.addf %979, %995 : vector<8x16xf32>
      %997 = arith.mulf %995, %985 : vector<8x16xf32>
      %998 = arith.addf %981, %997 : vector<8x16xf32>
      %c0_351 = arith.constant 0 : index
      %c42_352 = arith.constant 42 : index
      %999 = arith.index_cast %8 : i32 to index
      %c0_353 = arith.constant 0 : index
      %1000 = vector.load %arg2[%c0_351, %c42_352, %999, %c0_353] : memref<1x64x16x16xf32, #tpu.memory_space<vmem>>, vector<1x1x8x16xf32>
      %1001 = vector.shape_cast %1000 : vector<1x1x8x16xf32> to vector<8x16xf32>
      %1002 = arith.subf %1001, %283 : vector<8x16xf32>
      %1003 = math.exp %1002 : vector<8x16xf32>
      %1004 = arith.addf %987, %1003 : vector<8x16xf32>
      %cst_354 = arith.constant 4.200000e+01 : f32
      %1005 = vector.broadcast %cst_354 : f32 to vector<8x16xf32>
      %1006 = arith.subf %1005, %28 : vector<8x16xf32>
      %1007 = math.absf %1006 : vector<8x16xf32>
      %cst_355 = arith.constant 0.000000e+00 : f32
      %1008 = vector.broadcast %cst_355 : f32 to vector<8x16xf32>
      %1009 = arith.subf %1008, %1007 : vector<8x16xf32>
      %1010 = vector.broadcast %cst_1 : f32 to vector<8x16xf32>
      %1011 = arith.mulf %1009, %1010 : vector<8x16xf32>
      %1012 = math.exp %1011 : vector<8x16xf32>
      %1013 = arith.addf %996, %1012 : vector<8x16xf32>
      %1014 = arith.mulf %1012, %1002 : vector<8x16xf32>
      %1015 = arith.addf %998, %1014 : vector<8x16xf32>
      %c0_356 = arith.constant 0 : index
      %c43_357 = arith.constant 43 : index
      %1016 = arith.index_cast %8 : i32 to index
      %c0_358 = arith.constant 0 : index
      %1017 = vector.load %arg2[%c0_356, %c43_357, %1016, %c0_358] : memref<1x64x16x16xf32, #tpu.memory_space<vmem>>, vector<1x1x8x16xf32>
      %1018 = vector.shape_cast %1017 : vector<1x1x8x16xf32> to vector<8x16xf32>
      %1019 = arith.subf %1018, %283 : vector<8x16xf32>
      %1020 = math.exp %1019 : vector<8x16xf32>
      %1021 = arith.addf %1004, %1020 : vector<8x16xf32>
      %cst_359 = arith.constant 4.300000e+01 : f32
      %1022 = vector.broadcast %cst_359 : f32 to vector<8x16xf32>
      %1023 = arith.subf %1022, %28 : vector<8x16xf32>
      %1024 = math.absf %1023 : vector<8x16xf32>
      %cst_360 = arith.constant 0.000000e+00 : f32
      %1025 = vector.broadcast %cst_360 : f32 to vector<8x16xf32>
      %1026 = arith.subf %1025, %1024 : vector<8x16xf32>
      %1027 = vector.broadcast %cst_1 : f32 to vector<8x16xf32>
      %1028 = arith.mulf %1026, %1027 : vector<8x16xf32>
      %1029 = math.exp %1028 : vector<8x16xf32>
      %1030 = arith.addf %1013, %1029 : vector<8x16xf32>
      %1031 = arith.mulf %1029, %1019 : vector<8x16xf32>
      %1032 = arith.addf %1015, %1031 : vector<8x16xf32>
      %c0_361 = arith.constant 0 : index
      %c44_362 = arith.constant 44 : index
      %1033 = arith.index_cast %8 : i32 to index
      %c0_363 = arith.constant 0 : index
      %1034 = vector.load %arg2[%c0_361, %c44_362, %1033, %c0_363] : memref<1x64x16x16xf32, #tpu.memory_space<vmem>>, vector<1x1x8x16xf32>
      %1035 = vector.shape_cast %1034 : vector<1x1x8x16xf32> to vector<8x16xf32>
      %1036 = arith.subf %1035, %283 : vector<8x16xf32>
      %1037 = math.exp %1036 : vector<8x16xf32>
      %1038 = arith.addf %1021, %1037 : vector<8x16xf32>
      %cst_364 = arith.constant 4.400000e+01 : f32
      %1039 = vector.broadcast %cst_364 : f32 to vector<8x16xf32>
      %1040 = arith.subf %1039, %28 : vector<8x16xf32>
      %1041 = math.absf %1040 : vector<8x16xf32>
      %cst_365 = arith.constant 0.000000e+00 : f32
      %1042 = vector.broadcast %cst_365 : f32 to vector<8x16xf32>
      %1043 = arith.subf %1042, %1041 : vector<8x16xf32>
      %1044 = vector.broadcast %cst_1 : f32 to vector<8x16xf32>
      %1045 = arith.mulf %1043, %1044 : vector<8x16xf32>
      %1046 = math.exp %1045 : vector<8x16xf32>
      %1047 = arith.addf %1030, %1046 : vector<8x16xf32>
      %1048 = arith.mulf %1046, %1036 : vector<8x16xf32>
      %1049 = arith.addf %1032, %1048 : vector<8x16xf32>
      %c0_366 = arith.constant 0 : index
      %c45_367 = arith.constant 45 : index
      %1050 = arith.index_cast %8 : i32 to index
      %c0_368 = arith.constant 0 : index
      %1051 = vector.load %arg2[%c0_366, %c45_367, %1050, %c0_368] : memref<1x64x16x16xf32, #tpu.memory_space<vmem>>, vector<1x1x8x16xf32>
      %1052 = vector.shape_cast %1051 : vector<1x1x8x16xf32> to vector<8x16xf32>
      %1053 = arith.subf %1052, %283 : vector<8x16xf32>
      %1054 = math.exp %1053 : vector<8x16xf32>
      %1055 = arith.addf %1038, %1054 : vector<8x16xf32>
      %cst_369 = arith.constant 4.500000e+01 : f32
      %1056 = vector.broadcast %cst_369 : f32 to vector<8x16xf32>
      %1057 = arith.subf %1056, %28 : vector<8x16xf32>
      %1058 = math.absf %1057 : vector<8x16xf32>
      %cst_370 = arith.constant 0.000000e+00 : f32
      %1059 = vector.broadcast %cst_370 : f32 to vector<8x16xf32>
      %1060 = arith.subf %1059, %1058 : vector<8x16xf32>
      %1061 = vector.broadcast %cst_1 : f32 to vector<8x16xf32>
      %1062 = arith.mulf %1060, %1061 : vector<8x16xf32>
      %1063 = math.exp %1062 : vector<8x16xf32>
      %1064 = arith.addf %1047, %1063 : vector<8x16xf32>
      %1065 = arith.mulf %1063, %1053 : vector<8x16xf32>
      %1066 = arith.addf %1049, %1065 : vector<8x16xf32>
      %c0_371 = arith.constant 0 : index
      %c46_372 = arith.constant 46 : index
      %1067 = arith.index_cast %8 : i32 to index
      %c0_373 = arith.constant 0 : index
      %1068 = vector.load %arg2[%c0_371, %c46_372, %1067, %c0_373] : memref<1x64x16x16xf32, #tpu.memory_space<vmem>>, vector<1x1x8x16xf32>
      %1069 = vector.shape_cast %1068 : vector<1x1x8x16xf32> to vector<8x16xf32>
      %1070 = arith.subf %1069, %283 : vector<8x16xf32>
      %1071 = math.exp %1070 : vector<8x16xf32>
      %1072 = arith.addf %1055, %1071 : vector<8x16xf32>
      %cst_374 = arith.constant 4.600000e+01 : f32
      %1073 = vector.broadcast %cst_374 : f32 to vector<8x16xf32>
      %1074 = arith.subf %1073, %28 : vector<8x16xf32>
      %1075 = math.absf %1074 : vector<8x16xf32>
      %cst_375 = arith.constant 0.000000e+00 : f32
      %1076 = vector.broadcast %cst_375 : f32 to vector<8x16xf32>
      %1077 = arith.subf %1076, %1075 : vector<8x16xf32>
      %1078 = vector.broadcast %cst_1 : f32 to vector<8x16xf32>
      %1079 = arith.mulf %1077, %1078 : vector<8x16xf32>
      %1080 = math.exp %1079 : vector<8x16xf32>
      %1081 = arith.addf %1064, %1080 : vector<8x16xf32>
      %1082 = arith.mulf %1080, %1070 : vector<8x16xf32>
      %1083 = arith.addf %1066, %1082 : vector<8x16xf32>
      %c0_376 = arith.constant 0 : index
      %c47_377 = arith.constant 47 : index
      %1084 = arith.index_cast %8 : i32 to index
      %c0_378 = arith.constant 0 : index
      %1085 = vector.load %arg2[%c0_376, %c47_377, %1084, %c0_378] : memref<1x64x16x16xf32, #tpu.memory_space<vmem>>, vector<1x1x8x16xf32>
      %1086 = vector.shape_cast %1085 : vector<1x1x8x16xf32> to vector<8x16xf32>
      %1087 = arith.subf %1086, %283 : vector<8x16xf32>
      %1088 = math.exp %1087 : vector<8x16xf32>
      %1089 = arith.addf %1072, %1088 : vector<8x16xf32>
      %cst_379 = arith.constant 4.700000e+01 : f32
      %1090 = vector.broadcast %cst_379 : f32 to vector<8x16xf32>
      %1091 = arith.subf %1090, %28 : vector<8x16xf32>
      %1092 = math.absf %1091 : vector<8x16xf32>
      %cst_380 = arith.constant 0.000000e+00 : f32
      %1093 = vector.broadcast %cst_380 : f32 to vector<8x16xf32>
      %1094 = arith.subf %1093, %1092 : vector<8x16xf32>
      %1095 = vector.broadcast %cst_1 : f32 to vector<8x16xf32>
      %1096 = arith.mulf %1094, %1095 : vector<8x16xf32>
      %1097 = math.exp %1096 : vector<8x16xf32>
      %1098 = arith.addf %1081, %1097 : vector<8x16xf32>
      %1099 = arith.mulf %1097, %1087 : vector<8x16xf32>
      %1100 = arith.addf %1083, %1099 : vector<8x16xf32>
      %c0_381 = arith.constant 0 : index
      %c48_382 = arith.constant 48 : index
      %1101 = arith.index_cast %8 : i32 to index
      %c0_383 = arith.constant 0 : index
      %1102 = vector.load %arg2[%c0_381, %c48_382, %1101, %c0_383] : memref<1x64x16x16xf32, #tpu.memory_space<vmem>>, vector<1x1x8x16xf32>
      %1103 = vector.shape_cast %1102 : vector<1x1x8x16xf32> to vector<8x16xf32>
      %1104 = arith.subf %1103, %283 : vector<8x16xf32>
      %1105 = math.exp %1104 : vector<8x16xf32>
      %1106 = arith.addf %1089, %1105 : vector<8x16xf32>
      %cst_384 = arith.constant 4.800000e+01 : f32
      %1107 = vector.broadcast %cst_384 : f32 to vector<8x16xf32>
      %1108 = arith.subf %1107, %28 : vector<8x16xf32>
      %1109 = math.absf %1108 : vector<8x16xf32>
      %cst_385 = arith.constant 0.000000e+00 : f32
      %1110 = vector.broadcast %cst_385 : f32 to vector<8x16xf32>
      %1111 = arith.subf %1110, %1109 : vector<8x16xf32>
      %1112 = vector.broadcast %cst_1 : f32 to vector<8x16xf32>
      %1113 = arith.mulf %1111, %1112 : vector<8x16xf32>
      %1114 = math.exp %1113 : vector<8x16xf32>
      %1115 = arith.addf %1098, %1114 : vector<8x16xf32>
      %1116 = arith.mulf %1114, %1104 : vector<8x16xf32>
      %1117 = arith.addf %1100, %1116 : vector<8x16xf32>
      %c0_386 = arith.constant 0 : index
      %c49_387 = arith.constant 49 : index
      %1118 = arith.index_cast %8 : i32 to index
      %c0_388 = arith.constant 0 : index
      %1119 = vector.load %arg2[%c0_386, %c49_387, %1118, %c0_388] : memref<1x64x16x16xf32, #tpu.memory_space<vmem>>, vector<1x1x8x16xf32>
      %1120 = vector.shape_cast %1119 : vector<1x1x8x16xf32> to vector<8x16xf32>
      %1121 = arith.subf %1120, %283 : vector<8x16xf32>
      %1122 = math.exp %1121 : vector<8x16xf32>
      %1123 = arith.addf %1106, %1122 : vector<8x16xf32>
      %cst_389 = arith.constant 4.900000e+01 : f32
      %1124 = vector.broadcast %cst_389 : f32 to vector<8x16xf32>
      %1125 = arith.subf %1124, %28 : vector<8x16xf32>
      %1126 = math.absf %1125 : vector<8x16xf32>
      %cst_390 = arith.constant 0.000000e+00 : f32
      %1127 = vector.broadcast %cst_390 : f32 to vector<8x16xf32>
      %1128 = arith.subf %1127, %1126 : vector<8x16xf32>
      %1129 = vector.broadcast %cst_1 : f32 to vector<8x16xf32>
      %1130 = arith.mulf %1128, %1129 : vector<8x16xf32>
      %1131 = math.exp %1130 : vector<8x16xf32>
      %1132 = arith.addf %1115, %1131 : vector<8x16xf32>
      %1133 = arith.mulf %1131, %1121 : vector<8x16xf32>
      %1134 = arith.addf %1117, %1133 : vector<8x16xf32>
      %c0_391 = arith.constant 0 : index
      %c50_392 = arith.constant 50 : index
      %1135 = arith.index_cast %8 : i32 to index
      %c0_393 = arith.constant 0 : index
      %1136 = vector.load %arg2[%c0_391, %c50_392, %1135, %c0_393] : memref<1x64x16x16xf32, #tpu.memory_space<vmem>>, vector<1x1x8x16xf32>
      %1137 = vector.shape_cast %1136 : vector<1x1x8x16xf32> to vector<8x16xf32>
      %1138 = arith.subf %1137, %283 : vector<8x16xf32>
      %1139 = math.exp %1138 : vector<8x16xf32>
      %1140 = arith.addf %1123, %1139 : vector<8x16xf32>
      %cst_394 = arith.constant 5.000000e+01 : f32
      %1141 = vector.broadcast %cst_394 : f32 to vector<8x16xf32>
      %1142 = arith.subf %1141, %28 : vector<8x16xf32>
      %1143 = math.absf %1142 : vector<8x16xf32>
      %cst_395 = arith.constant 0.000000e+00 : f32
      %1144 = vector.broadcast %cst_395 : f32 to vector<8x16xf32>
      %1145 = arith.subf %1144, %1143 : vector<8x16xf32>
      %1146 = vector.broadcast %cst_1 : f32 to vector<8x16xf32>
      %1147 = arith.mulf %1145, %1146 : vector<8x16xf32>
      %1148 = math.exp %1147 : vector<8x16xf32>
      %1149 = arith.addf %1132, %1148 : vector<8x16xf32>
      %1150 = arith.mulf %1148, %1138 : vector<8x16xf32>
      %1151 = arith.addf %1134, %1150 : vector<8x16xf32>
      %c0_396 = arith.constant 0 : index
      %c51_397 = arith.constant 51 : index
      %1152 = arith.index_cast %8 : i32 to index
      %c0_398 = arith.constant 0 : index
      %1153 = vector.load %arg2[%c0_396, %c51_397, %1152, %c0_398] : memref<1x64x16x16xf32, #tpu.memory_space<vmem>>, vector<1x1x8x16xf32>
      %1154 = vector.shape_cast %1153 : vector<1x1x8x16xf32> to vector<8x16xf32>
      %1155 = arith.subf %1154, %283 : vector<8x16xf32>
      %1156 = math.exp %1155 : vector<8x16xf32>
      %1157 = arith.addf %1140, %1156 : vector<8x16xf32>
      %cst_399 = arith.constant 5.100000e+01 : f32
      %1158 = vector.broadcast %cst_399 : f32 to vector<8x16xf32>
      %1159 = arith.subf %1158, %28 : vector<8x16xf32>
      %1160 = math.absf %1159 : vector<8x16xf32>
      %cst_400 = arith.constant 0.000000e+00 : f32
      %1161 = vector.broadcast %cst_400 : f32 to vector<8x16xf32>
      %1162 = arith.subf %1161, %1160 : vector<8x16xf32>
      %1163 = vector.broadcast %cst_1 : f32 to vector<8x16xf32>
      %1164 = arith.mulf %1162, %1163 : vector<8x16xf32>
      %1165 = math.exp %1164 : vector<8x16xf32>
      %1166 = arith.addf %1149, %1165 : vector<8x16xf32>
      %1167 = arith.mulf %1165, %1155 : vector<8x16xf32>
      %1168 = arith.addf %1151, %1167 : vector<8x16xf32>
      %c0_401 = arith.constant 0 : index
      %c52_402 = arith.constant 52 : index
      %1169 = arith.index_cast %8 : i32 to index
      %c0_403 = arith.constant 0 : index
      %1170 = vector.load %arg2[%c0_401, %c52_402, %1169, %c0_403] : memref<1x64x16x16xf32, #tpu.memory_space<vmem>>, vector<1x1x8x16xf32>
      %1171 = vector.shape_cast %1170 : vector<1x1x8x16xf32> to vector<8x16xf32>
      %1172 = arith.subf %1171, %283 : vector<8x16xf32>
      %1173 = math.exp %1172 : vector<8x16xf32>
      %1174 = arith.addf %1157, %1173 : vector<8x16xf32>
      %cst_404 = arith.constant 5.200000e+01 : f32
      %1175 = vector.broadcast %cst_404 : f32 to vector<8x16xf32>
      %1176 = arith.subf %1175, %28 : vector<8x16xf32>
      %1177 = math.absf %1176 : vector<8x16xf32>
      %cst_405 = arith.constant 0.000000e+00 : f32
      %1178 = vector.broadcast %cst_405 : f32 to vector<8x16xf32>
      %1179 = arith.subf %1178, %1177 : vector<8x16xf32>
      %1180 = vector.broadcast %cst_1 : f32 to vector<8x16xf32>
      %1181 = arith.mulf %1179, %1180 : vector<8x16xf32>
      %1182 = math.exp %1181 : vector<8x16xf32>
      %1183 = arith.addf %1166, %1182 : vector<8x16xf32>
      %1184 = arith.mulf %1182, %1172 : vector<8x16xf32>
      %1185 = arith.addf %1168, %1184 : vector<8x16xf32>
      %c0_406 = arith.constant 0 : index
      %c53_407 = arith.constant 53 : index
      %1186 = arith.index_cast %8 : i32 to index
      %c0_408 = arith.constant 0 : index
      %1187 = vector.load %arg2[%c0_406, %c53_407, %1186, %c0_408] : memref<1x64x16x16xf32, #tpu.memory_space<vmem>>, vector<1x1x8x16xf32>
      %1188 = vector.shape_cast %1187 : vector<1x1x8x16xf32> to vector<8x16xf32>
      %1189 = arith.subf %1188, %283 : vector<8x16xf32>
      %1190 = math.exp %1189 : vector<8x16xf32>
      %1191 = arith.addf %1174, %1190 : vector<8x16xf32>
      %cst_409 = arith.constant 5.300000e+01 : f32
      %1192 = vector.broadcast %cst_409 : f32 to vector<8x16xf32>
      %1193 = arith.subf %1192, %28 : vector<8x16xf32>
      %1194 = math.absf %1193 : vector<8x16xf32>
      %cst_410 = arith.constant 0.000000e+00 : f32
      %1195 = vector.broadcast %cst_410 : f32 to vector<8x16xf32>
      %1196 = arith.subf %1195, %1194 : vector<8x16xf32>
      %1197 = vector.broadcast %cst_1 : f32 to vector<8x16xf32>
      %1198 = arith.mulf %1196, %1197 : vector<8x16xf32>
      %1199 = math.exp %1198 : vector<8x16xf32>
      %1200 = arith.addf %1183, %1199 : vector<8x16xf32>
      %1201 = arith.mulf %1199, %1189 : vector<8x16xf32>
      %1202 = arith.addf %1185, %1201 : vector<8x16xf32>
      %c0_411 = arith.constant 0 : index
      %c54_412 = arith.constant 54 : index
      %1203 = arith.index_cast %8 : i32 to index
      %c0_413 = arith.constant 0 : index
      %1204 = vector.load %arg2[%c0_411, %c54_412, %1203, %c0_413] : memref<1x64x16x16xf32, #tpu.memory_space<vmem>>, vector<1x1x8x16xf32>
      %1205 = vector.shape_cast %1204 : vector<1x1x8x16xf32> to vector<8x16xf32>
      %1206 = arith.subf %1205, %283 : vector<8x16xf32>
      %1207 = math.exp %1206 : vector<8x16xf32>
      %1208 = arith.addf %1191, %1207 : vector<8x16xf32>
      %cst_414 = arith.constant 5.400000e+01 : f32
      %1209 = vector.broadcast %cst_414 : f32 to vector<8x16xf32>
      %1210 = arith.subf %1209, %28 : vector<8x16xf32>
      %1211 = math.absf %1210 : vector<8x16xf32>
      %cst_415 = arith.constant 0.000000e+00 : f32
      %1212 = vector.broadcast %cst_415 : f32 to vector<8x16xf32>
      %1213 = arith.subf %1212, %1211 : vector<8x16xf32>
      %1214 = vector.broadcast %cst_1 : f32 to vector<8x16xf32>
      %1215 = arith.mulf %1213, %1214 : vector<8x16xf32>
      %1216 = math.exp %1215 : vector<8x16xf32>
      %1217 = arith.addf %1200, %1216 : vector<8x16xf32>
      %1218 = arith.mulf %1216, %1206 : vector<8x16xf32>
      %1219 = arith.addf %1202, %1218 : vector<8x16xf32>
      %c0_416 = arith.constant 0 : index
      %c55_417 = arith.constant 55 : index
      %1220 = arith.index_cast %8 : i32 to index
      %c0_418 = arith.constant 0 : index
      %1221 = vector.load %arg2[%c0_416, %c55_417, %1220, %c0_418] : memref<1x64x16x16xf32, #tpu.memory_space<vmem>>, vector<1x1x8x16xf32>
      %1222 = vector.shape_cast %1221 : vector<1x1x8x16xf32> to vector<8x16xf32>
      %1223 = arith.subf %1222, %283 : vector<8x16xf32>
      %1224 = math.exp %1223 : vector<8x16xf32>
      %1225 = arith.addf %1208, %1224 : vector<8x16xf32>
      %cst_419 = arith.constant 5.500000e+01 : f32
      %1226 = vector.broadcast %cst_419 : f32 to vector<8x16xf32>
      %1227 = arith.subf %1226, %28 : vector<8x16xf32>
      %1228 = math.absf %1227 : vector<8x16xf32>
      %cst_420 = arith.constant 0.000000e+00 : f32
      %1229 = vector.broadcast %cst_420 : f32 to vector<8x16xf32>
      %1230 = arith.subf %1229, %1228 : vector<8x16xf32>
      %1231 = vector.broadcast %cst_1 : f32 to vector<8x16xf32>
      %1232 = arith.mulf %1230, %1231 : vector<8x16xf32>
      %1233 = math.exp %1232 : vector<8x16xf32>
      %1234 = arith.addf %1217, %1233 : vector<8x16xf32>
      %1235 = arith.mulf %1233, %1223 : vector<8x16xf32>
      %1236 = arith.addf %1219, %1235 : vector<8x16xf32>
      %c0_421 = arith.constant 0 : index
      %c56_422 = arith.constant 56 : index
      %1237 = arith.index_cast %8 : i32 to index
      %c0_423 = arith.constant 0 : index
      %1238 = vector.load %arg2[%c0_421, %c56_422, %1237, %c0_423] : memref<1x64x16x16xf32, #tpu.memory_space<vmem>>, vector<1x1x8x16xf32>
      %1239 = vector.shape_cast %1238 : vector<1x1x8x16xf32> to vector<8x16xf32>
      %1240 = arith.subf %1239, %283 : vector<8x16xf32>
      %1241 = math.exp %1240 : vector<8x16xf32>
      %1242 = arith.addf %1225, %1241 : vector<8x16xf32>
      %cst_424 = arith.constant 5.600000e+01 : f32
      %1243 = vector.broadcast %cst_424 : f32 to vector<8x16xf32>
      %1244 = arith.subf %1243, %28 : vector<8x16xf32>
      %1245 = math.absf %1244 : vector<8x16xf32>
      %cst_425 = arith.constant 0.000000e+00 : f32
      %1246 = vector.broadcast %cst_425 : f32 to vector<8x16xf32>
      %1247 = arith.subf %1246, %1245 : vector<8x16xf32>
      %1248 = vector.broadcast %cst_1 : f32 to vector<8x16xf32>
      %1249 = arith.mulf %1247, %1248 : vector<8x16xf32>
      %1250 = math.exp %1249 : vector<8x16xf32>
      %1251 = arith.addf %1234, %1250 : vector<8x16xf32>
      %1252 = arith.mulf %1250, %1240 : vector<8x16xf32>
      %1253 = arith.addf %1236, %1252 : vector<8x16xf32>
      %c0_426 = arith.constant 0 : index
      %c57_427 = arith.constant 57 : index
      %1254 = arith.index_cast %8 : i32 to index
      %c0_428 = arith.constant 0 : index
      %1255 = vector.load %arg2[%c0_426, %c57_427, %1254, %c0_428] : memref<1x64x16x16xf32, #tpu.memory_space<vmem>>, vector<1x1x8x16xf32>
      %1256 = vector.shape_cast %1255 : vector<1x1x8x16xf32> to vector<8x16xf32>
      %1257 = arith.subf %1256, %283 : vector<8x16xf32>
      %1258 = math.exp %1257 : vector<8x16xf32>
      %1259 = arith.addf %1242, %1258 : vector<8x16xf32>
      %cst_429 = arith.constant 5.700000e+01 : f32
      %1260 = vector.broadcast %cst_429 : f32 to vector<8x16xf32>
      %1261 = arith.subf %1260, %28 : vector<8x16xf32>
      %1262 = math.absf %1261 : vector<8x16xf32>
      %cst_430 = arith.constant 0.000000e+00 : f32
      %1263 = vector.broadcast %cst_430 : f32 to vector<8x16xf32>
      %1264 = arith.subf %1263, %1262 : vector<8x16xf32>
      %1265 = vector.broadcast %cst_1 : f32 to vector<8x16xf32>
      %1266 = arith.mulf %1264, %1265 : vector<8x16xf32>
      %1267 = math.exp %1266 : vector<8x16xf32>
      %1268 = arith.addf %1251, %1267 : vector<8x16xf32>
      %1269 = arith.mulf %1267, %1257 : vector<8x16xf32>
      %1270 = arith.addf %1253, %1269 : vector<8x16xf32>
      %c0_431 = arith.constant 0 : index
      %c58_432 = arith.constant 58 : index
      %1271 = arith.index_cast %8 : i32 to index
      %c0_433 = arith.constant 0 : index
      %1272 = vector.load %arg2[%c0_431, %c58_432, %1271, %c0_433] : memref<1x64x16x16xf32, #tpu.memory_space<vmem>>, vector<1x1x8x16xf32>
      %1273 = vector.shape_cast %1272 : vector<1x1x8x16xf32> to vector<8x16xf32>
      %1274 = arith.subf %1273, %283 : vector<8x16xf32>
      %1275 = math.exp %1274 : vector<8x16xf32>
      %1276 = arith.addf %1259, %1275 : vector<8x16xf32>
      %cst_434 = arith.constant 5.800000e+01 : f32
      %1277 = vector.broadcast %cst_434 : f32 to vector<8x16xf32>
      %1278 = arith.subf %1277, %28 : vector<8x16xf32>
      %1279 = math.absf %1278 : vector<8x16xf32>
      %cst_435 = arith.constant 0.000000e+00 : f32
      %1280 = vector.broadcast %cst_435 : f32 to vector<8x16xf32>
      %1281 = arith.subf %1280, %1279 : vector<8x16xf32>
      %1282 = vector.broadcast %cst_1 : f32 to vector<8x16xf32>
      %1283 = arith.mulf %1281, %1282 : vector<8x16xf32>
      %1284 = math.exp %1283 : vector<8x16xf32>
      %1285 = arith.addf %1268, %1284 : vector<8x16xf32>
      %1286 = arith.mulf %1284, %1274 : vector<8x16xf32>
      %1287 = arith.addf %1270, %1286 : vector<8x16xf32>
      %c0_436 = arith.constant 0 : index
      %c59_437 = arith.constant 59 : index
      %1288 = arith.index_cast %8 : i32 to index
      %c0_438 = arith.constant 0 : index
      %1289 = vector.load %arg2[%c0_436, %c59_437, %1288, %c0_438] : memref<1x64x16x16xf32, #tpu.memory_space<vmem>>, vector<1x1x8x16xf32>
      %1290 = vector.shape_cast %1289 : vector<1x1x8x16xf32> to vector<8x16xf32>
      %1291 = arith.subf %1290, %283 : vector<8x16xf32>
      %1292 = math.exp %1291 : vector<8x16xf32>
      %1293 = arith.addf %1276, %1292 : vector<8x16xf32>
      %cst_439 = arith.constant 5.900000e+01 : f32
      %1294 = vector.broadcast %cst_439 : f32 to vector<8x16xf32>
      %1295 = arith.subf %1294, %28 : vector<8x16xf32>
      %1296 = math.absf %1295 : vector<8x16xf32>
      %cst_440 = arith.constant 0.000000e+00 : f32
      %1297 = vector.broadcast %cst_440 : f32 to vector<8x16xf32>
      %1298 = arith.subf %1297, %1296 : vector<8x16xf32>
      %1299 = vector.broadcast %cst_1 : f32 to vector<8x16xf32>
      %1300 = arith.mulf %1298, %1299 : vector<8x16xf32>
      %1301 = math.exp %1300 : vector<8x16xf32>
      %1302 = arith.addf %1285, %1301 : vector<8x16xf32>
      %1303 = arith.mulf %1301, %1291 : vector<8x16xf32>
      %1304 = arith.addf %1287, %1303 : vector<8x16xf32>
      %c0_441 = arith.constant 0 : index
      %c60_442 = arith.constant 60 : index
      %1305 = arith.index_cast %8 : i32 to index
      %c0_443 = arith.constant 0 : index
      %1306 = vector.load %arg2[%c0_441, %c60_442, %1305, %c0_443] : memref<1x64x16x16xf32, #tpu.memory_space<vmem>>, vector<1x1x8x16xf32>
      %1307 = vector.shape_cast %1306 : vector<1x1x8x16xf32> to vector<8x16xf32>
      %1308 = arith.subf %1307, %283 : vector<8x16xf32>
      %1309 = math.exp %1308 : vector<8x16xf32>
      %1310 = arith.addf %1293, %1309 : vector<8x16xf32>
      %cst_444 = arith.constant 6.000000e+01 : f32
      %1311 = vector.broadcast %cst_444 : f32 to vector<8x16xf32>
      %1312 = arith.subf %1311, %28 : vector<8x16xf32>
      %1313 = math.absf %1312 : vector<8x16xf32>
      %cst_445 = arith.constant 0.000000e+00 : f32
      %1314 = vector.broadcast %cst_445 : f32 to vector<8x16xf32>
      %1315 = arith.subf %1314, %1313 : vector<8x16xf32>
      %1316 = vector.broadcast %cst_1 : f32 to vector<8x16xf32>
      %1317 = arith.mulf %1315, %1316 : vector<8x16xf32>
      %1318 = math.exp %1317 : vector<8x16xf32>
      %1319 = arith.addf %1302, %1318 : vector<8x16xf32>
      %1320 = arith.mulf %1318, %1308 : vector<8x16xf32>
      %1321 = arith.addf %1304, %1320 : vector<8x16xf32>
      %c0_446 = arith.constant 0 : index
      %c61_447 = arith.constant 61 : index
      %1322 = arith.index_cast %8 : i32 to index
      %c0_448 = arith.constant 0 : index
      %1323 = vector.load %arg2[%c0_446, %c61_447, %1322, %c0_448] : memref<1x64x16x16xf32, #tpu.memory_space<vmem>>, vector<1x1x8x16xf32>
      %1324 = vector.shape_cast %1323 : vector<1x1x8x16xf32> to vector<8x16xf32>
      %1325 = arith.subf %1324, %283 : vector<8x16xf32>
      %1326 = math.exp %1325 : vector<8x16xf32>
      %1327 = arith.addf %1310, %1326 : vector<8x16xf32>
      %cst_449 = arith.constant 6.100000e+01 : f32
      %1328 = vector.broadcast %cst_449 : f32 to vector<8x16xf32>
      %1329 = arith.subf %1328, %28 : vector<8x16xf32>
      %1330 = math.absf %1329 : vector<8x16xf32>
      %cst_450 = arith.constant 0.000000e+00 : f32
      %1331 = vector.broadcast %cst_450 : f32 to vector<8x16xf32>
      %1332 = arith.subf %1331, %1330 : vector<8x16xf32>
      %1333 = vector.broadcast %cst_1 : f32 to vector<8x16xf32>
      %1334 = arith.mulf %1332, %1333 : vector<8x16xf32>
      %1335 = math.exp %1334 : vector<8x16xf32>
      %1336 = arith.addf %1319, %1335 : vector<8x16xf32>
      %1337 = arith.mulf %1335, %1325 : vector<8x16xf32>
      %1338 = arith.addf %1321, %1337 : vector<8x16xf32>
      %c0_451 = arith.constant 0 : index
      %c62_452 = arith.constant 62 : index
      %1339 = arith.index_cast %8 : i32 to index
      %c0_453 = arith.constant 0 : index
      %1340 = vector.load %arg2[%c0_451, %c62_452, %1339, %c0_453] : memref<1x64x16x16xf32, #tpu.memory_space<vmem>>, vector<1x1x8x16xf32>
      %1341 = vector.shape_cast %1340 : vector<1x1x8x16xf32> to vector<8x16xf32>
      %1342 = arith.subf %1341, %283 : vector<8x16xf32>
      %1343 = math.exp %1342 : vector<8x16xf32>
      %1344 = arith.addf %1327, %1343 : vector<8x16xf32>
      %cst_454 = arith.constant 6.200000e+01 : f32
      %1345 = vector.broadcast %cst_454 : f32 to vector<8x16xf32>
      %1346 = arith.subf %1345, %28 : vector<8x16xf32>
      %1347 = math.absf %1346 : vector<8x16xf32>
      %cst_455 = arith.constant 0.000000e+00 : f32
      %1348 = vector.broadcast %cst_455 : f32 to vector<8x16xf32>
      %1349 = arith.subf %1348, %1347 : vector<8x16xf32>
      %1350 = vector.broadcast %cst_1 : f32 to vector<8x16xf32>
      %1351 = arith.mulf %1349, %1350 : vector<8x16xf32>
      %1352 = math.exp %1351 : vector<8x16xf32>
      %1353 = arith.addf %1336, %1352 : vector<8x16xf32>
      %1354 = arith.mulf %1352, %1342 : vector<8x16xf32>
      %1355 = arith.addf %1338, %1354 : vector<8x16xf32>
      %c0_456 = arith.constant 0 : index
      %c63_457 = arith.constant 63 : index
      %1356 = arith.index_cast %8 : i32 to index
      %c0_458 = arith.constant 0 : index
      %1357 = vector.load %arg2[%c0_456, %c63_457, %1356, %c0_458] : memref<1x64x16x16xf32, #tpu.memory_space<vmem>>, vector<1x1x8x16xf32>
      %1358 = vector.shape_cast %1357 : vector<1x1x8x16xf32> to vector<8x16xf32>
      %1359 = arith.subf %1358, %283 : vector<8x16xf32>
      %1360 = math.exp %1359 : vector<8x16xf32>
      %1361 = arith.addf %1344, %1360 : vector<8x16xf32>
      %cst_459 = arith.constant 6.300000e+01 : f32
      %1362 = vector.broadcast %cst_459 : f32 to vector<8x16xf32>
      %1363 = arith.subf %1362, %28 : vector<8x16xf32>
      %1364 = math.absf %1363 : vector<8x16xf32>
      %cst_460 = arith.constant 0.000000e+00 : f32
      %1365 = vector.broadcast %cst_460 : f32 to vector<8x16xf32>
      %1366 = arith.subf %1365, %1364 : vector<8x16xf32>
      %1367 = vector.broadcast %cst_1 : f32 to vector<8x16xf32>
      %1368 = arith.mulf %1366, %1367 : vector<8x16xf32>
      %1369 = math.exp %1368 : vector<8x16xf32>
      %1370 = arith.addf %1353, %1369 : vector<8x16xf32>
      %1371 = arith.mulf %1369, %1359 : vector<8x16xf32>
      %1372 = arith.addf %1355, %1371 : vector<8x16xf32>
      %1373 = arith.divf %1372, %1370 : vector<8x16xf32>
      %1374 = math.log %1361 : vector<8x16xf32>
      %1375 = arith.subf %1373, %1374 : vector<8x16xf32>
      %1376 = arith.mulf %1375, %27 : vector<8x16xf32>
      %1377 = tpu.iota {dimensions = array<i32: 0>} : vector<8x16xi32>
      %1378 = arith.addi %0, %8 : i32
      %1379 = vector.broadcast %1378 : i32 to vector<8x16xi32>
      %1380 = arith.addi %1377, %1379 : vector<8x16xi32>
      %c24_i32 = arith.constant 24 : i32
      %1381 = vector.broadcast %c24_i32 : i32 to vector<8x16xi32>
      %1382 = arith.cmpi slt, %1380, %1381 : vector<8x16xi32>
      %cst_461 = arith.constant 0.000000e+00 : f32
      %1383 = vector.broadcast %cst_461 : f32 to vector<8x16xf32>
      %1384 = arith.select %1382, %1376, %1383 : vector<8x16xi1>, vector<8x16xf32>
      %1385 = arith.addf %arg6, %1384 : vector<8x16xf32>
      scf.yield %1385 : vector<8x16xf32>
    }
    %c2_i32_2 = arith.constant 2 : i32
    %c0 = arith.constant 0 : index
    %c0_3 = arith.constant 0 : index
    %c0_4 = arith.constant 0 : index
    %c0_5 = arith.constant 0 : index
    %4 = vector.load %arg4[%c0, %c0_3, %c0_4, %c0_5] : memref<1x1x8x16xf32, #tpu.memory_space<vmem>>, vector<1x1x8x16xf32>
    %5 = vector.shape_cast %4 : vector<1x1x8x16xf32> to vector<8x16xf32>
    %6 = vector.shape_cast %3 : vector<8x16xf32> to vector<1x1x8x16xf32>
    tpu.vector_store %arg4[%c0, %c0_3, %c0_4, %c0_5], %6 {strides = array<i32>} : memref<1x1x8x16xf32, #tpu.memory_space<vmem>>, vector<1x1x8x16xf32>,
    return
  }
  func.func @transform_0(%arg0: i32, %arg1: i32) -> (i32, i32, i32, i32) {
    %c0_i32 = arith.constant 0 : i32
    %c0_i32_0 = arith.constant 0 : i32
    %c0_i32_1 = arith.constant 0 : i32
    return %arg0, %c0_i32, %arg1, %c0_i32_0 : i32, i32, i32, i32
  }
  func.func @transform_1(%arg0: i32, %arg1: i32) -> (i32, i32, i32) {
    %c0_i32 = arith.constant 0 : i32
    %c0_i32_0 = arith.constant 0 : i32
    return %arg0, %arg1, %c0_i32 : i32, i32, i32
  }
  func.func @transform_2(%arg0: i32, %arg1: i32) -> (i32, i32, i32, i32) {
    %c0_i32 = arith.constant 0 : i32
    %c0_i32_0 = arith.constant 0 : i32
    %c0_i32_1 = arith.constant 0 : i32
    return %arg0, %arg1, %c0_i32, %c0_i32_0 : i32, i32, i32, i32
  }
}

</mosaic_0001>

<llo_original>
// kernel: tpu_custom_call.1
$region0: #{tpu_custom_call.1}
  #allocation0 [shape = 'u32[]', space=smem, size = 0x4, offset = 0x4, fixed_abs, tag = 'smem constant byte address 0x4 - core index']
  #allocation1 [shape = 'u32[144,128]{1,0:T(1,128)}', space=vmem, size = 0x12000, scoped, tag = 'internal scratch']
  %s0 = inlined_call_operand.vmem [shape: f32[2,64,24,16], index: 0, kind: input, shape index: {}]
  %s1 = inlined_call_operand.vmem [shape: f32[2,24,16], index: 1, kind: input, shape index: {}]
  %s2 = inlined_call_operand.hbm [shape: f32[2,2,8,16], index: 2, kind: output, shape index: {}]
  %s3 = sld [smem:[#allocation0]]
  $region86: #{tpu_custom_call.1} parent=0
    _
  %s5 = ssub.s32 1, %s3
  %s6 = scalar_select 0, %s5, %s3
  $region1: #{tpu_custom_call.1} parent=0
    #allocation2 [shape = 'u8[1048576]{0}', space=vmem, size = 0x100000, scoped, tag = 'input window, operand 0']
    #allocation3 [shape = 'u8[8192]{0}', space=vmem, size = 0x2000, scoped, tag = 'output window, operand 0']
    #allocation4 [shape = 's32[2]{0}', space=sflag, size = 0x8, scoped, tag = 'scoped memory for tpu_custom_call.1']
    %7 = vsyncpa [#allocation4], 0
    %s8 = scalar_lea.sflag [#allocation4], 1
    %9 = vsyncpa %s8, 0
    loop: start=0, step=1, limit=6
    $region2: #{tpu_custom_call.1} parent=1 // loop_pre_header
      _
    $region3: #{tpu_custom_call.1} parent=1 // loop_header
      %s11 = sphi 0, %s15
      %p12 = scmp.ge.s32.totalorder %s11, 6
      %s18 = sphi 0, %s30
      %s19 = sphi 0, %s26
      %s20 = sphi 0, %s18
      %s21 = sphi 0, %s19
      %s22 = sphi 0, %s20
      %s23 = sphi 0, %s21
      %s35 = sphi 0, %s37
      %s38 = sphi 0, %s35
      %s39 = sphi 0, %s38
      %s55 = sphi 0, %s39
      %s63 = sphi 0, %s65
      %s66 = sphi 0, %s63
      %s67 = sphi 0, %s66
      %s83 = sphi 0, %s67
      %s91 = sphi 0, %s93
      %s94 = sphi 0, %s91
      %s95 = sphi 0, %s94
      %s111 = sphi 0, %s95
    $region4: #{tpu_custom_call.1} parent=1 // loop_header_branch
      %14 = sbr.rel (%p12) target = $region8
    $region5: #{tpu_custom_call.1} parent=1 // loop_body
      %s16 = ssub.s32 %s11, 1
      %s17 = ssub.s32 %s11, 2
      %s24 = sadd.s32 1, %s19
      %p25 = scmp.ge.s32.totalorder %s24, 2
      %s26 = scalar_select %p25, 0, %s24
      %s27 = sadd.s32 1, %s18
      %s28 = scalar_select %p25, %s27, %s18
      %p29 = scmp.ge.s32.totalorder %s28, 2
      %s30 = scalar_select %p29, 0, %s28
      %s31 = ssub.s32 %s18, %s30
      %s32 = ssub.s32 %s19, %s26
      %s33 = sor.u32 %s31, %s32
      %p34 = scmp.eq.s32.totalorder %s33, 0
      %s36 = sadd.s32 %s35, 1
      %s37 = scalar_select %p34, %s35, %s36
      %p40 = pneg %p34
      %p41 = scmp.eq.s32.totalorder %s11, 3
      %p42 = por %p40, %p41
      %p43 = scmp.ne.s32.totalorder %s35, %s38
      %p44 = scmp.eq.s32.totalorder %s11, 0
      %p45 = por %p43, %p44
      %p46 = scmp.ne.s32.totalorder %s35, %s38
      %p47 = scmp.eq.s32.totalorder %s16, 3
      %p48 = por %p46, %p47
      %p49 = scmp.ne.s32.totalorder %s38, %s39
      %p50 = scmp.eq.s32.totalorder %s16, 0
      %p51 = por %p49, %p50
      %p52 = scmp.ne.s32.totalorder %s38, %s39
      %p53 = scmp.eq.s32.totalorder %s17, 3
      %p54 = por %p52, %p53
      %p56 = scmp.ne.s32.totalorder %s39, %s55
      %p57 = scmp.eq.s32.totalorder %s17, 0
      %p58 = por %p56, %p57
      %s59 = ssub.s32 %s18, %s30
      %s60 = ssub.s32 %s19, %s26
      %s61 = sor.u32 %s59, %s60
      %p62 = scmp.eq.s32.totalorder %s61, 0
      %s64 = sadd.s32 %s63, 1
      %s65 = scalar_select %p62, %s63, %s64
      %p68 = pneg %p62
      %p69 = scmp.eq.s32.totalorder %s11, 3
      %p70 = por %p68, %p69
      %p71 = scmp.ne.s32.totalorder %s63, %s66
      %p72 = scmp.eq.s32.totalorder %s11, 0
      %p73 = por %p71, %p72
      %p74 = scmp.ne.s32.totalorder %s63, %s66
      %p75 = scmp.eq.s32.totalorder %s16, 3
      %p76 = por %p74, %p75
      %p77 = scmp.ne.s32.totalorder %s66, %s67
      %p78 = scmp.eq.s32.totalorder %s16, 0
      %p79 = por %p77, %p78
      %p80 = scmp.ne.s32.totalorder %s66, %s67
      %p81 = scmp.eq.s32.totalorder %s17, 3
      %p82 = por %p80, %p81
      %p84 = scmp.ne.s32.totalorder %s67, %s83
      %p85 = scmp.eq.s32.totalorder %s17, 0
      %p86 = por %p84, %p85
      %s87 = ssub.s32 %s18, %s30
      %s88 = ssub.s32 %s19, %s26
      %s89 = sor.u32 %s87, %s88
      %p90 = scmp.eq.s32.totalorder %s89, 0
      %s92 = sadd.s32 %s91, 1
      %s93 = scalar_select %p90, %s91, %s92
      %p96 = pneg %p90
      %p97 = scmp.eq.s32.totalorder %s11, 3
      %p98 = por %p96, %p97
      %p99 = scmp.ne.s32.totalorder %s91, %s94
      %p100 = scmp.eq.s32.totalorder %s11, 0
      %p101 = por %p99, %p100
      %p102 = scmp.ne.s32.totalorder %s91, %s94
      %p103 = scmp.eq.s32.totalorder %s16, 3
      %p104 = por %p102, %p103
      %p105 = scmp.ne.s32.totalorder %s94, %s95
      %p106 = scmp.eq.s32.totalorder %s16, 0
      %p107 = por %p105, %p106
      %p108 = scmp.ne.s32.totalorder %s94, %s95
      %p109 = scmp.eq.s32.totalorder %s17, 3
      %p110 = por %p108, %p109
      %p112 = scmp.ne.s32.totalorder %s95, %s111
      %p113 = scmp.eq.s32.totalorder %s17, 0
      %p114 = por %p112, %p113
      %p115 = scmp.le.s32.totalorder 1, %s11
      %p116 = scmp.lt.s32.totalorder %s11, 5
      %p117 = pnand %p115, %p116
      %p118 = pneg %p117
      // Predicated region
      $region9: #{tpu_custom_call.1} parent=5 // pred_check
        _
      $region10: #{tpu_custom_call.1} parent=5 // pred_check_branch
        %120 = sbr.rel (%p117) target = $region12
      $region11: #{tpu_custom_call.1} parent=5 // pred_region
        %s121 = ssub.s32 %s11, 1
      $region12: #{tpu_custom_call.1} parent=5 // pred_fallthru
        _
      %p122 = scmp.lt.s32.totalorder %s11, 4
      // Predicated region
      $region13: #{tpu_custom_call.1} parent=5 // pred_check
        %p123 = pneg %p122
      $region14: #{tpu_custom_call.1} parent=5 // pred_check_branch
        %125 = sbr.rel (%p123) target = $region16
      $region15: #{tpu_custom_call.1} parent=5 // pred_region
        // Predicated region
        $region17: #{tpu_custom_call.1} parent=15 // pred_check
          %p126 = pneg %p45
        $region18: #{tpu_custom_call.1} parent=15 // pred_check_branch
          %128 = sbr.rel (%p126) target = $region20
        $region19: #{tpu_custom_call.1} parent=15 // pred_region
          %s129 = sand.u32 %s35, 1
          %s130 = sand.u32 %s35, 1
          %s131 = smul.addr %s130, 1024
          %s132 = scalar_lea.vmem [#allocation2], %s131
          %s133 = smul.u32 2, %s19
          %s134 = ssub.s32 3, %s133
          %p135 = scmp.lt.s32.totalorder %s134, 2
          %s136 = scalar_select %p135, %s134, 2
          %s137 = smul.u32 8192, %s136
          %p138 = scmp.ne.s32.totalorder 0, %s137
          %s139 = smul.addr %s18, 192
          %s140 = sadd.s32 %s133, %s139
          %s141 = smul.addr %s140, 8
          %s142 = scalar_lea.vmem %s0, %s141
          // Predicated region
          $region21: #{tpu_custom_call.1} parent=19 // pred_check
            %p143 = pneg %p138
          $region22: #{tpu_custom_call.1} parent=19 // pred_check_branch
            %145 = sbr.rel (%p143) target = $region24
          $region23: #{tpu_custom_call.1} parent=19 // pred_region
            // Predicated region
            $region25: #{tpu_custom_call.1} parent=23 // pred_check
              _
            $region26: #{tpu_custom_call.1} parent=23 // pred_check_branch
              %147 = sbr.rel (0) target = $region28
            $region27: #{tpu_custom_call.1} parent=23 // pred_region
              // Predicated region
              $region40: #{tpu_custom_call.1} parent=27 // pred_check
                _
              $region41: #{tpu_custom_call.1} parent=27 // pred_check_branch
                %296 = sbr.rel (0) target = $region43
              $region42: #{tpu_custom_call.1} parent=27 // pred_region
                // While loop
                $region44: #{tpu_custom_call.1} parent=42 // loop_pre_header
                  _
                $region45: #{tpu_custom_call.1} parent=42 // loop_header
                  %s298 = sphi 0, %s300
                  %p299 = scmp.ge.s32.totalorder %s298, %s136
                  %s303 = sphi 0, %s436
                  %s304 = sphi %s142, %s439
                  %s305 = sphi %s132, %s440
                $region46: #{tpu_custom_call.1} parent=42 // loop_header_branch
                  %302 = sbr.rel (%p299) target = $region50
                $region47: #{tpu_custom_call.1} parent=42 // loop_body
                  %v306 = vld [vmem:[%s304] sm:$0xff]
                  %307 = vst [vmem:[%s305] sm:$0xff] %v306
                  %v308 = vld [vmem:[%s304 + $0x18] sm:$0xff]
                  %309 = vst [vmem:[%s305 + $0x10] sm:$0xff] %v308
                  %v310 = vld [vmem:[%s304 + $0x30] sm:$0xff]
                  %311 = vst [vmem:[%s305 + $0x20] sm:$0xff] %v310
                  %v312 = vld [vmem:[%s304 + $0x48] sm:$0xff]
                  %313 = vst [vmem:[%s305 + $0x30] sm:$0xff] %v312
                  %v314 = vld [vmem:[%s304 + $0x60] sm:$0xff]
                  %315 = vst [vmem:[%s305 + $0x40] sm:$0xff] %v314
                  %v316 = vld [vmem:[%s304 + $0x78] sm:$0xff]
                  %317 = vst [vmem:[%s305 + $0x50] sm:$0xff] %v316
                  %v318 = vld [vmem:[%s304 + $0x90] sm:$0xff]
                  %319 = vst [vmem:[%s305 + $0x60] sm:$0xff] %v318
                  %v320 = vld [vmem:[%s304 + $0xa8] sm:$0xff]
                  %321 = vst [vmem:[%s305 + $0x70] sm:$0xff] %v320
                  %v322 = vld [vmem:[%s304 + $0xc0] sm:$0xff]
                  %323 = vst [vmem:[%s305 + $0x80] sm:$0xff] %v322
                  %v324 = vld [vmem:[%s304 + $0xd8] sm:$0xff]
                  %325 = vst [vmem:[%s305 + $0x90] sm:$0xff] %v324
                  %v326 = vld [vmem:[%s304 + $0xf0] sm:$0xff]
                  %327 = vst [vmem:[%s305 + $0xa0] sm:$0xff] %v326
                  %v328 = vld [vmem:[%s304 + $0x108] sm:$0xff]
                  %329 = vst [vmem:[%s305 + $0xb0] sm:$0xff] %v328
                  %v330 = vld [vmem:[%s304 + $0x120] sm:$0xff]
                  %331 = vst [vmem:[%s305 + $0xc0] sm:$0xff] %v330
                  %v332 = vld [vmem:[%s304 + $0x138] sm:$0xff]
                  %333 = vst [vmem:[%s305 + $0xd0] sm:$0xff] %v332
                  %v334 = vld [vmem:[%s304 + $0x150] sm:$0xff]
                  %335 = vst [vmem:[%s305 + $0xe0] sm:$0xff] %v334
                  %v336 = vld [vmem:[%s304 + $0x168] sm:$0xff]
                  %337 = vst [vmem:[%s305 + $0xf0] sm:$0xff] %v336
                  %v338 = vld [vmem:[%s304 + $0x180] sm:$0xff]
                  %339 = vst [vmem:[%s305 + $0x100] sm:$0xff] %v338
                  %v340 = vld [vmem:[%s304 + $0x198] sm:$0xff]
                  %341 = vst [vmem:[%s305 + $0x110] sm:$0xff] %v340
                  %v342 = vld [vmem:[%s304 + $0x1b0] sm:$0xff]
                  %343 = vst [vmem:[%s305 + $0x120] sm:$0xff] %v342
                  %v344 = vld [vmem:[%s304 + $0x1c8] sm:$0xff]
                  %345 = vst [vmem:[%s305 + $0x130] sm:$0xff] %v344
                  %v346 = vld [vmem:[%s304 + $0x1e0] sm:$0xff]
                  %347 = vst [vmem:[%s305 + $0x140] sm:$0xff] %v346
                  %v348 = vld [vmem:[%s304 + $0x1f8] sm:$0xff]
                  %349 = vst [vmem:[%s305 + $0x150] sm:$0xff] %v348
                  %v350 = vld [vmem:[%s304 + $0x210] sm:$0xff]
                  %351 = vst [vmem:[%s305 + $0x160] sm:$0xff] %v350
                  %v352 = vld [vmem:[%s304 + $0x228] sm:$0xff]
                  %353 = vst [vmem:[%s305 + $0x170] sm:$0xff] %v352
                  %v354 = vld [vmem:[%s304 + $0x240] sm:$0xff]
                  %355 = vst [vmem:[%s305 + $0x180] sm:$0xff] %v354
                  %v356 = vld [vmem:[%s304 + $0x258] sm:$0xff]
                  %357 = vst [vmem:[%s305 + $0x190] sm:$0xff] %v356
                  %v358 = vld [vmem:[%s304 + $0x270] sm:$0xff]
                  %359 = vst [vmem:[%s305 + $0x1a0] sm:$0xff] %v358
                  %v360 = vld [vmem:[%s304 + $0x288] sm:$0xff]
                  %361 = vst [vmem:[%s305 + $0x1b0] sm:$0xff] %v360
                  %v362 = vld [vmem:[%s304 + $0x2a0] sm:$0xff]
                  %363 = vst [vmem:[%s305 + $0x1c0] sm:$0xff] %v362
                  %v364 = vld [vmem:[%s304 + $0x2b8] sm:$0xff]
                  %365 = vst [vmem:[%s305 + $0x1d0] sm:$0xff] %v364
                  %v366 = vld [vmem:[%s304 + $0x2d0] sm:$0xff]
                  %367 = vst [vmem:[%s305 + $0x1e0] sm:$0xff] %v366
                  %v368 = vld [vmem:[%s304 + $0x2e8] sm:$0xff]
                  %369 = vst [vmem:[%s305 + $0x1f0] sm:$0xff] %v368
                  %v370 = vld [vmem:[%s304 + $0x300] sm:$0xff]
                  %371 = vst [vmem:[%s305 + $0x200] sm:$0xff] %v370
                  %v372 = vld [vmem:[%s304 + $0x318] sm:$0xff]
                  %373 = vst [vmem:[%s305 + $0x210] sm:$0xff] %v372
                  %v374 = vld [vmem:[%s304 + $0x330] sm:$0xff]
                  %375 = vst [vmem:[%s305 + $0x220] sm:$0xff] %v374
                  %v376 = vld [vmem:[%s304 + $0x348] sm:$0xff]
                  %377 = vst [vmem:[%s305 + $0x230] sm:$0xff] %v376
                  %v378 = vld [vmem:[%s304 + $0x360] sm:$0xff]
                  %379 = vst [vmem:[%s305 + $0x240] sm:$0xff] %v378
                  %v380 = vld [vmem:[%s304 + $0x378] sm:$0xff]
                  %381 = vst [vmem:[%s305 + $0x250] sm:$0xff] %v380
                  %v382 = vld [vmem:[%s304 + $0x390] sm:$0xff]
                  %383 = vst [vmem:[%s305 + $0x260] sm:$0xff] %v382
                  %v384 = vld [vmem:[%s304 + $0x3a8] sm:$0xff]
                  %385 = vst [vmem:[%s305 + $0x270] sm:$0xff] %v384
                  %v386 = vld [vmem:[%s304 + $0x3c0] sm:$0xff]
                  %387 = vst [vmem:[%s305 + $0x280] sm:$0xff] %v386
                  %v388 = vld [vmem:[%s304 + $0x3d8] sm:$0xff]
                  %389 = vst [vmem:[%s305 + $0x290] sm:$0xff] %v388
                  %v390 = vld [vmem:[%s304 + $0x3f0] sm:$0xff]
                  %391 = vst [vmem:[%s305 + $0x2a0] sm:$0xff] %v390
                  %v392 = vld [vmem:[%s304 + $0x408] sm:$0xff]
                  %393 = vst [vmem:[%s305 + $0x2b0] sm:$0xff] %v392
                  %v394 = vld [vmem:[%s304 + $0x420] sm:$0xff]
                  %395 = vst [vmem:[%s305 + $0x2c0] sm:$0xff] %v394
                  %v396 = vld [vmem:[%s304 + $0x438] sm:$0xff]
                  %397 = vst [vmem:[%s305 + $0x2d0] sm:$0xff] %v396
                  %v398 = vld [vmem:[%s304 + $0x450] sm:$0xff]
                  %399 = vst [vmem:[%s305 + $0x2e0] sm:$0xff] %v398
                  %v400 = vld [vmem:[%s304 + $0x468] sm:$0xff]
                  %401 = vst [vmem:[%s305 + $0x2f0] sm:$0xff] %v400
                  %v402 = vld [vmem:[%s304 + $0x480] sm:$0xff]
                  %403 = vst [vmem:[%s305 + $0x300] sm:$0xff] %v402
                  %v404 = vld [vmem:[%s304 + $0x498] sm:$0xff]
                  %405 = vst [vmem:[%s305 + $0x310] sm:$0xff] %v404
                  %v406 = vld [vmem:[%s304 + $0x4b0] sm:$0xff]
                  %407 = vst [vmem:[%s305 + $0x320] sm:$0xff] %v406
                  %v408 = vld [vmem:[%s304 + $0x4c8] sm:$0xff]
                  %409 = vst [vmem:[%s305 + $0x330] sm:$0xff] %v408
                  %v410 = vld [vmem:[%s304 + $0x4e0] sm:$0xff]
                  %411 = vst [vmem:[%s305 + $0x340] sm:$0xff] %v410
                  %v412 = vld [vmem:[%s304 + $0x4f8] sm:$0xff]
                  %413 = vst [vmem:[%s305 + $0x350] sm:$0xff] %v412
                  %v414 = vld [vmem:[%s304 + $0x510] sm:$0xff]
                  %415 = vst [vmem:[%s305 + $0x360] sm:$0xff] %v414
                  %v416 = vld [vmem:[%s304 + $0x528] sm:$0xff]
                  %417 = vst [vmem:[%s305 + $0x370] sm:$0xff] %v416
                  %v418 = vld [vmem:[%s304 + $0x540] sm:$0xff]
                  %419 = vst [vmem:[%s305 + $0x380] sm:$0xff] %v418
                  %v420 = vld [vmem:[%s304 + $0x558] sm:$0xff]
                  %421 = vst [vmem:[%s305 + $0x390] sm:$0xff] %v420
                  %v422 = vld [vmem:[%s304 + $0x570] sm:$0xff]
                  %423 = vst [vmem:[%s305 + $0x3a0] sm:$0xff] %v422
                  %v424 = vld [vmem:[%s304 + $0x588] sm:$0xff]
                  %425 = vst [vmem:[%s305 + $0x3b0] sm:$0xff] %v424
                  %v426 = vld [vmem:[%s304 + $0x5a0] sm:$0xff]
                  %427 = vst [vmem:[%s305 + $0x3c0] sm:$0xff] %v426
                  %v428 = vld [vmem:[%s304 + $0x5b8] sm:$0xff]
                  %429 = vst [vmem:[%s305 + $0x3d0] sm:$0xff] %v428
                  %v430 = vld [vmem:[%s304 + $0x5d0] sm:$0xff]
                  %431 = vst [vmem:[%s305 + $0x3e0] sm:$0xff] %v430
                  %v432 = vld [vmem:[%s304 + $0x5e8] sm:$0xff]
                  %433 = vst [vmem:[%s305 + $0x3f0] sm:$0xff] %v432
                  %s434 = sadd.s32 1, %s303
                  %p435 = scmp.ge.s32.totalorder %s434, %s136
                  %s436 = scalar_select %p435, 0, %s434
                  %s437 = smul.u32 %s436, 8
                  %s438 = smul.u32 %s436, 8
                  %s439 = scalar_lea.vmem %s142, %s437
                  %s440 = scalar_lea.vmem %s132, %s438 [#allocation2]
                $region48: #{tpu_custom_call.1} parent=42 // loop_footer
                  %s300 = sadd.s32 %s298, 1
                $region49: #{tpu_custom_call.1} parent=42 // loop_footer_branch
                  %297 = sbr.rel target = $region45
                $region50: #{tpu_custom_call.1} parent=42 // loop_exit
                  _
              $region43: #{tpu_custom_call.1} parent=27 // pred_fallthru
                _
              // Predicated region
              $region51: #{tpu_custom_call.1} parent=27 // pred_check
                _
              $region52: #{tpu_custom_call.1} parent=27 // pred_check_branch
                %442 = sbr.rel target = $region54
              $region53: #{tpu_custom_call.1} parent=27 // pred_region
                _
              $region54: #{tpu_custom_call.1} parent=27 // pred_fallthru
                _
            $region28: #{tpu_custom_call.1} parent=23 // pred_fallthru
              _
            // Predicated region
            $region29: #{tpu_custom_call.1} parent=23 // pred_check
              _
            $region30: #{tpu_custom_call.1} parent=23 // pred_check_branch
              %149 = sbr.rel target = $region32
            $region31: #{tpu_custom_call.1} parent=23 // pred_region
              // While loop
              $region33: #{tpu_custom_call.1} parent=31 // loop_pre_header
                _
              $region34: #{tpu_custom_call.1} parent=31 // loop_header
                %s152 = sphi 0, %s154
                %p153 = scmp.ge.s32.totalorder %s152, %s136
                %s157 = sphi 0, %s290
                %s158 = sphi %s142, %s293
                %s159 = sphi %s132, %s294
              $region35: #{tpu_custom_call.1} parent=31 // loop_header_branch
                %156 = sbr.rel (%p153) target = $region39
              $region36: #{tpu_custom_call.1} parent=31 // loop_body
                %v160 = vld [vmem:[%s158] sm:$0xff]
                %161 = vst [vmem:[%s159] sm:$0xff] %v160
                %v162 = vld [vmem:[%s158 + $0x18] sm:$0xff]
                %163 = vst [vmem:[%s159 + $0x10] sm:$0xff] %v162
                %v164 = vld [vmem:[%s158 + $0x30] sm:$0xff]
                %165 = vst [vmem:[%s159 + $0x20] sm:$0xff] %v164
                %v166 = vld [vmem:[%s158 + $0x48] sm:$0xff]
                %167 = vst [vmem:[%s159 + $0x30] sm:$0xff] %v166
                %v168 = vld [vmem:[%s158 + $0x60] sm:$0xff]
                %169 = vst [vmem:[%s159 + $0x40] sm:$0xff] %v168
                %v170 = vld [vmem:[%s158 + $0x78] sm:$0xff]
                %171 = vst [vmem:[%s159 + $0x50] sm:$0xff] %v170
                %v172 = vld [vmem:[%s158 + $0x90] sm:$0xff]
                %173 = vst [vmem:[%s159 + $0x60] sm:$0xff] %v172
                %v174 = vld [vmem:[%s158 + $0xa8] sm:$0xff]
                %175 = vst [vmem:[%s159 + $0x70] sm:$0xff] %v174
                %v176 = vld [vmem:[%s158 + $0xc0] sm:$0xff]
                %177 = vst [vmem:[%s159 + $0x80] sm:$0xff] %v176
                %v178 = vld [vmem:[%s158 + $0xd8] sm:$0xff]
                %179 = vst [vmem:[%s159 + $0x90] sm:$0xff] %v178
                %v180 = vld [vmem:[%s158 + $0xf0] sm:$0xff]
                %181 = vst [vmem:[%s159 + $0xa0] sm:$0xff] %v180
                %v182 = vld [vmem:[%s158 + $0x108] sm:$0xff]
                %183 = vst [vmem:[%s159 + $0xb0] sm:$0xff] %v182
                %v184 = vld [vmem:[%s158 + $0x120] sm:$0xff]
                %185 = vst [vmem:[%s159 + $0xc0] sm:$0xff] %v184
                %v186 = vld [vmem:[%s158 + $0x138] sm:$0xff]
                %187 = vst [vmem:[%s159 + $0xd0] sm:$0xff] %v186
                %v188 = vld [vmem:[%s158 + $0x150] sm:$0xff]
                %189 = vst [vmem:[%s159 + $0xe0] sm:$0xff] %v188
                %v190 = vld [vmem:[%s158 + $0x168] sm:$0xff]
                %191 = vst [vmem:[%s159 + $0xf0] sm:$0xff] %v190
                %v192 = vld [vmem:[%s158 + $0x180] sm:$0xff]
                %193 = vst [vmem:[%s159 + $0x100] sm:$0xff] %v192
                %v194 = vld [vmem:[%s158 + $0x198] sm:$0xff]
                %195 = vst [vmem:[%s159 + $0x110] sm:$0xff] %v194
                %v196 = vld [vmem:[%s158 + $0x1b0] sm:$0xff]
                %197 = vst [vmem:[%s159 + $0x120] sm:$0xff] %v196
                %v198 = vld [vmem:[%s158 + $0x1c8] sm:$0xff]
                %199 = vst [vmem:[%s159 + $0x130] sm:$0xff] %v198
                %v200 = vld [vmem:[%s158 + $0x1e0] sm:$0xff]
                %201 = vst [vmem:[%s159 + $0x140] sm:$0xff] %v200
                %v202 = vld [vmem:[%s158 + $0x1f8] sm:$0xff]
                %203 = vst [vmem:[%s159 + $0x150] sm:$0xff] %v202
                %v204 = vld [vmem:[%s158 + $0x210] sm:$0xff]
                %205 = vst [vmem:[%s159 + $0x160] sm:$0xff] %v204
                %v206 = vld [vmem:[%s158 + $0x228] sm:$0xff]
                %207 = vst [vmem:[%s159 + $0x170] sm:$0xff] %v206
                %v208 = vld [vmem:[%s158 + $0x240] sm:$0xff]
                %209 = vst [vmem:[%s159 + $0x180] sm:$0xff] %v208
                %v210 = vld [vmem:[%s158 + $0x258] sm:$0xff]
                %211 = vst [vmem:[%s159 + $0x190] sm:$0xff] %v210
                %v212 = vld [vmem:[%s158 + $0x270] sm:$0xff]
                %213 = vst [vmem:[%s159 + $0x1a0] sm:$0xff] %v212
                %v214 = vld [vmem:[%s158 + $0x288] sm:$0xff]
                %215 = vst [vmem:[%s159 + $0x1b0] sm:$0xff] %v214
                %v216 = vld [vmem:[%s158 + $0x2a0] sm:$0xff]
                %217 = vst [vmem:[%s159 + $0x1c0] sm:$0xff] %v216
                %v218 = vld [vmem:[%s158 + $0x2b8] sm:$0xff]
                %219 = vst [vmem:[%s159 + $0x1d0] sm:$0xff] %v218
                %v220 = vld [vmem:[%s158 + $0x2d0] sm:$0xff]
                %221 = vst [vmem:[%s159 + $0x1e0] sm:$0xff] %v220
                %v222 = vld [vmem:[%s158 + $0x2e8] sm:$0xff]
                %223 = vst [vmem:[%s159 + $0x1f0] sm:$0xff] %v222
                %v224 = vld [vmem:[%s158 + $0x300] sm:$0xff]
                %225 = vst [vmem:[%s159 + $0x200] sm:$0xff] %v224
                %v226 = vld [vmem:[%s158 + $0x318] sm:$0xff]
                %227 = vst [vmem:[%s159 + $0x210] sm:$0xff] %v226
                %v228 = vld [vmem:[%s158 + $0x330] sm:$0xff]
                %229 = vst [vmem:[%s159 + $0x220] sm:$0xff] %v228
                %v230 = vld [vmem:[%s158 + $0x348] sm:$0xff]
                %231 = vst [vmem:[%s159 + $0x230] sm:$0xff] %v230
                %v232 = vld [vmem:[%s158 + $0x360] sm:$0xff]
                %233 = vst [vmem:[%s159 + $0x240] sm:$0xff] %v232
                %v234 = vld [vmem:[%s158 + $0x378] sm:$0xff]
                %235 = vst [vmem:[%s159 + $0x250] sm:$0xff] %v234
                %v236 = vld [vmem:[%s158 + $0x390] sm:$0xff]
                %237 = vst [vmem:[%s159 + $0x260] sm:$0xff] %v236
                %v238 = vld [vmem:[%s158 + $0x3a8] sm:$0xff]
                %239 = vst [vmem:[%s159 + $0x270] sm:$0xff] %v238
                %v240 = vld [vmem:[%s158 + $0x3c0] sm:$0xff]
                %241 = vst [vmem:[%s159 + $0x280] sm:$0xff] %v240
                %v242 = vld [vmem:[%s158 + $0x3d8] sm:$0xff]
                %243 = vst [vmem:[%s159 + $0x290] sm:$0xff] %v242
                %v244 = vld [vmem:[%s158 + $0x3f0] sm:$0xff]
                %245 = vst [vmem:[%s159 + $0x2a0] sm:$0xff] %v244
                %v246 = vld [vmem:[%s158 + $0x408] sm:$0xff]
                %247 = vst [vmem:[%s159 + $0x2b0] sm:$0xff] %v246
                %v248 = vld [vmem:[%s158 + $0x420] sm:$0xff]
                %249 = vst [vmem:[%s159 + $0x2c0] sm:$0xff] %v248
                %v250 = vld [vmem:[%s158 + $0x438] sm:$0xff]
                %251 = vst [vmem:[%s159 + $0x2d0] sm:$0xff] %v250
                %v252 = vld [vmem:[%s158 + $0x450] sm:$0xff]
                %253 = vst [vmem:[%s159 + $0x2e0] sm:$0xff] %v252
                %v254 = vld [vmem:[%s158 + $0x468] sm:$0xff]
                %255 = vst [vmem:[%s159 + $0x2f0] sm:$0xff] %v254
                %v256 = vld [vmem:[%s158 + $0x480] sm:$0xff]
                %257 = vst [vmem:[%s159 + $0x300] sm:$0xff] %v256
                %v258 = vld [vmem:[%s158 + $0x498] sm:$0xff]
                %259 = vst [vmem:[%s159 + $0x310] sm:$0xff] %v258
                %v260 = vld [vmem:[%s158 + $0x4b0] sm:$0xff]
                %261 = vst [vmem:[%s159 + $0x320] sm:$0xff] %v260
                %v262 = vld [vmem:[%s158 + $0x4c8] sm:$0xff]
                %263 = vst [vmem:[%s159 + $0x330] sm:$0xff] %v262
                %v264 = vld [vmem:[%s158 + $0x4e0] sm:$0xff]
                %265 = vst [vmem:[%s159 + $0x340] sm:$0xff] %v264
                %v266 = vld [vmem:[%s158 + $0x4f8] sm:$0xff]
                %267 = vst [vmem:[%s159 + $0x350] sm:$0xff] %v266
                %v268 = vld [vmem:[%s158 + $0x510] sm:$0xff]
                %269 = vst [vmem:[%s159 + $0x360] sm:$0xff] %v268
                %v270 = vld [vmem:[%s158 + $0x528] sm:$0xff]
                %271 = vst [vmem:[%s159 + $0x370] sm:$0xff] %v270
                %v272 = vld [vmem:[%s158 + $0x540] sm:$0xff]
                %273 = vst [vmem:[%s159 + $0x380] sm:$0xff] %v272
                %v274 = vld [vmem:[%s158 + $0x558] sm:$0xff]
                %275 = vst [vmem:[%s159 + $0x390] sm:$0xff] %v274
                %v276 = vld [vmem:[%s158 + $0x570] sm:$0xff]
                %277 = vst [vmem:[%s159 + $0x3a0] sm:$0xff] %v276
                %v278 = vld [vmem:[%s158 + $0x588] sm:$0xff]
                %279 = vst [vmem:[%s159 + $0x3b0] sm:$0xff] %v278
                %v280 = vld [vmem:[%s158 + $0x5a0] sm:$0xff]
                %281 = vst [vmem:[%s159 + $0x3c0] sm:$0xff] %v280
                %v282 = vld [vmem:[%s158 + $0x5b8] sm:$0xff]
                %283 = vst [vmem:[%s159 + $0x3d0] sm:$0xff] %v282
                %v284 = vld [vmem:[%s158 + $0x5d0] sm:$0xff]
                %285 = vst [vmem:[%s159 + $0x3e0] sm:$0xff] %v284
                %v286 = vld [vmem:[%s158 + $0x5e8] sm:$0xff]
                %287 = vst [vmem:[%s159 + $0x3f0] sm:$0xff] %v286
                %s288 = sadd.s32 1, %s157
                %p289 = scmp.ge.s32.totalorder %s288, %s136
                %s290 = scalar_select %p289, 0, %s288
                %s291 = smul.u32 %s290, 8
                %s292 = smul.u32 %s290, 8
                %s293 = scalar_lea.vmem %s142, %s291
                %s294 = scalar_lea.vmem %s132, %s292 [#allocation2]
              $region37: #{tpu_custom_call.1} parent=31 // loop_footer
                %s154 = sadd.s32 %s152, 1
              $region38: #{tpu_custom_call.1} parent=31 // loop_footer_branch
                %151 = sbr.rel target = $region34
              $region39: #{tpu_custom_call.1} parent=31 // loop_exit
                _
            $region32: #{tpu_custom_call.1} parent=23 // pred_fallthru
              _
          $region24: #{tpu_custom_call.1} parent=19 // pred_fallthru
            _
          %443 = vnop
        $region20: #{tpu_custom_call.1} parent=15 // pred_fallthru
          _
        // Predicated region
        $region55: #{tpu_custom_call.1} parent=15 // pred_check
          %p444 = pneg %p73
        $region56: #{tpu_custom_call.1} parent=15 // pred_check_branch
          %446 = sbr.rel (%p444) target = $region58
        $region57: #{tpu_custom_call.1} parent=15 // pred_region
          %s447 = smul.u32 2, %s19
          %s448 = ssub.s32 3, %s447
          %p449 = scmp.lt.s32.totalorder %s448, 2
          %s450 = scalar_select %p449, %s448, 2
          %s451 = smul.u32 128, %s450
          %p452 = scmp.lt.s32.totalorder %s18, 1
          %s453 = scalar_select %p452, %s18, 1
          %p454 = scmp.lt.s32.totalorder %s447, 2
          %s455 = scalar_select %p454, %s447, 2
          %s456 = smul.addr %s453, 3
          %s457 = sadd.s32 %s455, %s456
          %s458 = smul.addr %s457, 8
          %s459 = scalar_lea.vmem %s1, %s458
          %s460 = smul.u32 2, %s19
          %s461 = ssub.s32 3, %s460
          %p462 = scmp.lt.s32.totalorder %s461, 2
          %s463 = scalar_select %p462, %s461, 2
          %s464 = smul.u32 128, %s463
        $region58: #{tpu_custom_call.1} parent=15 // pred_fallthru
          _
      $region16: #{tpu_custom_call.1} parent=5 // pred_fallthru
        _
      %p465 = scmp.le.s32.totalorder 1, %s11
      %p466 = scmp.lt.s32.totalorder %s11, 5
      %p467 = pnand %p465, %p466
      %p468 = pneg %p467
      // Predicated region
      $region59: #{tpu_custom_call.1} parent=5 // pred_check
        _
      $region60: #{tpu_custom_call.1} parent=5 // pred_check_branch
        %470 = sbr.rel (%p467) target = $region62
      $region61: #{tpu_custom_call.1} parent=5 // pred_region
        %s471 = ssub.s32 %s11, 1
        %s472 = sand.u32 %s38, 1
        %s473 = sand.u32 %s38, 1
        %s474 = smul.addr %s473, 1024
        %s475 = scalar_lea.vmem [#allocation2], %s474
        // Predicated region
        $region63: #{tpu_custom_call.1} parent=61 // pred_check
          %p476 = pneg %p51
        $region64: #{tpu_custom_call.1} parent=61 // pred_check_branch
          %478 = sbr.rel (%p476) target = $region66
        $region65: #{tpu_custom_call.1} parent=61 // pred_region
          _
        $region66: #{tpu_custom_call.1} parent=61 // pred_fallthru
          _
        %s479 = sand.u32 %s38, 1
        %s480 = sand.u32 %s38, 1
        %s481 = smul.addr %s480, 1024
        %s482 = scalar_lea.vmem [#allocation2], %s481
        %p483 = pneg %p51
        %p484 = pneg %p48
        %s485 = smul.u32 2, %s21
        %s486 = ssub.s32 3, %s485
        %p487 = scmp.lt.s32.totalorder %s486, 2
        %s488 = scalar_select %p487, %s486, 2
        %s489 = smul.u32 128, %s488
        %p490 = scmp.lt.s32.totalorder %s20, 1
        %s491 = scalar_select %p490, %s20, 1
        %p492 = scmp.lt.s32.totalorder %s485, 2
        %s493 = scalar_select %p492, %s485, 2
        %s494 = smul.addr %s491, 3
        %s495 = sadd.s32 %s493, %s494
        %s496 = smul.addr %s495, 8
        %s497 = scalar_lea.vmem %s1, %s496
        %p498 = pneg %p79
        %p499 = pneg %p76
        %p500 = pneg %p107
        %p501 = pneg %p104
        %s502 = sand.u32 %s94, 1
        %s503 = scalar_lea.sflag [#allocation4], %s502
        %s504 = sand.u32 %s94, 1
        %s505 = smul.addr %s504, 8
        %s506 = scalar_lea.vmem [#allocation3], %s505
        %s507 = smul.u32 2, %s21
        %s508 = ssub.s32 3, %s507
        %p509 = scmp.lt.s32.totalorder %s508, 2
        %s510 = scalar_select %p509, %s508, 2
        %s511 = smul.u32 8192, %s510
        %s512 = smul.u32 2, %s21
        %s513 = ssub.s32 3, %s512
        %p514 = scmp.lt.s32.totalorder %s513, 2
        %s515 = scalar_select %p514, %s513, 2
        %s516 = smul.u32 128, %s515
        %p517 = scmp.lt.s32.totalorder %s20, 1
        %s518 = scalar_select %p517, %s20, 1
        %p519 = scmp.lt.s32.totalorder %s512, 2
        %s520 = scalar_select %p519, %s512, 2
        %s521 = smul.addr %s518, 3
        %s522 = sadd.s32 %s520, %s521
        %s523 = smul.addr %s522, 8
        %s524 = scalar_lea.vmem %s1, %s523
        %s525 = smul.u32 2, %s21
        %s526 = ssub.s32 3, %s525
        %p527 = scmp.lt.s32.totalorder %s526, 2
        %s528 = scalar_select %p527, %s526, 2
        %s529 = smul.u32 128, %s528
        %s530 = smul.u32 %s21, 16
        loop: start=0, step=1, limit=2
        $region67: #{tpu_custom_call.1} parent=61 // loop_pre_header
          _
        $region68: #{tpu_custom_call.1} parent=61 // loop_header
          %s532 = sphi 0, %s536
          %p533 = scmp.ge.s32.totalorder %s532, 2
          %v537 = vphi 0.0, %v1652
        $region69: #{tpu_custom_call.1} parent=61 // loop_header_branch
          %535 = sbr.rel (%p533) target = $region73
        $region70: #{tpu_custom_call.1} parent=61 // loop_body
          %s538 = smul.u32 %s532, 8
          %s539 = scalar_lea.vmem %s524, %s538
          %v540 = vld [vmem:[%s539] sm:$0xff]
          %vm541 = vcmp.gt.f32.partialorder %v540, 0.0
          %vm542 = vcmp.lt.f32.partialorder %v540, 64.0
          %vm543 = vmand %vm541, %vm542
          %v544 = vsel %vm543, 1, 0
          %v545 = vcvt.s32.f32 %v544
          %v546 = vmul.f32 %v540, %v545
          %vm547 = vcmp.gt.f32.partialorder %v546, 0.0
          %vm548 = vcmp.lt.f32.partialorder %v546, 63.0
          %vm549 = vmand %vm547, %vm548
          %v550 = vsel %vm549, 1, 0
          %v551 = vcvt.s32.f32 %v550
          %v552 = vmul.f32 %v546, %v551
          %s553 = scalar_lea.vmem %s475, %s538 [#allocation2]
          %v554 = vld [vmem:[%s553] sm:$0xff]
          %s555 = sadd.s32 %s538, 16
          %s556 = scalar_lea.vmem %s475, %s555 [#allocation2]
          %v557 = vld [vmem:[%s556] sm:$0xff]
          %v558 = vmax.f32 %v554, %v557
          %s559 = sadd.s32 %s538, 32
          %s560 = scalar_lea.vmem %s475, %s559 [#allocation2]
          %v561 = vld [vmem:[%s560] sm:$0xff]
          %v562 = vmax.f32 %v558, %v561
          %s563 = sadd.s32 %s538, 48
          %s564 = scalar_lea.vmem %s475, %s563 [#allocation2]
          %v565 = vld [vmem:[%s564] sm:$0xff]
          %v566 = vmax.f32 %v562, %v565
          %s567 = sadd.s32 %s538, 64
          %s568 = scalar_lea.vmem %s475, %s567 [#allocation2]
          %v569 = vld [vmem:[%s568] sm:$0xff]
          %v570 = vmax.f32 %v566, %v569
          %s571 = sadd.s32 %s538, 80
          %s572 = scalar_lea.vmem %s475, %s571 [#allocation2]
          %v573 = vld [vmem:[%s572] sm:$0xff]
          %v574 = vmax.f32 %v570, %v573
          %s575 = sadd.s32 %s538, 96
          %s576 = scalar_lea.vmem %s475, %s575 [#allocation2]
          %v577 = vld [vmem:[%s576] sm:$0xff]
          %v578 = vmax.f32 %v574, %v577
          %s579 = sadd.s32 %s538, 112
          %s580 = scalar_lea.vmem %s475, %s579 [#allocation2]
          %v581 = vld [vmem:[%s580] sm:$0xff]
          %v582 = vmax.f32 %v578, %v581
          %s583 = sadd.s32 %s538, 128
          %s584 = scalar_lea.vmem %s475, %s583 [#allocation2]
          %v585 = vld [vmem:[%s584] sm:$0xff]
          %v586 = vmax.f32 %v582, %v585
          %s587 = sadd.s32 %s538, 144
          %s588 = scalar_lea.vmem %s475, %s587 [#allocation2]
          %v589 = vld [vmem:[%s588] sm:$0xff]
          %v590 = vmax.f32 %v586, %v589
          %s591 = sadd.s32 %s538, 160
          %s592 = scalar_lea.vmem %s475, %s591 [#allocation2]
          %v593 = vld [vmem:[%s592] sm:$0xff]
          %v594 = vmax.f32 %v590, %v593
          %s595 = sadd.s32 %s538, 176
          %s596 = scalar_lea.vmem %s475, %s595 [#allocation2]
          %v597 = vld [vmem:[%s596] sm:$0xff]
          %v598 = vmax.f32 %v594, %v597
          %s599 = sadd.s32 %s538, 192
          %s600 = scalar_lea.vmem %s475, %s599 [#allocation2]
          %v601 = vld [vmem:[%s600] sm:$0xff]
          %v602 = vmax.f32 %v598, %v601
          %s603 = sadd.s32 %s538, 208
          %s604 = scalar_lea.vmem %s475, %s603 [#allocation2]
          %v605 = vld [vmem:[%s604] sm:$0xff]
          %v606 = vmax.f32 %v602, %v605
          %s607 = sadd.s32 %s538, 224
          %s608 = scalar_lea.vmem %s475, %s607 [#allocation2]
          %v609 = vld [vmem:[%s608] sm:$0xff]
          %v610 = vmax.f32 %v606, %v609
          %s611 = sadd.s32 %s538, 240
          %s612 = scalar_lea.vmem %s475, %s611 [#allocation2]
          %v613 = vld [vmem:[%s612] sm:$0xff]
          %v614 = vmax.f32 %v610, %v613
          %s615 = sadd.s32 %s538, 256
          %s616 = scalar_lea.vmem %s475, %s615 [#allocation2]
          %v617 = vld [vmem:[%s616] sm:$0xff]
          %v618 = vmax.f32 %v614, %v617
          %s619 = sadd.s32 %s538, 272
          %s620 = scalar_lea.vmem %s475, %s619 [#allocation2]
          %v621 = vld [vmem:[%s620] sm:$0xff]
          %v622 = vmax.f32 %v618, %v621
          %s623 = sadd.s32 %s538, 288
          %s624 = scalar_lea.vmem %s475, %s623 [#allocation2]
          %v625 = vld [vmem:[%s624] sm:$0xff]
          %v626 = vmax.f32 %v622, %v625
          %s627 = sadd.s32 %s538, 304
          %s628 = scalar_lea.vmem %s475, %s627 [#allocation2]
          %v629 = vld [vmem:[%s628] sm:$0xff]
          %v630 = vmax.f32 %v626, %v629
          %s631 = sadd.s32 %s538, 320
          %s632 = scalar_lea.vmem %s475, %s631 [#allocation2]
          %v633 = vld [vmem:[%s632] sm:$0xff]
          %v634 = vmax.f32 %v630, %v633
          %s635 = sadd.s32 %s538, 336
          %s636 = scalar_lea.vmem %s475, %s635 [#allocation2]
          %v637 = vld [vmem:[%s636] sm:$0xff]
          %v638 = vmax.f32 %v634, %v637
          %s639 = sadd.s32 %s538, 352
          %s640 = scalar_lea.vmem %s475, %s639 [#allocation2]
          %v641 = vld [vmem:[%s640] sm:$0xff]
          %v642 = vmax.f32 %v638, %v641
          %s643 = sadd.s32 %s538, 368
          %s644 = scalar_lea.vmem %s475, %s643 [#allocation2]
          %v645 = vld [vmem:[%s644] sm:$0xff]
          %v646 = vmax.f32 %v642, %v645
          %s647 = sadd.s32 %s538, 384
          %s648 = scalar_lea.vmem %s475, %s647 [#allocation2]
          %v649 = vld [vmem:[%s648] sm:$0xff]
          %v650 = vmax.f32 %v646, %v649
          %s651 = sadd.s32 %s538, 400
          %s652 = scalar_lea.vmem %s475, %s651 [#allocation2]
          %v653 = vld [vmem:[%s652] sm:$0xff]
          %v654 = vmax.f32 %v650, %v653
          %s655 = sadd.s32 %s538, 416
          %s656 = scalar_lea.vmem %s475, %s655 [#allocation2]
          %v657 = vld [vmem:[%s656] sm:$0xff]
          %v658 = vmax.f32 %v654, %v657
          %s659 = sadd.s32 %s538, 432
          %s660 = scalar_lea.vmem %s475, %s659 [#allocation2]
          %v661 = vld [vmem:[%s660] sm:$0xff]
          %v662 = vmax.f32 %v658, %v661
          %s663 = sadd.s32 %s538, 448
          %s664 = scalar_lea.vmem %s475, %s663 [#allocation2]
          %v665 = vld [vmem:[%s664] sm:$0xff]
          %v666 = vmax.f32 %v662, %v665
          %s667 = sadd.s32 %s538, 464
          %s668 = scalar_lea.vmem %s475, %s667 [#allocation2]
          %v669 = vld [vmem:[%s668] sm:$0xff]
          %v670 = vmax.f32 %v666, %v669
          %s671 = sadd.s32 %s538, 480
          %s672 = scalar_lea.vmem %s475, %s671 [#allocation2]
          %v673 = vld [vmem:[%s672] sm:$0xff]
          %v674 = vmax.f32 %v670, %v673
          %s675 = sadd.s32 %s538, 496
          %s676 = scalar_lea.vmem %s475, %s675 [#allocation2]
          %v677 = vld [vmem:[%s676] sm:$0xff]
          %v678 = vmax.f32 %v674, %v677
          %s679 = sadd.s32 %s538, 512
          %s680 = scalar_lea.vmem %s475, %s679 [#allocation2]
          %v681 = vld [vmem:[%s680] sm:$0xff]
          %v682 = vmax.f32 %v678, %v681
          %s683 = sadd.s32 %s538, 528
          %s684 = scalar_lea.vmem %s475, %s683 [#allocation2]
          %v685 = vld [vmem:[%s684] sm:$0xff]
          %v686 = vmax.f32 %v682, %v685
          %s687 = sadd.s32 %s538, 544
          %s688 = scalar_lea.vmem %s475, %s687 [#allocation2]
          %v689 = vld [vmem:[%s688] sm:$0xff]
          %v690 = vmax.f32 %v686, %v689
          %s691 = sadd.s32 %s538, 560
          %s692 = scalar_lea.vmem %s475, %s691 [#allocation2]
          %v693 = vld [vmem:[%s692] sm:$0xff]
          %v694 = vmax.f32 %v690, %v693
          %s695 = sadd.s32 %s538, 576
          %s696 = scalar_lea.vmem %s475, %s695 [#allocation2]
          %v697 = vld [vmem:[%s696] sm:$0xff]
          %v698 = vmax.f32 %v694, %v697
          %s699 = sadd.s32 %s538, 592
          %s700 = scalar_lea.vmem %s475, %s699 [#allocation2]
          %v701 = vld [vmem:[%s700] sm:$0xff]
          %v702 = vmax.f32 %v698, %v701
          %s703 = sadd.s32 %s538, 608
          %s704 = scalar_lea.vmem %s475, %s703 [#allocation2]
          %v705 = vld [vmem:[%s704] sm:$0xff]
          %v706 = vmax.f32 %v702, %v705
          %s707 = sadd.s32 %s538, 624
          %s708 = scalar_lea.vmem %s475, %s707 [#allocation2]
          %v709 = vld [vmem:[%s708] sm:$0xff]
          %v710 = vmax.f32 %v706, %v709
          %s711 = sadd.s32 %s538, 640
          %s712 = scalar_lea.vmem %s475, %s711 [#allocation2]
          %v713 = vld [vmem:[%s712] sm:$0xff]
          %v714 = vmax.f32 %v710, %v713
          %s715 = sadd.s32 %s538, 656
          %s716 = scalar_lea.vmem %s475, %s715 [#allocation2]
          %v717 = vld [vmem:[%s716] sm:$0xff]
          %v718 = vmax.f32 %v714, %v717
          %s719 = sadd.s32 %s538, 672
          %s720 = scalar_lea.vmem %s475, %s719 [#allocation2]
          %v721 = vld [vmem:[%s720] sm:$0xff]
          %v722 = vmax.f32 %v718, %v721
          %s723 = sadd.s32 %s538, 688
          %s724 = scalar_lea.vmem %s475, %s723 [#allocation2]
          %v725 = vld [vmem:[%s724] sm:$0xff]
          %v726 = vmax.f32 %v722, %v725
          %s727 = sadd.s32 %s538, 704
          %s728 = scalar_lea.vmem %s475, %s727 [#allocation2]
          %v729 = vld [vmem:[%s728] sm:$0xff]
          %v730 = vmax.f32 %v726, %v729
          %s731 = sadd.s32 %s538, 720
          %s732 = scalar_lea.vmem %s475, %s731 [#allocation2]
          %v733 = vld [vmem:[%s732] sm:$0xff]
          %v734 = vmax.f32 %v730, %v733
          %s735 = sadd.s32 %s538, 736
          %s736 = scalar_lea.vmem %s475, %s735 [#allocation2]
          %v737 = vld [vmem:[%s736] sm:$0xff]
          %v738 = vmax.f32 %v734, %v737
          %s739 = sadd.s32 %s538, 752
          %s740 = scalar_lea.vmem %s475, %s739 [#allocation2]
          %v741 = vld [vmem:[%s740] sm:$0xff]
          %v742 = vmax.f32 %v738, %v741
          %s743 = sadd.s32 %s538, 768
          %s744 = scalar_lea.vmem %s475, %s743 [#allocation2]
          %v745 = vld [vmem:[%s744] sm:$0xff]
          %v746 = vmax.f32 %v742, %v745
          %s747 = sadd.s32 %s538, 784
          %s748 = scalar_lea.vmem %s475, %s747 [#allocation2]
          %v749 = vld [vmem:[%s748] sm:$0xff]
          %v750 = vmax.f32 %v746, %v749
          %s751 = sadd.s32 %s538, 800
          %s752 = scalar_lea.vmem %s475, %s751 [#allocation2]
          %v753 = vld [vmem:[%s752] sm:$0xff]
          %v754 = vmax.f32 %v750, %v753
          %s755 = sadd.s32 %s538, 816
          %s756 = scalar_lea.vmem %s475, %s755 [#allocation2]
          %v757 = vld [vmem:[%s756] sm:$0xff]
          %v758 = vmax.f32 %v754, %v757
          %s759 = sadd.s32 %s538, 832
          %s760 = scalar_lea.vmem %s475, %s759 [#allocation2]
          %v761 = vld [vmem:[%s760] sm:$0xff]
          %v762 = vmax.f32 %v758, %v761
          %s763 = sadd.s32 %s538, 848
          %s764 = scalar_lea.vmem %s475, %s763 [#allocation2]
          %v765 = vld [vmem:[%s764] sm:$0xff]
          %v766 = vmax.f32 %v762, %v765
          %s767 = sadd.s32 %s538, 864
          %s768 = scalar_lea.vmem %s475, %s767 [#allocation2]
          %v769 = vld [vmem:[%s768] sm:$0xff]
          %v770 = vmax.f32 %v766, %v769
          %s771 = sadd.s32 %s538, 880
          %s772 = scalar_lea.vmem %s475, %s771 [#allocation2]
          %v773 = vld [vmem:[%s772] sm:$0xff]
          %v774 = vmax.f32 %v770, %v773
          %s775 = sadd.s32 %s538, 896
          %s776 = scalar_lea.vmem %s475, %s775 [#allocation2]
          %v777 = vld [vmem:[%s776] sm:$0xff]
          %v778 = vmax.f32 %v774, %v777
          %s779 = sadd.s32 %s538, 912
          %s780 = scalar_lea.vmem %s475, %s779 [#allocation2]
          %v781 = vld [vmem:[%s780] sm:$0xff]
          %v782 = vmax.f32 %v778, %v781
          %s783 = sadd.s32 %s538, 928
          %s784 = scalar_lea.vmem %s475, %s783 [#allocation2]
          %v785 = vld [vmem:[%s784] sm:$0xff]
          %v786 = vmax.f32 %v782, %v785
          %s787 = sadd.s32 %s538, 944
          %s788 = scalar_lea.vmem %s475, %s787 [#allocation2]
          %v789 = vld [vmem:[%s788] sm:$0xff]
          %v790 = vmax.f32 %v786, %v789
          %s791 = sadd.s32 %s538, 960
          %s792 = scalar_lea.vmem %s475, %s791 [#allocation2]
          %v793 = vld [vmem:[%s792] sm:$0xff]
          %v794 = vmax.f32 %v790, %v793
          %s795 = sadd.s32 %s538, 976
          %s796 = scalar_lea.vmem %s475, %s795 [#allocation2]
          %v797 = vld [vmem:[%s796] sm:$0xff]
          %v798 = vmax.f32 %v794, %v797
          %s799 = sadd.s32 %s538, 992
          %s800 = scalar_lea.vmem %s475, %s799 [#allocation2]
          %v801 = vld [vmem:[%s800] sm:$0xff]
          %v802 = vmax.f32 %v798, %v801
          %s803 = sadd.s32 %s538, 1008
          %s804 = scalar_lea.vmem %s475, %s803 [#allocation2]
          %v805 = vld [vmem:[%s804] sm:$0xff]
          %v806 = vmax.f32 %v802, %v805
          %v807 = vsub.f32 %v554, %v806
          %v808 = vmul.f32 %v807, 1.442695
          %v809 = vpow.pop %v808
          %v810 = vadd.f32 %v809, 0.0
          %v811 = vsub.f32 0.0, %v552
          %v812 = vand.u32 2147483647, %v811
          %v813 = vsub.f32 0.0, %v812
          %v814 = vmul.f32 %v813, 2.0
          %v815 = vmul.f32 %v814, 1.442695
          %v816 = vpow.pop %v815
          %v817 = vadd.f32 %v816, 0.0
          %v818 = vmul.f32 %v816, %v807
          %v819 = vadd.f32 %v818, 0.0
          %v820 = vsub.f32 %v557, %v806
          %v821 = vmul.f32 %v820, 1.442695
          %v822 = vpow.pop %v821
          %v823 = vadd.f32 %v810, %v822
          %v824 = vsub.f32 1.0, %v552
          %v825 = vand.u32 2147483647, %v824
          %v826 = vsub.f32 0.0, %v825
          %v827 = vmul.f32 %v826, 2.0
          %v828 = vmul.f32 %v827, 1.442695
          %v829 = vpow.pop %v828
          %v830 = vadd.f32 %v817, %v829
          %v831 = vmul.f32 %v829, %v820
          %v832 = vadd.f32 %v819, %v831
          %v833 = vsub.f32 %v561, %v806
          %v834 = vmul.f32 %v833, 1.442695
          %v835 = vpow.pop %v834
          %v836 = vadd.f32 %v823, %v835
          %v837 = vsub.f32 2.0, %v552
          %v838 = vand.u32 2147483647, %v837
          %v839 = vsub.f32 0.0, %v838
          %v840 = vmul.f32 %v839, 2.0
          %v841 = vmul.f32 %v840, 1.442695
          %v842 = vpow.pop %v841
          %v843 = vadd.f32 %v830, %v842
          %v844 = vmul.f32 %v842, %v833
          %v845 = vadd.f32 %v832, %v844
          %v846 = vsub.f32 %v565, %v806
          %v847 = vmul.f32 %v846, 1.442695
          %v848 = vpow.pop %v847
          %v849 = vadd.f32 %v836, %v848
          %v850 = vsub.f32 3.0, %v552
          %v851 = vand.u32 2147483647, %v850
          %v852 = vsub.f32 0.0, %v851
          %v853 = vmul.f32 %v852, 2.0
          %v854 = vmul.f32 %v853, 1.442695
          %v855 = vpow.pop %v854
          %v856 = vadd.f32 %v843, %v855
          %v857 = vmul.f32 %v855, %v846
          %v858 = vadd.f32 %v845, %v857
          %v859 = vsub.f32 %v569, %v806
          %v860 = vmul.f32 %v859, 1.442695
          %v861 = vpow.pop %v860
          %v862 = vadd.f32 %v849, %v861
          %v863 = vsub.f32 4.0, %v552
          %v864 = vand.u32 2147483647, %v863
          %v865 = vsub.f32 0.0, %v864
          %v866 = vmul.f32 %v865, 2.0
          %v867 = vmul.f32 %v866, 1.442695
          %v868 = vpow.pop %v867
          %v869 = vadd.f32 %v856, %v868
          %v870 = vmul.f32 %v868, %v859
          %v871 = vadd.f32 %v858, %v870
          %v872 = vsub.f32 %v573, %v806
          %v873 = vmul.f32 %v872, 1.442695
          %v874 = vpow.pop %v873
          %v875 = vadd.f32 %v862, %v874
          %v876 = vsub.f32 5.0, %v552
          %v877 = vand.u32 2147483647, %v876
          %v878 = vsub.f32 0.0, %v877
          %v879 = vmul.f32 %v878, 2.0
          %v880 = vmul.f32 %v879, 1.442695
          %v881 = vpow.pop %v880
          %v882 = vadd.f32 %v869, %v881
          %v883 = vmul.f32 %v881, %v872
          %v884 = vadd.f32 %v871, %v883
          %v885 = vsub.f32 %v577, %v806
          %v886 = vmul.f32 %v885, 1.442695
          %v887 = vpow.pop %v886
          %v888 = vadd.f32 %v875, %v887
          %v889 = vsub.f32 6.0, %v552
          %v890 = vand.u32 2147483647, %v889
          %v891 = vsub.f32 0.0, %v890
          %v892 = vmul.f32 %v891, 2.0
          %v893 = vmul.f32 %v892, 1.442695
          %v894 = vpow.pop %v893
          %v895 = vadd.f32 %v882, %v894
          %v896 = vmul.f32 %v894, %v885
          %v897 = vadd.f32 %v884, %v896
          %v898 = vsub.f32 %v581, %v806
          %v899 = vmul.f32 %v898, 1.442695
          %v900 = vpow.pop %v899
          %v901 = vadd.f32 %v888, %v900
          %v902 = vsub.f32 7.0, %v552
          %v903 = vand.u32 2147483647, %v902
          %v904 = vsub.f32 0.0, %v903
          %v905 = vmul.f32 %v904, 2.0
          %v906 = vmul.f32 %v905, 1.442695
          %v907 = vpow.pop %v906
          %v908 = vadd.f32 %v895, %v907
          %v909 = vmul.f32 %v907, %v898
          %v910 = vadd.f32 %v897, %v909
          %v911 = vsub.f32 %v585, %v806
          %v912 = vmul.f32 %v911, 1.442695
          %v913 = vpow.pop %v912
          %v914 = vadd.f32 %v901, %v913
          %v915 = vsub.f32 8.0, %v552
          %v916 = vand.u32 2147483647, %v915
          %v917 = vsub.f32 0.0, %v916
          %v918 = vmul.f32 %v917, 2.0
          %v919 = vmul.f32 %v918, 1.442695
          %v920 = vpow.pop %v919
          %v921 = vadd.f32 %v908, %v920
          %v922 = vmul.f32 %v920, %v911
          %v923 = vadd.f32 %v910, %v922
          %v924 = vsub.f32 %v589, %v806
          %v925 = vmul.f32 %v924, 1.442695
          %v926 = vpow.pop %v925
          %v927 = vadd.f32 %v914, %v926
          %v928 = vsub.f32 9.0, %v552
          %v929 = vand.u32 2147483647, %v928
          %v930 = vsub.f32 0.0, %v929
          %v931 = vmul.f32 %v930, 2.0
          %v932 = vmul.f32 %v931, 1.442695
          %v933 = vpow.pop %v932
          %v934 = vadd.f32 %v921, %v933
          %v935 = vmul.f32 %v933, %v924
          %v936 = vadd.f32 %v923, %v935
          %v937 = vsub.f32 %v593, %v806
          %v938 = vmul.f32 %v937, 1.442695
          %v939 = vpow.pop %v938
          %v940 = vadd.f32 %v927, %v939
          %v941 = vsub.f32 10.0, %v552
          %v942 = vand.u32 2147483647, %v941
          %v943 = vsub.f32 0.0, %v942
          %v944 = vmul.f32 %v943, 2.0
          %v945 = vmul.f32 %v944, 1.442695
          %v946 = vpow.pop %v945
          %v947 = vadd.f32 %v934, %v946
          %v948 = vmul.f32 %v946, %v937
          %v949 = vadd.f32 %v936, %v948
          %v950 = vsub.f32 %v597, %v806
          %v951 = vmul.f32 %v950, 1.442695
          %v952 = vpow.pop %v951
          %v953 = vadd.f32 %v940, %v952
          %v954 = vsub.f32 11.0, %v552
          %v955 = vand.u32 2147483647, %v954
          %v956 = vsub.f32 0.0, %v955
          %v957 = vmul.f32 %v956, 2.0
          %v958 = vmul.f32 %v957, 1.442695
          %v959 = vpow.pop %v958
          %v960 = vadd.f32 %v947, %v959
          %v961 = vmul.f32 %v959, %v950
          %v962 = vadd.f32 %v949, %v961
          %v963 = vsub.f32 %v601, %v806
          %v964 = vmul.f32 %v963, 1.442695
          %v965 = vpow.pop %v964
          %v966 = vadd.f32 %v953, %v965
          %v967 = vsub.f32 12.0, %v552
          %v968 = vand.u32 2147483647, %v967
          %v969 = vsub.f32 0.0, %v968
          %v970 = vmul.f32 %v969, 2.0
          %v971 = vmul.f32 %v970, 1.442695
          %v972 = vpow.pop %v971
          %v973 = vadd.f32 %v960, %v972
          %v974 = vmul.f32 %v972, %v963
          %v975 = vadd.f32 %v962, %v974
          %v976 = vsub.f32 %v605, %v806
          %v977 = vmul.f32 %v976, 1.442695
          %v978 = vpow.pop %v977
          %v979 = vadd.f32 %v966, %v978
          %v980 = vsub.f32 13.0, %v552
          %v981 = vand.u32 2147483647, %v980
          %v982 = vsub.f32 0.0, %v981
          %v983 = vmul.f32 %v982, 2.0
          %v984 = vmul.f32 %v983, 1.442695
          %v985 = vpow.pop %v984
          %v986 = vadd.f32 %v973, %v985
          %v987 = vmul.f32 %v985, %v976
          %v988 = vadd.f32 %v975, %v987
          %v989 = vsub.f32 %v609, %v806
          %v990 = vmul.f32 %v989, 1.442695
          %v991 = vpow.pop %v990
          %v992 = vadd.f32 %v979, %v991
          %v993 = vsub.f32 14.0, %v552
          %v994 = vand.u32 2147483647, %v993
          %v995 = vsub.f32 0.0, %v994
          %v996 = vmul.f32 %v995, 2.0
          %v997 = vmul.f32 %v996, 1.442695
          %v998 = vpow.pop %v997
          %v999 = vadd.f32 %v986, %v998
          %v1000 = vmul.f32 %v998, %v989
          %v1001 = vadd.f32 %v988, %v1000
          %v1002 = vsub.f32 %v613, %v806
          %v1003 = vmul.f32 %v1002, 1.442695
          %v1004 = vpow.pop %v1003
          %v1005 = vadd.f32 %v992, %v1004
          %v1006 = vsub.f32 15.0, %v552
          %v1007 = vand.u32 2147483647, %v1006
          %v1008 = vsub.f32 0.0, %v1007
          %v1009 = vmul.f32 %v1008, 2.0
          %v1010 = vmul.f32 %v1009, 1.442695
          %v1011 = vpow.pop %v1010
          %v1012 = vadd.f32 %v999, %v1011
          %v1013 = vmul.f32 %v1011, %v1002
          %v1014 = vadd.f32 %v1001, %v1013
          %v1015 = vsub.f32 %v617, %v806
          %v1016 = vmul.f32 %v1015, 1.442695
          %v1017 = vpow.pop %v1016
          %v1018 = vadd.f32 %v1005, %v1017
          %v1019 = vsub.f32 16.0, %v552
          %v1020 = vand.u32 2147483647, %v1019
          %v1021 = vsub.f32 0.0, %v1020
          %v1022 = vmul.f32 %v1021, 2.0
          %v1023 = vmul.f32 %v1022, 1.442695
          %v1024 = vpow.pop %v1023
          %v1025 = vadd.f32 %v1012, %v1024
          %v1026 = vmul.f32 %v1024, %v1015
          %v1027 = vadd.f32 %v1014, %v1026
          %v1028 = vsub.f32 %v621, %v806
          %v1029 = vmul.f32 %v1028, 1.442695
          %v1030 = vpow.pop %v1029
          %v1031 = vadd.f32 %v1018, %v1030
          %v1032 = vsub.f32 17.0, %v552
          %v1033 = vand.u32 2147483647, %v1032
          %v1034 = vsub.f32 0.0, %v1033
          %v1035 = vmul.f32 %v1034, 2.0
          %v1036 = vmul.f32 %v1035, 1.442695
          %v1037 = vpow.pop %v1036
          %v1038 = vadd.f32 %v1025, %v1037
          %v1039 = vmul.f32 %v1037, %v1028
          %v1040 = vadd.f32 %v1027, %v1039
          %v1041 = vsub.f32 %v625, %v806
          %v1042 = vmul.f32 %v1041, 1.442695
          %v1043 = vpow.pop %v1042
          %v1044 = vadd.f32 %v1031, %v1043
          %v1045 = vsub.f32 18.0, %v552
          %v1046 = vand.u32 2147483647, %v1045
          %v1047 = vsub.f32 0.0, %v1046
          %v1048 = vmul.f32 %v1047, 2.0
          %v1049 = vmul.f32 %v1048, 1.442695
          %v1050 = vpow.pop %v1049
          %v1051 = vadd.f32 %v1038, %v1050
          %v1052 = vmul.f32 %v1050, %v1041
          %v1053 = vadd.f32 %v1040, %v1052
          %v1054 = vsub.f32 %v629, %v806
          %v1055 = vmul.f32 %v1054, 1.442695
          %v1056 = vpow.pop %v1055
          %v1057 = vadd.f32 %v1044, %v1056
          %v1058 = vsub.f32 19.0, %v552
          %v1059 = vand.u32 2147483647, %v1058
          %v1060 = vsub.f32 0.0, %v1059
          %v1061 = vmul.f32 %v1060, 2.0
          %v1062 = vmul.f32 %v1061, 1.442695
          %v1063 = vpow.pop %v1062
          %v1064 = vadd.f32 %v1051, %v1063
          %v1065 = vmul.f32 %v1063, %v1054
          %v1066 = vadd.f32 %v1053, %v1065
          %v1067 = vsub.f32 %v633, %v806
          %v1068 = vmul.f32 %v1067, 1.442695
          %v1069 = vpow.pop %v1068
          %v1070 = vadd.f32 %v1057, %v1069
          %v1071 = vsub.f32 20.0, %v552
          %v1072 = vand.u32 2147483647, %v1071
          %v1073 = vsub.f32 0.0, %v1072
          %v1074 = vmul.f32 %v1073, 2.0
          %v1075 = vmul.f32 %v1074, 1.442695
          %v1076 = vpow.pop %v1075
          %v1077 = vadd.f32 %v1064, %v1076
          %v1078 = vmul.f32 %v1076, %v1067
          %v1079 = vadd.f32 %v1066, %v1078
          %v1080 = vsub.f32 %v637, %v806
          %v1081 = vmul.f32 %v1080, 1.442695
          %v1082 = vpow.pop %v1081
          %v1083 = vadd.f32 %v1070, %v1082
          %v1084 = vsub.f32 21.0, %v552
          %v1085 = vand.u32 2147483647, %v1084
          %v1086 = vsub.f32 0.0, %v1085
          %v1087 = vmul.f32 %v1086, 2.0
          %v1088 = vmul.f32 %v1087, 1.442695
          %v1089 = vpow.pop %v1088
          %v1090 = vadd.f32 %v1077, %v1089
          %v1091 = vmul.f32 %v1089, %v1080
          %v1092 = vadd.f32 %v1079, %v1091
          %v1093 = vsub.f32 %v641, %v806
          %v1094 = vmul.f32 %v1093, 1.442695
          %v1095 = vpow.pop %v1094
          %v1096 = vadd.f32 %v1083, %v1095
          %v1097 = vsub.f32 22.0, %v552
          %v1098 = vand.u32 2147483647, %v1097
          %v1099 = vsub.f32 0.0, %v1098
          %v1100 = vmul.f32 %v1099, 2.0
          %v1101 = vmul.f32 %v1100, 1.442695
          %v1102 = vpow.pop %v1101
          %v1103 = vadd.f32 %v1090, %v1102
          %v1104 = vmul.f32 %v1102, %v1093
          %v1105 = vadd.f32 %v1092, %v1104
          %v1106 = vsub.f32 %v645, %v806
          %v1107 = vmul.f32 %v1106, 1.442695
          %v1108 = vpow.pop %v1107
          %v1109 = vadd.f32 %v1096, %v1108
          %v1110 = vsub.f32 23.0, %v552
          %v1111 = vand.u32 2147483647, %v1110
          %v1112 = vsub.f32 0.0, %v1111
          %v1113 = vmul.f32 %v1112, 2.0
          %v1114 = vmul.f32 %v1113, 1.442695
          %v1115 = vpow.pop %v1114
          %v1116 = vadd.f32 %v1103, %v1115
          %v1117 = vmul.f32 %v1115, %v1106
          %v1118 = vadd.f32 %v1105, %v1117
          %v1119 = vsub.f32 %v649, %v806
          %v1120 = vmul.f32 %v1119, 1.442695
          %v1121 = vpow.pop %v1120
          %v1122 = vadd.f32 %v1109, %v1121
          %v1123 = vsub.f32 24.0, %v552
          %v1124 = vand.u32 2147483647, %v1123
          %v1125 = vsub.f32 0.0, %v1124
          %v1126 = vmul.f32 %v1125, 2.0
          %v1127 = vmul.f32 %v1126, 1.442695
          %v1128 = vpow.pop %v1127
          %v1129 = vadd.f32 %v1116, %v1128
          %v1130 = vmul.f32 %v1128, %v1119
          %v1131 = vadd.f32 %v1118, %v1130
          %v1132 = vsub.f32 %v653, %v806
          %v1133 = vmul.f32 %v1132, 1.442695
          %v1134 = vpow.pop %v1133
          %v1135 = vadd.f32 %v1122, %v1134
          %v1136 = vsub.f32 25.0, %v552
          %v1137 = vand.u32 2147483647, %v1136
          %v1138 = vsub.f32 0.0, %v1137
          %v1139 = vmul.f32 %v1138, 2.0
          %v1140 = vmul.f32 %v1139, 1.442695
          %v1141 = vpow.pop %v1140
          %v1142 = vadd.f32 %v1129, %v1141
          %v1143 = vmul.f32 %v1141, %v1132
          %v1144 = vadd.f32 %v1131, %v1143
          %v1145 = vsub.f32 %v657, %v806
          %v1146 = vmul.f32 %v1145, 1.442695
          %v1147 = vpow.pop %v1146
          %v1148 = vadd.f32 %v1135, %v1147
          %v1149 = vsub.f32 26.0, %v552
          %v1150 = vand.u32 2147483647, %v1149
          %v1151 = vsub.f32 0.0, %v1150
          %v1152 = vmul.f32 %v1151, 2.0
          %v1153 = vmul.f32 %v1152, 1.442695
          %v1154 = vpow.pop %v1153
          %v1155 = vadd.f32 %v1142, %v1154
          %v1156 = vmul.f32 %v1154, %v1145
          %v1157 = vadd.f32 %v1144, %v1156
          %v1158 = vsub.f32 %v661, %v806
          %v1159 = vmul.f32 %v1158, 1.442695
          %v1160 = vpow.pop %v1159
          %v1161 = vadd.f32 %v1148, %v1160
          %v1162 = vsub.f32 27.0, %v552
          %v1163 = vand.u32 2147483647, %v1162
          %v1164 = vsub.f32 0.0, %v1163
          %v1165 = vmul.f32 %v1164, 2.0
          %v1166 = vmul.f32 %v1165, 1.442695
          %v1167 = vpow.pop %v1166
          %v1168 = vadd.f32 %v1155, %v1167
          %v1169 = vmul.f32 %v1167, %v1158
          %v1170 = vadd.f32 %v1157, %v1169
          %v1171 = vsub.f32 %v665, %v806
          %v1172 = vmul.f32 %v1171, 1.442695
          %v1173 = vpow.pop %v1172
          %v1174 = vadd.f32 %v1161, %v1173
          %v1175 = vsub.f32 28.0, %v552
          %v1176 = vand.u32 2147483647, %v1175
          %v1177 = vsub.f32 0.0, %v1176
          %v1178 = vmul.f32 %v1177, 2.0
          %v1179 = vmul.f32 %v1178, 1.442695
          %v1180 = vpow.pop %v1179
          %v1181 = vadd.f32 %v1168, %v1180
          %v1182 = vmul.f32 %v1180, %v1171
          %v1183 = vadd.f32 %v1170, %v1182
          %v1184 = vsub.f32 %v669, %v806
          %v1185 = vmul.f32 %v1184, 1.442695
          %v1186 = vpow.pop %v1185
          %v1187 = vadd.f32 %v1174, %v1186
          %v1188 = vsub.f32 29.0, %v552
          %v1189 = vand.u32 2147483647, %v1188
          %v1190 = vsub.f32 0.0, %v1189
          %v1191 = vmul.f32 %v1190, 2.0
          %v1192 = vmul.f32 %v1191, 1.442695
          %v1193 = vpow.pop %v1192
          %v1194 = vadd.f32 %v1181, %v1193
          %v1195 = vmul.f32 %v1193, %v1184
          %v1196 = vadd.f32 %v1183, %v1195
          %v1197 = vsub.f32 %v673, %v806
          %v1198 = vmul.f32 %v1197, 1.442695
          %v1199 = vpow.pop %v1198
          %v1200 = vadd.f32 %v1187, %v1199
          %v1201 = vsub.f32 30.0, %v552
          %v1202 = vand.u32 2147483647, %v1201
          %v1203 = vsub.f32 0.0, %v1202
          %v1204 = vmul.f32 %v1203, 2.0
          %v1205 = vmul.f32 %v1204, 1.442695
          %v1206 = vpow.pop %v1205
          %v1207 = vadd.f32 %v1194, %v1206
          %v1208 = vmul.f32 %v1206, %v1197
          %v1209 = vadd.f32 %v1196, %v1208
          %v1210 = vsub.f32 %v677, %v806
          %v1211 = vmul.f32 %v1210, 1.442695
          %v1212 = vpow.pop %v1211
          %v1213 = vadd.f32 %v1200, %v1212
          %v1214 = vsub.f32 31.0, %v552
          %v1215 = vand.u32 2147483647, %v1214
          %v1216 = vsub.f32 0.0, %v1215
          %v1217 = vmul.f32 %v1216, 2.0
          %v1218 = vmul.f32 %v1217, 1.442695
          %v1219 = vpow.pop %v1218
          %v1220 = vadd.f32 %v1207, %v1219
          %v1221 = vmul.f32 %v1219, %v1210
          %v1222 = vadd.f32 %v1209, %v1221
          %v1223 = vsub.f32 %v681, %v806
          %v1224 = vmul.f32 %v1223, 1.442695
          %v1225 = vpow.pop %v1224
          %v1226 = vadd.f32 %v1213, %v1225
          %v1227 = vsub.f32 32.0, %v552
          %v1228 = vand.u32 2147483647, %v1227
          %v1229 = vsub.f32 0.0, %v1228
          %v1230 = vmul.f32 %v1229, 2.0
          %v1231 = vmul.f32 %v1230, 1.442695
          %v1232 = vpow.pop %v1231
          %v1233 = vadd.f32 %v1220, %v1232
          %v1234 = vmul.f32 %v1232, %v1223
          %v1235 = vadd.f32 %v1222, %v1234
          %v1236 = vsub.f32 %v685, %v806
          %v1237 = vmul.f32 %v1236, 1.442695
          %v1238 = vpow.pop %v1237
          %v1239 = vadd.f32 %v1226, %v1238
          %v1240 = vsub.f32 33.0, %v552
          %v1241 = vand.u32 2147483647, %v1240
          %v1242 = vsub.f32 0.0, %v1241
          %v1243 = vmul.f32 %v1242, 2.0
          %v1244 = vmul.f32 %v1243, 1.442695
          %v1245 = vpow.pop %v1244
          %v1246 = vadd.f32 %v1233, %v1245
          %v1247 = vmul.f32 %v1245, %v1236
          %v1248 = vadd.f32 %v1235, %v1247
          %v1249 = vsub.f32 %v689, %v806
          %v1250 = vmul.f32 %v1249, 1.442695
          %v1251 = vpow.pop %v1250
          %v1252 = vadd.f32 %v1239, %v1251
          %v1253 = vsub.f32 34.0, %v552
          %v1254 = vand.u32 2147483647, %v1253
          %v1255 = vsub.f32 0.0, %v1254
          %v1256 = vmul.f32 %v1255, 2.0
          %v1257 = vmul.f32 %v1256, 1.442695
          %v1258 = vpow.pop %v1257
          %v1259 = vadd.f32 %v1246, %v1258
          %v1260 = vmul.f32 %v1258, %v1249
          %v1261 = vadd.f32 %v1248, %v1260
          %v1262 = vsub.f32 %v693, %v806
          %v1263 = vmul.f32 %v1262, 1.442695
          %v1264 = vpow.pop %v1263
          %v1265 = vadd.f32 %v1252, %v1264
          %v1266 = vsub.f32 35.0, %v552
          %v1267 = vand.u32 2147483647, %v1266
          %v1268 = vsub.f32 0.0, %v1267
          %v1269 = vmul.f32 %v1268, 2.0
          %v1270 = vmul.f32 %v1269, 1.442695
          %v1271 = vpow.pop %v1270
          %v1272 = vadd.f32 %v1259, %v1271
          %v1273 = vmul.f32 %v1271, %v1262
          %v1274 = vadd.f32 %v1261, %v1273
          %v1275 = vsub.f32 %v697, %v806
          %v1276 = vmul.f32 %v1275, 1.442695
          %v1277 = vpow.pop %v1276
          %v1278 = vadd.f32 %v1265, %v1277
          %v1279 = vsub.f32 36.0, %v552
          %v1280 = vand.u32 2147483647, %v1279
          %v1281 = vsub.f32 0.0, %v1280
          %v1282 = vmul.f32 %v1281, 2.0
          %v1283 = vmul.f32 %v1282, 1.442695
          %v1284 = vpow.pop %v1283
          %v1285 = vadd.f32 %v1272, %v1284
          %v1286 = vmul.f32 %v1284, %v1275
          %v1287 = vadd.f32 %v1274, %v1286
          %v1288 = vsub.f32 %v701, %v806
          %v1289 = vmul.f32 %v1288, 1.442695
          %v1290 = vpow.pop %v1289
          %v1291 = vadd.f32 %v1278, %v1290
          %v1292 = vsub.f32 37.0, %v552
          %v1293 = vand.u32 2147483647, %v1292
          %v1294 = vsub.f32 0.0, %v1293
          %v1295 = vmul.f32 %v1294, 2.0
          %v1296 = vmul.f32 %v1295, 1.442695
          %v1297 = vpow.pop %v1296
          %v1298 = vadd.f32 %v1285, %v1297
          %v1299 = vmul.f32 %v1297, %v1288
          %v1300 = vadd.f32 %v1287, %v1299
          %v1301 = vsub.f32 %v705, %v806
          %v1302 = vmul.f32 %v1301, 1.442695
          %v1303 = vpow.pop %v1302
          %v1304 = vadd.f32 %v1291, %v1303
          %v1305 = vsub.f32 38.0, %v552
          %v1306 = vand.u32 2147483647, %v1305
          %v1307 = vsub.f32 0.0, %v1306
          %v1308 = vmul.f32 %v1307, 2.0
          %v1309 = vmul.f32 %v1308, 1.442695
          %v1310 = vpow.pop %v1309
          %v1311 = vadd.f32 %v1298, %v1310
          %v1312 = vmul.f32 %v1310, %v1301
          %v1313 = vadd.f32 %v1300, %v1312
          %v1314 = vsub.f32 %v709, %v806
          %v1315 = vmul.f32 %v1314, 1.442695
          %v1316 = vpow.pop %v1315
          %v1317 = vadd.f32 %v1304, %v1316
          %v1318 = vsub.f32 39.0, %v552
          %v1319 = vand.u32 2147483647, %v1318
          %v1320 = vsub.f32 0.0, %v1319
          %v1321 = vmul.f32 %v1320, 2.0
          %v1322 = vmul.f32 %v1321, 1.442695
          %v1323 = vpow.pop %v1322
          %v1324 = vadd.f32 %v1311, %v1323
          %v1325 = vmul.f32 %v1323, %v1314
          %v1326 = vadd.f32 %v1313, %v1325
          %v1327 = vsub.f32 %v713, %v806
          %v1328 = vmul.f32 %v1327, 1.442695
          %v1329 = vpow.pop %v1328
          %v1330 = vadd.f32 %v1317, %v1329
          %v1331 = vsub.f32 40.0, %v552
          %v1332 = vand.u32 2147483647, %v1331
          %v1333 = vsub.f32 0.0, %v1332
          %v1334 = vmul.f32 %v1333, 2.0
          %v1335 = vmul.f32 %v1334, 1.442695
          %v1336 = vpow.pop %v1335
          %v1337 = vadd.f32 %v1324, %v1336
          %v1338 = vmul.f32 %v1336, %v1327
          %v1339 = vadd.f32 %v1326, %v1338
          %v1340 = vsub.f32 %v717, %v806
          %v1341 = vmul.f32 %v1340, 1.442695
          %v1342 = vpow.pop %v1341
          %v1343 = vadd.f32 %v1330, %v1342
          %v1344 = vsub.f32 41.0, %v552
          %v1345 = vand.u32 2147483647, %v1344
          %v1346 = vsub.f32 0.0, %v1345
          %v1347 = vmul.f32 %v1346, 2.0
          %v1348 = vmul.f32 %v1347, 1.442695
          %v1349 = vpow.pop %v1348
          %v1350 = vadd.f32 %v1337, %v1349
          %v1351 = vmul.f32 %v1349, %v1340
          %v1352 = vadd.f32 %v1339, %v1351
          %v1353 = vsub.f32 %v721, %v806
          %v1354 = vmul.f32 %v1353, 1.442695
          %v1355 = vpow.pop %v1354
          %v1356 = vadd.f32 %v1343, %v1355
          %v1357 = vsub.f32 42.0, %v552
          %v1358 = vand.u32 2147483647, %v1357
          %v1359 = vsub.f32 0.0, %v1358
          %v1360 = vmul.f32 %v1359, 2.0
          %v1361 = vmul.f32 %v1360, 1.442695
          %v1362 = vpow.pop %v1361
          %v1363 = vadd.f32 %v1350, %v1362
          %v1364 = vmul.f32 %v1362, %v1353
          %v1365 = vadd.f32 %v1352, %v1364
          %v1366 = vsub.f32 %v725, %v806
          %v1367 = vmul.f32 %v1366, 1.442695
          %v1368 = vpow.pop %v1367
          %v1369 = vadd.f32 %v1356, %v1368
          %v1370 = vsub.f32 43.0, %v552
          %v1371 = vand.u32 2147483647, %v1370
          %v1372 = vsub.f32 0.0, %v1371
          %v1373 = vmul.f32 %v1372, 2.0
          %v1374 = vmul.f32 %v1373, 1.442695
          %v1375 = vpow.pop %v1374
          %v1376 = vadd.f32 %v1363, %v1375
          %v1377 = vmul.f32 %v1375, %v1366
          %v1378 = vadd.f32 %v1365, %v1377
          %v1379 = vsub.f32 %v729, %v806
          %v1380 = vmul.f32 %v1379, 1.442695
          %v1381 = vpow.pop %v1380
          %v1382 = vadd.f32 %v1369, %v1381
          %v1383 = vsub.f32 44.0, %v552
          %v1384 = vand.u32 2147483647, %v1383
          %v1385 = vsub.f32 0.0, %v1384
          %v1386 = vmul.f32 %v1385, 2.0
          %v1387 = vmul.f32 %v1386, 1.442695
          %v1388 = vpow.pop %v1387
          %v1389 = vadd.f32 %v1376, %v1388
          %v1390 = vmul.f32 %v1388, %v1379
          %v1391 = vadd.f32 %v1378, %v1390
          %v1392 = vsub.f32 %v733, %v806
          %v1393 = vmul.f32 %v1392, 1.442695
          %v1394 = vpow.pop %v1393
          %v1395 = vadd.f32 %v1382, %v1394
          %v1396 = vsub.f32 45.0, %v552
          %v1397 = vand.u32 2147483647, %v1396
          %v1398 = vsub.f32 0.0, %v1397
          %v1399 = vmul.f32 %v1398, 2.0
          %v1400 = vmul.f32 %v1399, 1.442695
          %v1401 = vpow.pop %v1400
          %v1402 = vadd.f32 %v1389, %v1401
          %v1403 = vmul.f32 %v1401, %v1392
          %v1404 = vadd.f32 %v1391, %v1403
          %v1405 = vsub.f32 %v737, %v806
          %v1406 = vmul.f32 %v1405, 1.442695
          %v1407 = vpow.pop %v1406
          %v1408 = vadd.f32 %v1395, %v1407
          %v1409 = vsub.f32 46.0, %v552
          %v1410 = vand.u32 2147483647, %v1409
          %v1411 = vsub.f32 0.0, %v1410
          %v1412 = vmul.f32 %v1411, 2.0
          %v1413 = vmul.f32 %v1412, 1.442695
          %v1414 = vpow.pop %v1413
          %v1415 = vadd.f32 %v1402, %v1414
          %v1416 = vmul.f32 %v1414, %v1405
          %v1417 = vadd.f32 %v1404, %v1416
          %v1418 = vsub.f32 %v741, %v806
          %v1419 = vmul.f32 %v1418, 1.442695
          %v1420 = vpow.pop %v1419
          %v1421 = vadd.f32 %v1408, %v1420
          %v1422 = vsub.f32 47.0, %v552
          %v1423 = vand.u32 2147483647, %v1422
          %v1424 = vsub.f32 0.0, %v1423
          %v1425 = vmul.f32 %v1424, 2.0
          %v1426 = vmul.f32 %v1425, 1.442695
          %v1427 = vpow.pop %v1426
          %v1428 = vadd.f32 %v1415, %v1427
          %v1429 = vmul.f32 %v1427, %v1418
          %v1430 = vadd.f32 %v1417, %v1429
          %v1431 = vsub.f32 %v745, %v806
          %v1432 = vmul.f32 %v1431, 1.442695
          %v1433 = vpow.pop %v1432
          %v1434 = vadd.f32 %v1421, %v1433
          %v1435 = vsub.f32 48.0, %v552
          %v1436 = vand.u32 2147483647, %v1435
          %v1437 = vsub.f32 0.0, %v1436
          %v1438 = vmul.f32 %v1437, 2.0
          %v1439 = vmul.f32 %v1438, 1.442695
          %v1440 = vpow.pop %v1439
          %v1441 = vadd.f32 %v1428, %v1440
          %v1442 = vmul.f32 %v1440, %v1431
          %v1443 = vadd.f32 %v1430, %v1442
          %v1444 = vsub.f32 %v749, %v806
          %v1445 = vmul.f32 %v1444, 1.442695
          %v1446 = vpow.pop %v1445
          %v1447 = vadd.f32 %v1434, %v1446
          %v1448 = vsub.f32 49.0, %v552
          %v1449 = vand.u32 2147483647, %v1448
          %v1450 = vsub.f32 0.0, %v1449
          %v1451 = vmul.f32 %v1450, 2.0
          %v1452 = vmul.f32 %v1451, 1.442695
          %v1453 = vpow.pop %v1452
          %v1454 = vadd.f32 %v1441, %v1453
          %v1455 = vmul.f32 %v1453, %v1444
          %v1456 = vadd.f32 %v1443, %v1455
          %v1457 = vsub.f32 %v753, %v806
          %v1458 = vmul.f32 %v1457, 1.442695
          %v1459 = vpow.pop %v1458
          %v1460 = vadd.f32 %v1447, %v1459
          %v1461 = vsub.f32 50.0, %v552
          %v1462 = vand.u32 2147483647, %v1461
          %v1463 = vsub.f32 0.0, %v1462
          %v1464 = vmul.f32 %v1463, 2.0
          %v1465 = vmul.f32 %v1464, 1.442695
          %v1466 = vpow.pop %v1465
          %v1467 = vadd.f32 %v1454, %v1466
          %v1468 = vmul.f32 %v1466, %v1457
          %v1469 = vadd.f32 %v1456, %v1468
          %v1470 = vsub.f32 %v757, %v806
          %v1471 = vmul.f32 %v1470, 1.442695
          %v1472 = vpow.pop %v1471
          %v1473 = vadd.f32 %v1460, %v1472
          %v1474 = vsub.f32 51.0, %v552
          %v1475 = vand.u32 2147483647, %v1474
          %v1476 = vsub.f32 0.0, %v1475
          %v1477 = vmul.f32 %v1476, 2.0
          %v1478 = vmul.f32 %v1477, 1.442695
          %v1479 = vpow.pop %v1478
          %v1480 = vadd.f32 %v1467, %v1479
          %v1481 = vmul.f32 %v1479, %v1470
          %v1482 = vadd.f32 %v1469, %v1481
          %v1483 = vsub.f32 %v761, %v806
          %v1484 = vmul.f32 %v1483, 1.442695
          %v1485 = vpow.pop %v1484
          %v1486 = vadd.f32 %v1473, %v1485
          %v1487 = vsub.f32 52.0, %v552
          %v1488 = vand.u32 2147483647, %v1487
          %v1489 = vsub.f32 0.0, %v1488
          %v1490 = vmul.f32 %v1489, 2.0
          %v1491 = vmul.f32 %v1490, 1.442695
          %v1492 = vpow.pop %v1491
          %v1493 = vadd.f32 %v1480, %v1492
          %v1494 = vmul.f32 %v1492, %v1483
          %v1495 = vadd.f32 %v1482, %v1494
          %v1496 = vsub.f32 %v765, %v806
          %v1497 = vmul.f32 %v1496, 1.442695
          %v1498 = vpow.pop %v1497
          %v1499 = vadd.f32 %v1486, %v1498
          %v1500 = vsub.f32 53.0, %v552
          %v1501 = vand.u32 2147483647, %v1500
          %v1502 = vsub.f32 0.0, %v1501
          %v1503 = vmul.f32 %v1502, 2.0
          %v1504 = vmul.f32 %v1503, 1.442695
          %v1505 = vpow.pop %v1504
          %v1506 = vadd.f32 %v1493, %v1505
          %v1507 = vmul.f32 %v1505, %v1496
          %v1508 = vadd.f32 %v1495, %v1507
          %v1509 = vsub.f32 %v769, %v806
          %v1510 = vmul.f32 %v1509, 1.442695
          %v1511 = vpow.pop %v1510
          %v1512 = vadd.f32 %v1499, %v1511
          %v1513 = vsub.f32 54.0, %v552
          %v1514 = vand.u32 2147483647, %v1513
          %v1515 = vsub.f32 0.0, %v1514
          %v1516 = vmul.f32 %v1515, 2.0
          %v1517 = vmul.f32 %v1516, 1.442695
          %v1518 = vpow.pop %v1517
          %v1519 = vadd.f32 %v1506, %v1518
          %v1520 = vmul.f32 %v1518, %v1509
          %v1521 = vadd.f32 %v1508, %v1520
          %v1522 = vsub.f32 %v773, %v806
          %v1523 = vmul.f32 %v1522, 1.442695
          %v1524 = vpow.pop %v1523
          %v1525 = vadd.f32 %v1512, %v1524
          %v1526 = vsub.f32 55.0, %v552
          %v1527 = vand.u32 2147483647, %v1526
          %v1528 = vsub.f32 0.0, %v1527
          %v1529 = vmul.f32 %v1528, 2.0
          %v1530 = vmul.f32 %v1529, 1.442695
          %v1531 = vpow.pop %v1530
          %v1532 = vadd.f32 %v1519, %v1531
          %v1533 = vmul.f32 %v1531, %v1522
          %v1534 = vadd.f32 %v1521, %v1533
          %v1535 = vsub.f32 %v777, %v806
          %v1536 = vmul.f32 %v1535, 1.442695
          %v1537 = vpow.pop %v1536
          %v1538 = vadd.f32 %v1525, %v1537
          %v1539 = vsub.f32 56.0, %v552
          %v1540 = vand.u32 2147483647, %v1539
          %v1541 = vsub.f32 0.0, %v1540
          %v1542 = vmul.f32 %v1541, 2.0
          %v1543 = vmul.f32 %v1542, 1.442695
          %v1544 = vpow.pop %v1543
          %v1545 = vadd.f32 %v1532, %v1544
          %v1546 = vmul.f32 %v1544, %v1535
          %v1547 = vadd.f32 %v1534, %v1546
          %v1548 = vsub.f32 %v781, %v806
          %v1549 = vmul.f32 %v1548, 1.442695
          %v1550 = vpow.pop %v1549
          %v1551 = vadd.f32 %v1538, %v1550
          %v1552 = vsub.f32 57.0, %v552
          %v1553 = vand.u32 2147483647, %v1552
          %v1554 = vsub.f32 0.0, %v1553
          %v1555 = vmul.f32 %v1554, 2.0
          %v1556 = vmul.f32 %v1555, 1.442695
          %v1557 = vpow.pop %v1556
          %v1558 = vadd.f32 %v1545, %v1557
          %v1559 = vmul.f32 %v1557, %v1548
          %v1560 = vadd.f32 %v1547, %v1559
          %v1561 = vsub.f32 %v785, %v806
          %v1562 = vmul.f32 %v1561, 1.442695
          %v1563 = vpow.pop %v1562
          %v1564 = vadd.f32 %v1551, %v1563
          %v1565 = vsub.f32 58.0, %v552
          %v1566 = vand.u32 2147483647, %v1565
          %v1567 = vsub.f32 0.0, %v1566
          %v1568 = vmul.f32 %v1567, 2.0
          %v1569 = vmul.f32 %v1568, 1.442695
          %v1570 = vpow.pop %v1569
          %v1571 = vadd.f32 %v1558, %v1570
          %v1572 = vmul.f32 %v1570, %v1561
          %v1573 = vadd.f32 %v1560, %v1572
          %v1574 = vsub.f32 %v789, %v806
          %v1575 = vmul.f32 %v1574, 1.442695
          %v1576 = vpow.pop %v1575
          %v1577 = vadd.f32 %v1564, %v1576
          %v1578 = vsub.f32 59.0, %v552
          %v1579 = vand.u32 2147483647, %v1578
          %v1580 = vsub.f32 0.0, %v1579
          %v1581 = vmul.f32 %v1580, 2.0
          %v1582 = vmul.f32 %v1581, 1.442695
          %v1583 = vpow.pop %v1582
          %v1584 = vadd.f32 %v1571, %v1583
          %v1585 = vmul.f32 %v1583, %v1574
          %v1586 = vadd.f32 %v1573, %v1585
          %v1587 = vsub.f32 %v793, %v806
          %v1588 = vmul.f32 %v1587, 1.442695
          %v1589 = vpow.pop %v1588
          %v1590 = vadd.f32 %v1577, %v1589
          %v1591 = vsub.f32 60.0, %v552
          %v1592 = vand.u32 2147483647, %v1591
          %v1593 = vsub.f32 0.0, %v1592
          %v1594 = vmul.f32 %v1593, 2.0
          %v1595 = vmul.f32 %v1594, 1.442695
          %v1596 = vpow.pop %v1595
          %v1597 = vadd.f32 %v1584, %v1596
          %v1598 = vmul.f32 %v1596, %v1587
          %v1599 = vadd.f32 %v1586, %v1598
          %v1600 = vsub.f32 %v797, %v806
          %v1601 = vmul.f32 %v1600, 1.442695
          %v1602 = vpow.pop %v1601
          %v1603 = vadd.f32 %v1590, %v1602
          %v1604 = vsub.f32 61.0, %v552
          %v1605 = vand.u32 2147483647, %v1604
          %v1606 = vsub.f32 0.0, %v1605
          %v1607 = vmul.f32 %v1606, 2.0
          %v1608 = vmul.f32 %v1607, 1.442695
          %v1609 = vpow.pop %v1608
          %v1610 = vadd.f32 %v1597, %v1609
          %v1611 = vmul.f32 %v1609, %v1600
          %v1612 = vadd.f32 %v1599, %v1611
          %v1613 = vsub.f32 %v801, %v806
          %v1614 = vmul.f32 %v1613, 1.442695
          %v1615 = vpow.pop %v1614
          %v1616 = vadd.f32 %v1603, %v1615
          %v1617 = vsub.f32 62.0, %v552
          %v1618 = vand.u32 2147483647, %v1617
          %v1619 = vsub.f32 0.0, %v1618
          %v1620 = vmul.f32 %v1619, 2.0
          %v1621 = vmul.f32 %v1620, 1.442695
          %v1622 = vpow.pop %v1621
          %v1623 = vadd.f32 %v1610, %v1622
          %v1624 = vmul.f32 %v1622, %v1613
          %v1625 = vadd.f32 %v1612, %v1624
          %v1626 = vsub.f32 %v805, %v806
          %v1627 = vmul.f32 %v1626, 1.442695
          %v1628 = vpow.pop %v1627
          %v1629 = vadd.f32 %v1616, %v1628
          %v1630 = vsub.f32 63.0, %v552
          %v1631 = vand.u32 2147483647, %v1630
          %v1632 = vsub.f32 0.0, %v1631
          %v1633 = vmul.f32 %v1632, 2.0
          %v1634 = vmul.f32 %v1633, 1.442695
          %v1635 = vpow.pop %v1634
          %v1636 = vadd.f32 %v1623, %v1635
          %v1637 = vmul.f32 %v1635, %v1626
          %v1638 = vadd.f32 %v1625, %v1637
          %v1639 = vrcp.pop %v1636
          %v1640 = vmul.f32 %v1638, %v1639
          %v1641 = vlog2.pop %v1629
          %v1642 = vmul.f32 %v1641, 0.6931472
          %v1643 = vsub.f32 %v1640, %v1642
          %v1644 = vmul.f32 %v1643, %v551
          %v1645 = vlaneseq
          %v1646 = vshrl.u32 %v1645, 7
          %s1647 = sadd.s32 %s530, %s538
          %v1648 = vstv %s1647
          %v1649 = vadd.s32 %v1646, %v1648
          %vm1650 = vcmp.lt.s32.totalorder %v1649, 24
          %v1651 = vsel %vm1650, %v1644, 0.0
          %v1652 = vadd.f32 %v537, %v1651
        $region71: #{tpu_custom_call.1} parent=61 // loop_footer
          %s536 = sadd.s32 1, %s532
        $region72: #{tpu_custom_call.1} parent=61 // loop_footer_branch
          %531 = sbr.rel target = $region68
        $region73: #{tpu_custom_call.1} parent=61 // loop_exit
          _
        %vm1653 = vcmask 130048
        %1654 = vst.msk [vmem:[%s506] sm:$0xff] %vm1653, %v537
        %s1655 = sand.u32 %s94, 1
        %s1656 = scalar_lea.sflag [#allocation4], %s1655
        %s1657 = sand.u32 %s94, 1
        %s1658 = smul.addr %s1657, 8
        %s1659 = scalar_lea.vmem [#allocation3], %s1658
        // Predicated region
        $region74: #{tpu_custom_call.1} parent=61 // pred_check
          %p1660 = pneg %p104
        $region75: #{tpu_custom_call.1} parent=61 // pred_check_branch
          %1662 = sbr.rel (%p1660) target = $region77
        $region76: #{tpu_custom_call.1} parent=61 // pred_region
          %s1664 = ssub.s32 128, 128
          %1665 = vsyncadd %s1656, %s1664
          %s1666 = smul.addr %s20, 2
          %s1667 = sadd.s32 %s21, %s1666
          %s1668 = smul.addr %s1667, 128
          %s1669 = scalar_lea.hbm %s2, %s1668
          %s1671 = sshll.u32 %s1659, 4
          %s1672 = int_to_ptr.vmem [resolvable:$true] %s1671
          %1674 = dma.vmem_to_hbm [thread:$0]  %s1672, 128, %s1669, %s1656
        $region77: #{tpu_custom_call.1} parent=61 // pred_fallthru
          _
      $region62: #{tpu_custom_call.1} parent=5 // pred_fallthru
        _
      %p1675 = scmp.le.s32.totalorder 2, %s11
      // Predicated region
      $region78: #{tpu_custom_call.1} parent=5 // pred_check
        %p1676 = pneg %p1675
      $region79: #{tpu_custom_call.1} parent=5 // pred_check_branch
        %1678 = sbr.rel (%p1676) target = $region81
      $region80: #{tpu_custom_call.1} parent=5 // pred_region
        %s1679 = ssub.s32 %s11, 2
        // Predicated region
        $region82: #{tpu_custom_call.1} parent=80 // pred_check
          %p1680 = pneg %p110
        $region83: #{tpu_custom_call.1} parent=80 // pred_check_branch
          %1682 = sbr.rel (%p1680) target = $region85
        $region84: #{tpu_custom_call.1} parent=80 // pred_region
          %s1683 = sand.u32 %s95, 1
          %s1684 = scalar_lea.sflag [#allocation4], %s1683
          %s1685 = sand.u32 %s95, 1
          %s1686 = smul.addr %s1685, 8
          %s1687 = scalar_lea.vmem [#allocation3], %s1686
          %1688 = dma.done %s1684, 128
        $region85: #{tpu_custom_call.1} parent=80 // pred_fallthru
          _
      $region81: #{tpu_custom_call.1} parent=5 // pred_fallthru
        _
    $region6: #{tpu_custom_call.1} parent=1 // loop_footer
      %s15 = sadd.s32 1, %s11
    $region7: #{tpu_custom_call.1} parent=1 // loop_footer_branch
      %10 = sbr.rel target = $region3
    $region8: #{tpu_custom_call.1} parent=1 // loop_exit
      _
    %1689 = vsyncpa [#allocation4], 1
    %s1690 = scalar_lea.sflag [#allocation4], 1
    %1691 = vsyncpa %s1690, 1

</llo_original>
